<compile_context>
chip_gen: v7x
topology: tpu7x:2x2x1
jax: 0.10.0
libtpu: 0.0.40
codegen_flags: <defaults>
</compile_context>

<pallas_src>
import functools

import numpy as np
import jax
import jax.numpy as jnp
from jax import lax
from jax.experimental import pallas as pl
from jax.experimental.pallas import tpu as pltpu


# PyTorch LSTM gate row order is [i, f, g, o]; we pack columns as [i, f, o, g]
# so the three sigmoid gates are contiguous and the (rescaled) g gate is last.
GATE_PERM = (0, 1, 3, 2)


# -----------------------------------------------------------------------------
# Fused Pallas kernel
# -----------------------------------------------------------------------------
def make_fused_kernel(T, H, out_size, n_induce, layers):
    G = 8 * H          # packed gate width: 4 gates x 2 directions
    TWO_H = 2 * H

    def kernel(*refs):
        idx_ref = refs[0]                        # (n_induce,) int32 in SMEM
        x_ref = refs[1]                          # (T, D0)
        w_refs = refs[2:2 + 3 * layers]          # per layer: wih, whh, b (packed)
        fc_ref = refs[2 + 3 * layers]            # (2H, 2*out_size)
        out_ref = refs[3 + 3 * layers]           # (n_induce, 2*out_size)
        hbuf = refs[4 + 3 * layers]              # (T, 2H) scratch

        # Direction masks (forward lanes are the even H-wide blocks).
        lane_g = lax.broadcasted_iota(jnp.int32, (1, G), 1)
        is_fwd_g = (lane_g % TWO_H) < H
        lane_h = lax.broadcasted_iota(jnp.int32, (1, TWO_H), 1)
        is_fwd_h = lane_h < H

        # Time-reversal permutation (anti-identity).  Used to flip the
        # backward-direction time axis with one tiny MXU matmul per use; all of
        # this sits off the serialized h->h critical path.
        r_i = lax.broadcasted_iota(jnp.int32, (T, T), 0)
        c_i = lax.broadcasted_iota(jnp.int32, (T, T), 1)
        revmat = (r_i + c_i == T - 1).astype(jnp.float32)

        inp = x_ref[...]                         # layer input, time-ordered
        for l in range(layers):
            wih = w_refs[3 * l][...]             # (D_l, 8H)
            whh = w_refs[3 * l + 1][...]         # (2H, 8H) block-diag, vreg-resident
            b = w_refs[3 * l + 2][...]           # (1, 8H)

            # 1) Input projection for ALL timesteps at once (hoisted off the
            #    recurrence) -- one full-width MXU matmul per layer.
            gx = jnp.dot(inp, wih, preferred_element_type=jnp.float32) + b
            # Pre-reverse the backward-direction gate columns so the inner loop
            # does a single static row slice per step (no per-step select).
            gx_rev = jnp.dot(revmat, gx, preferred_element_type=jnp.float32)
            gx_comb = jnp.where(is_fwd_g, gx, gx_rev)     # value, ~2 vregs @ T=16

            # 2) Recurrence: both directions share one (1,2H)x(2H,8H) matmul per
            #    step, ONE 128-lane sigmoid (g gate pre-scaled: tanh(x)=2sig(2x)-1),
            #    ONE (1,2H) store per step.  h/c live in vregs; loop fully
            #    unrolled (T is small and static).
            # TODO(synk): latch whh on the MXU via pltpu.matmul_push_rhs /
            # matmul_acc_lhs / matmul_pop; plain jnp.dot on a hoisted vreg-
            # resident RHS kept for lowering robustness.
            # TODO(synk): for T >= ~64 switch to lax.fori_loop(unroll=4..8).
            h = jnp.zeros((1, TWO_H), jnp.float32)
            c = jnp.zeros((1, TWO_H), jnp.float32)
            for t in range(T):
                gates = gx_comb[t:t + 1, :] + jnp.dot(
                    h, whh, preferred_element_type=jnp.float32)
                s = jax.nn.sigmoid(gates)                   # single EUP pass
                i_g = s[:, 0:TWO_H]
                f_g = s[:, TWO_H:2 * TWO_H]
                o_g = s[:, 2 * TWO_H:3 * TWO_H]
                g_g = 2.0 * s[:, 3 * TWO_H:4 * TWO_H] - 1.0  # tanh via sigmoid
                c = f_g * c + i_g * g_g
                h = o_g * jnp.tanh(c)
                hbuf[pl.ds(t, 1), :] = h                    # [h_f(t), h_b(T-1-t)]

            # 3) Put the backward half back in time order (one matmul + one
            #    select per layer) -> next layer input / final features.
            hraw = hbuf[...]
            hrev = jnp.dot(revmat, hraw, preferred_element_type=jnp.float32)
            inp = jnp.where(is_fwd_h, hraw, hrev)           # (T, 2H), time order

        # 4) Inducing-point gather as a one-hot matmul (no scalar VMEM gather),
        #    then the FC head only on the gathered rows; single packed output.
        row_i = lax.broadcasted_iota(jnp.int32, (n_induce, T), 0)
        col_i = lax.broadcasted_iota(jnp.int32, (n_induce, T), 1)
        onehot = jnp.zeros((n_induce, T), jnp.float32)
        for i in range(n_induce):
            r = idx_ref[i]
            onehot = jnp.where((row_i == i) & (col_i == r), 1.0, onehot)
        sel = jnp.dot(onehot, inp, preferred_element_type=jnp.float32)   # (n_induce, 2H)
        out_ref[...] = jnp.dot(sel, fc_ref[...],
                               preferred_element_type=jnp.float32)

    return kernel


# -----------------------------------------------------------------------------
# Wrapper
# -----------------------------------------------------------------------------
def rnn_induce_forward(packed, Y, dT, induce_idx, switch, *,
                       hidden_size, layers, out_size):
    """Mirrors RNNInduce.forward (float32)."""
    feats = [Y, dT[:, None]]
    if switch is not None:
        feats.append(switch[:, None])
    x = jnp.concatenate(feats, axis=1).astype(jnp.float32)   # (T, input_size)

    T = x.shape[0]
    H = hidden_size
    n_induce = int(induce_idx.shape[0])

    kern = make_fused_kernel(T, H, out_size, n_induce, layers)

    vmem = pl.BlockSpec(memory_space=pltpu.MemorySpace.VMEM)
    smem = pl.BlockSpec(memory_space=pltpu.MemorySpace.SMEM)

    args = [induce_idx.astype(jnp.int32), x]
    in_specs = [smem, vmem]
    for l in range(layers):
        args += [packed[f"wih_{l}"], packed[f"whh_{l}"], packed[f"b_{l}"]]
        in_specs += [vmem, vmem, vmem]
    args.append(packed["fc_weight"])
    in_specs.append(vmem)

    out = pl.pallas_call(
        kern,
        out_shape=jax.ShapeDtypeStruct((n_induce, 2 * out_size), jnp.float32),
        in_specs=in_specs,
        out_specs=vmem,
        scratch_shapes=[
            pltpu.VMEM((T, 2 * H), jnp.float32),   # per-step hidden rows
        ],
    )(*args)
    return out[:, :out_size], out[:, out_size:]


# -----------------------------------------------------------------------------
# Parameter init (PyTorch layout) + packing for the fused kernel
# -----------------------------------------------------------------------------
def init_raw_params(key, input_size, hidden_size, layers, out_size):
    """Raw weights in torch.nn.LSTM layout: w_ih (4H, D), w_hh (4H, H), b = b_ih+b_hh."""
    H = hidden_size
    params = {}
    bound = 1.0 / np.sqrt(H)
    keys = iter(jax.random.split(key, layers * 2 * 4 + 1))
    for l in range(layers):
        d_in = input_size if l == 0 else 2 * H
        for suf in ("", "_reverse"):
            w_ih = jax.random.uniform(next(keys), (4 * H, d_in),
                                      minval=-bound, maxval=bound, dtype=jnp.float32)
            w_hh = jax.random.uniform(next(keys), (4 * H, H),
                                      minval=-bound, maxval=bound, dtype=jnp.float32)
            b_ih = jax.random.uniform(next(keys), (4 * H,),
                                      minval=-bound, maxval=bound, dtype=jnp.float32)
            b_hh = jax.random.uniform(next(keys), (4 * H,),
                                      minval=-bound, maxval=bound, dtype=jnp.float32)
            params[f"w_ih_l{l}{suf}"] = w_ih
            params[f"w_hh_l{l}{suf}"] = w_hh
            params[f"b_l{l}{suf}"] = b_ih + b_hh
    params["fc_weight"] = jax.random.normal(
        next(keys), (2 * H, 2 * out_size), dtype=jnp.float32)
    return params


def pack_params(raw, hidden_size, layers):
    """Pack both directions into gate-major [i_f i_b f_f f_b o_f o_b g_f g_b] columns.

    The g-gate columns are scaled by 2 so the kernel can use a single sigmoid
    over all gates and recover tanh(x) = 2*sigmoid(2x) - 1.
    """
    H = hidden_size
    packed = {}
    Z = jnp.zeros((H, H), jnp.float32)
    for l in range(layers):
        w_ih_f, w_ih_b = raw[f"w_ih_l{l}"], raw[f"w_ih_l{l}_reverse"]
        w_hh_f, w_hh_b = raw[f"w_hh_l{l}"], raw[f"w_hh_l{l}_reverse"]
        b_f, b_b = raw[f"b_l{l}"], raw[f"b_l{l}_reverse"]
        wih_cols, whh_cols, b_cols = [], [], []
        for k in GATE_PERM:
            sl = slice(k * H, (k + 1) * H)
            scale = 2.0 if k == 2 else 1.0      # pre-scale g gate (tanh trick)
            wih_cols += [scale * w_ih_f[sl].T, scale * w_ih_b[sl].T]      # (D, H)
            whh_cols += [jnp.concatenate([scale * w_hh_f[sl].T, Z], axis=0),
                         jnp.concatenate([Z, scale * w_hh_b[sl].T], axis=0)]
            b_cols += [scale * b_f[sl], scale * b_b[sl]]
        packed[f"wih_{l}"] = jnp.concatenate(wih_cols, axis=1)            # (D, 8H)
        packed[f"whh_{l}"] = jnp.concatenate(whh_cols, axis=1)            # (2H, 8H)
        packed[f"b_{l}"] = jnp.concatenate(b_cols)[None, :]               # (1, 8H)
    packed["fc_weight"] = raw["fc_weight"]
    return packed


# -----------------------------------------------------------------------------
# Pure-JAX reference (for correctness check), uses raw PyTorch-layout weights
# -----------------------------------------------------------------------------
def _lstm_dir_ref(x, w_ih, w_hh, b, H):
    wiT, whT = w_ih.T, w_hh.T

    def step(carry, x_t):
        h, c = carry
        gates = x_t[None, :] @ wiT + h @ whT + b[None, :]
        i = jax.nn.sigmoid(gates[:, 0 * H:1 * H])
        f = jax.nn.sigmoid(gates[:, 1 * H:2 * H])
        g = jnp.tanh(gates[:, 2 * H:3 * H])
        o = jax.nn.sigmoid(gates[:, 3 * H:4 * H])
        c = f * c + i * g
        h = o * jnp.tanh(c)
        return (h, c), h[0]

    init = (jnp.zeros((1, H), jnp.float32), jnp.zeros((1, H), jnp.float32))
    _, hs = lax.scan(step, init, x)
    return hs


def rnn_induce_ref(raw, Y, dT, induce_idx, switch, *,
                   hidden_size, layers, out_size):
    feats = [Y, dT[:, None]]
    if switch is not None:
        feats.append(switch[:, None])
    x = jnp.concatenate(feats, axis=1).astype(jnp.float32)
    layer_in = x
    H = hidden_size
    for l in range(layers):
        h_f = _lstm_dir_ref(layer_in, raw[f"w_ih_l{l}"],
                            raw[f"w_hh_l{l}"], raw[f"b_l{l}"], H)
        h_b = jnp.flip(
            _lstm_dir_ref(jnp.flip(layer_in, axis=0),
                          raw[f"w_ih_l{l}_reverse"], raw[f"w_hh_l{l}_reverse"],
                          raw[f"b_l{l}_reverse"], H),
            axis=0)
        layer_in = jnp.concatenate([h_f, h_b], axis=1)
    out = layer_in @ raw["fc_weight"]
    sel = out[induce_idx]
    return sel[:, :out_size], sel[:, out_size:]


# -----------------------------------------------------------------------------
if __name__ == "__main__":
    # Small shapes consistent with the module's forward.
    T = 16            # sequence length (LSTM batch dim is the squeezed-out 1)
    y_dim = 6         # Y feature dim
    input_size = y_dim + 2   # Y + dT + switch
    hidden_size = 16
    layers = 2
    out_size = 4

    key = jax.random.PRNGKey(0)
    kY, kdT, ksw, kp = jax.random.split(key, 4)
    Y = jax.random.normal(kY, (T, y_dim), dtype=jnp.float32)
    dT = jax.random.uniform(kdT, (T,), dtype=jnp.float32)
    switch = jax.random.normal(ksw, (T,), dtype=jnp.float32)
    induce_idx = jnp.array([0, 3, 7, 12, 15], dtype=jnp.int32)

    # Host-side bounds check (OOB indices would just produce zero rows in the
    # one-hot gather, but validate anyway).
    assert int(jnp.min(induce_idx)) >= 0 and int(jnp.max(induce_idx)) < T

    raw = init_raw_params(kp, input_size, hidden_size, layers, out_size)
    packed = pack_params(raw, hidden_size, layers)

    fwd = jax.jit(functools.partial(rnn_induce_forward,
                                    hidden_size=hidden_size, layers=layers,
                                    out_size=out_size))
    mu, logvar = fwd(packed, Y, dT, induce_idx, switch)
    mu = jax.block_until_ready(mu)
    logvar = jax.block_until_ready(logvar)

    mu_ref, logvar_ref = rnn_induce_ref(raw, Y, dT, induce_idx, switch,
                                        hidden_size=hidden_size, layers=layers,
                                        out_size=out_size)

    assert mu.shape == (len(induce_idx), out_size)
    assert logvar.shape == (len(induce_idx), out_size)
    np.testing.assert_allclose(np.asarray(mu), np.asarray(mu_ref),
                               rtol=5e-3, atol=5e-3)
    np.testing.assert_allclose(np.asarray(logvar), np.asarray(logvar_ref),
                               rtol=5e-3, atol=5e-3)
    print("KERNEL_OK")
</pallas_src>

<mosaic_0001>
module attributes {stable_mosaic.version = 11 : i64} {
  func.func @kernel(%arg0: memref<5xi32, #tpu.memory_space<smem>>, %arg1: memref<16x8xf32, #tpu.memory_space<vmem>>, %arg2: memref<8x128xf32, #tpu.memory_space<vmem>>, %arg3: memref<32x128xf32, #tpu.memory_space<vmem>>, %arg4: memref<1x128xf32, #tpu.memory_space<vmem>>, %arg5: memref<32x128xf32, #tpu.memory_space<vmem>>, %arg6: memref<32x128xf32, #tpu.memory_space<vmem>>, %arg7: memref<1x128xf32, #tpu.memory_space<vmem>>, %arg8: memref<32x8xf32, #tpu.memory_space<vmem>>, %arg9: memref<5x8xf32, #tpu.memory_space<vmem>>, %arg10: memref<16x32xf32, #tpu.memory_space<vmem>>) attributes {dimension_semantics = [], scalar_prefetch = 0 : i64, scratch_operands = 1 : i64, tpu.core_type = #tpu.core_type<tc>} {
    %0 = tpu.iota {dimensions = array<i32: 1>} : vector<1x128xi32>
    %c32_i32 = arith.constant 32 : i32
    %c0_i32 = arith.constant 0 : i32
    %1 = arith.cmpi eq, %c32_i32, %c0_i32 : i32
    %c1_i32 = arith.constant 1 : i32
    %2 = arith.select %1, %c1_i32, %c32_i32 : i32
    %3 = vector.broadcast %2 : i32 to vector<1x128xi32>
    %4 = arith.remsi %0, %3 : vector<1x128xi32>
    %c0_i32_0 = arith.constant 0 : i32
    %5 = vector.broadcast %c0_i32_0 : i32 to vector<1x128xi32>
    %6 = arith.cmpi ne, %4, %5 : vector<1x128xi32>
    %c0_i32_1 = arith.constant 0 : i32
    %7 = vector.broadcast %c0_i32_1 : i32 to vector<1x128xi32>
    %8 = arith.cmpi slt, %4, %7 : vector<1x128xi32>
    %c0_i32_2 = arith.constant 0 : i32
    %9 = arith.cmpi slt, %2, %c0_i32_2 : i32
    %10 = vector.broadcast %9 : i1 to vector<1x128xi1>
    %11 = vector.broadcast %10 : vector<1x128xi1> to vector<1x128xi1>
    %12 = arith.xori %8, %11 : vector<1x128xi1>
    %13 = arith.andi %12, %6 : vector<1x128xi1>
    %14 = vector.broadcast %2 : i32 to vector<1x128xi32>
    %15 = arith.addi %4, %14 : vector<1x128xi32>
    %16 = arith.select %13, %15, %4 : vector<1x128xi1>, vector<1x128xi32>
    %c16_i32 = arith.constant 16 : i32
    %17 = vector.broadcast %c16_i32 : i32 to vector<1x128xi32>
    %18 = arith.cmpi slt, %16, %17 : vector<1x128xi32>
    %19 = tpu.iota {dimensions = array<i32: 1>} : vector<1x32xi32>
    %c16_i32_3 = arith.constant 16 : i32
    %20 = vector.broadcast %c16_i32_3 : i32 to vector<1x32xi32>
    %21 = arith.cmpi slt, %19, %20 : vector<1x32xi32>
    %22 = tpu.iota {dimensions = array<i32: 0>} : vector<16x16xi32>
    %23 = tpu.iota {dimensions = array<i32: 1>} : vector<16x16xi32>
    %24 = arith.addi %22, %23 : vector<16x16xi32>
    %c15_i32 = arith.constant 15 : i32
    %25 = vector.broadcast %c15_i32 : i32 to vector<16x16xi32>
    %26 = arith.cmpi eq, %24, %25 : vector<16x16xi32>
    %27 = arith.extui %26 : vector<16x16xi1> to vector<16x16xi32>
    %28 = arith.sitofp %27 : vector<16x16xi32> to vector<16x16xf32>
    %c0 = arith.constant 0 : index
    %c0_4 = arith.constant 0 : index
    %29 = vector.load %arg1[%c0, %c0_4] : memref<16x8xf32, #tpu.memory_space<vmem>>, vector<16x8xf32>
    %c0_5 = arith.constant 0 : index
    %c0_6 = arith.constant 0 : index
    %30 = vector.load %arg2[%c0_5, %c0_6] : memref<8x128xf32, #tpu.memory_space<vmem>>, vector<8x128xf32>
    %c0_7 = arith.constant 0 : index
    %c0_8 = arith.constant 0 : index
    %31 = vector.load %arg3[%c0_7, %c0_8] : memref<32x128xf32, #tpu.memory_space<vmem>>, vector<32x128xf32>
    %c0_9 = arith.constant 0 : index
    %c0_10 = arith.constant 0 : index
    %32 = vector.load %arg4[%c0_9, %c0_10] : memref<1x128xf32, #tpu.memory_space<vmem>>, vector<1x128xf32>
    %cst = arith.constant dense<0.000000e+00> : vector<16x128xf32>
    %33 = tpu.matmul %29, %30, %cst {dimension_numbers = #tpu.dot_dimension_numbers<[1], [0], [0], [1], [0, 0, 1, 1], [], []>} : vector<16x8xf32>, vector<8x128xf32>, vector<16x128xf32> -> vector<16x128xf32>
    %34 = vector.broadcast %32 : vector<1x128xf32> to vector<16x128xf32>
    %35 = arith.addf %33, %34 : vector<16x128xf32>
    %cst_11 = arith.constant dense<0.000000e+00> : vector<16x128xf32>
    %36 = tpu.matmul %28, %35, %cst_11 {dimension_numbers = #tpu.dot_dimension_numbers<[1], [0], [0], [1], [0, 0, 1, 1], [], []>} : vector<16x16xf32>, vector<16x128xf32>, vector<16x128xf32> -> vector<16x128xf32>
    %37 = vector.shape_cast %18 : vector<1x128xi1> to vector<1x128xi1>
    %38 = vector.broadcast %37 : vector<1x128xi1> to vector<16x128xi1>
    %39 = arith.select %38, %35, %36 : vector<16x128xi1>, vector<16x128xf32>
    %cst_12 = arith.constant 0.000000e+00 : f32
    %40 = vector.broadcast %cst_12 : f32 to vector<1x32xf32>
    %cst_13 = arith.constant 0.000000e+00 : f32
    %41 = vector.broadcast %cst_13 : f32 to vector<1x32xf32>
    %42 = vector.extract_strided_slice %39 {offsets = [0, 0], sizes = [1, 128], strides = [1, 1]} : vector<16x128xf32> to vector<1x128xf32>
    %cst_14 = arith.constant dense<0.000000e+00> : vector<1x128xf32>
    %43 = tpu.matmul %40, %31, %cst_14 {dimension_numbers = #tpu.dot_dimension_numbers<[1], [0], [0], [1], [0, 0, 1, 1], [], []>} : vector<1x32xf32>, vector<32x128xf32>, vector<1x128xf32> -> vector<1x128xf32>
    %44 = arith.addf %42, %43 : vector<1x128xf32>
    %45 = arith.negf %44 : vector<1x128xf32>
    %46 = math.exp %45 : vector<1x128xf32>
    %cst_15 = arith.constant 1.000000e+00 : f32
    %47 = vector.broadcast %cst_15 : f32 to vector<1x128xf32>
    %48 = arith.addf %47, %46 : vector<1x128xf32>
    %49 = arith.divf %47, %48 : vector<1x128xf32>
    %50 = vector.extract_strided_slice %49 {offsets = [0, 0], sizes = [1, 32], strides = [1, 1]} : vector<1x128xf32> to vector<1x32xf32>
    %51 = vector.extract_strided_slice %49 {offsets = [0, 32], sizes = [1, 32], strides = [1, 1]} : vector<1x128xf32> to vector<1x32xf32>
    %52 = vector.extract_strided_slice %49 {offsets = [0, 64], sizes = [1, 32], strides = [1, 1]} : vector<1x128xf32> to vector<1x32xf32>
    %53 = vector.extract_strided_slice %49 {offsets = [0, 96], sizes = [1, 32], strides = [1, 1]} : vector<1x128xf32> to vector<1x32xf32>
    %cst_16 = arith.constant 2.000000e+00 : f32
    %54 = vector.broadcast %cst_16 : f32 to vector<1x32xf32>
    %55 = arith.mulf %54, %53 : vector<1x32xf32>
    %cst_17 = arith.constant 1.000000e+00 : f32
    %56 = vector.broadcast %cst_17 : f32 to vector<1x32xf32>
    %57 = arith.subf %55, %56 : vector<1x32xf32>
    %58 = arith.mulf %51, %41 : vector<1x32xf32>
    %59 = arith.mulf %50, %57 : vector<1x32xf32>
    %60 = arith.addf %58, %59 : vector<1x32xf32>
    %61 = math.tanh %60 : vector<1x32xf32>
    %62 = arith.mulf %52, %61 : vector<1x32xf32>
    %c0_18 = arith.constant 0 : index
    %c0_19 = arith.constant 0 : index
    %63 = vector.load %arg10[%c0_18, %c0_19] : memref<16x32xf32, #tpu.memory_space<vmem>>, vector<1x32xf32>
    tpu.vector_store %arg10[%c0_18, %c0_19], %62 {strides = array<i32>} : memref<16x32xf32, #tpu.memory_space<vmem>>, vector<1x32xf32>,
    %64 = vector.extract_strided_slice %39 {offsets = [1, 0], sizes = [1, 128], strides = [1, 1]} : vector<16x128xf32> to vector<1x128xf32>
    %cst_20 = arith.constant dense<0.000000e+00> : vector<1x128xf32>
    %65 = tpu.matmul %62, %31, %cst_20 {dimension_numbers = #tpu.dot_dimension_numbers<[1], [0], [0], [1], [0, 0, 1, 1], [], []>} : vector<1x32xf32>, vector<32x128xf32>, vector<1x128xf32> -> vector<1x128xf32>
    %66 = arith.addf %64, %65 : vector<1x128xf32>
    %67 = arith.negf %66 : vector<1x128xf32>
    %68 = math.exp %67 : vector<1x128xf32>
    %cst_21 = arith.constant 1.000000e+00 : f32
    %69 = vector.broadcast %cst_21 : f32 to vector<1x128xf32>
    %70 = arith.addf %69, %68 : vector<1x128xf32>
    %71 = arith.divf %69, %70 : vector<1x128xf32>
    %72 = vector.extract_strided_slice %71 {offsets = [0, 0], sizes = [1, 32], strides = [1, 1]} : vector<1x128xf32> to vector<1x32xf32>
    %73 = vector.extract_strided_slice %71 {offsets = [0, 32], sizes = [1, 32], strides = [1, 1]} : vector<1x128xf32> to vector<1x32xf32>
    %74 = vector.extract_strided_slice %71 {offsets = [0, 64], sizes = [1, 32], strides = [1, 1]} : vector<1x128xf32> to vector<1x32xf32>
    %75 = vector.extract_strided_slice %71 {offsets = [0, 96], sizes = [1, 32], strides = [1, 1]} : vector<1x128xf32> to vector<1x32xf32>
    %cst_22 = arith.constant 2.000000e+00 : f32
    %76 = vector.broadcast %cst_22 : f32 to vector<1x32xf32>
    %77 = arith.mulf %76, %75 : vector<1x32xf32>
    %cst_23 = arith.constant 1.000000e+00 : f32
    %78 = vector.broadcast %cst_23 : f32 to vector<1x32xf32>
    %79 = arith.subf %77, %78 : vector<1x32xf32>
    %80 = arith.mulf %73, %60 : vector<1x32xf32>
    %81 = arith.mulf %72, %79 : vector<1x32xf32>
    %82 = arith.addf %80, %81 : vector<1x32xf32>
    %83 = math.tanh %82 : vector<1x32xf32>
    %84 = arith.mulf %74, %83 : vector<1x32xf32>
    %c1 = arith.constant 1 : index
    %c0_24 = arith.constant 0 : index
    %85 = vector.load %arg10[%c1, %c0_24] : memref<16x32xf32, #tpu.memory_space<vmem>>, vector<1x32xf32>
    tpu.vector_store %arg10[%c1, %c0_24], %84 {strides = array<i32>} : memref<16x32xf32, #tpu.memory_space<vmem>>, vector<1x32xf32>,
    %86 = vector.extract_strided_slice %39 {offsets = [2, 0], sizes = [1, 128], strides = [1, 1]} : vector<16x128xf32> to vector<1x128xf32>
    %cst_25 = arith.constant dense<0.000000e+00> : vector<1x128xf32>
    %87 = tpu.matmul %84, %31, %cst_25 {dimension_numbers = #tpu.dot_dimension_numbers<[1], [0], [0], [1], [0, 0, 1, 1], [], []>} : vector<1x32xf32>, vector<32x128xf32>, vector<1x128xf32> -> vector<1x128xf32>
    %88 = arith.addf %86, %87 : vector<1x128xf32>
    %89 = arith.negf %88 : vector<1x128xf32>
    %90 = math.exp %89 : vector<1x128xf32>
    %cst_26 = arith.constant 1.000000e+00 : f32
    %91 = vector.broadcast %cst_26 : f32 to vector<1x128xf32>
    %92 = arith.addf %91, %90 : vector<1x128xf32>
    %93 = arith.divf %91, %92 : vector<1x128xf32>
    %94 = vector.extract_strided_slice %93 {offsets = [0, 0], sizes = [1, 32], strides = [1, 1]} : vector<1x128xf32> to vector<1x32xf32>
    %95 = vector.extract_strided_slice %93 {offsets = [0, 32], sizes = [1, 32], strides = [1, 1]} : vector<1x128xf32> to vector<1x32xf32>
    %96 = vector.extract_strided_slice %93 {offsets = [0, 64], sizes = [1, 32], strides = [1, 1]} : vector<1x128xf32> to vector<1x32xf32>
    %97 = vector.extract_strided_slice %93 {offsets = [0, 96], sizes = [1, 32], strides = [1, 1]} : vector<1x128xf32> to vector<1x32xf32>
    %cst_27 = arith.constant 2.000000e+00 : f32
    %98 = vector.broadcast %cst_27 : f32 to vector<1x32xf32>
    %99 = arith.mulf %98, %97 : vector<1x32xf32>
    %cst_28 = arith.constant 1.000000e+00 : f32
    %100 = vector.broadcast %cst_28 : f32 to vector<1x32xf32>
    %101 = arith.subf %99, %100 : vector<1x32xf32>
    %102 = arith.mulf %95, %82 : vector<1x32xf32>
    %103 = arith.mulf %94, %101 : vector<1x32xf32>
    %104 = arith.addf %102, %103 : vector<1x32xf32>
    %105 = math.tanh %104 : vector<1x32xf32>
    %106 = arith.mulf %96, %105 : vector<1x32xf32>
    %c2 = arith.constant 2 : index
    %c0_29 = arith.constant 0 : index
    %107 = vector.load %arg10[%c2, %c0_29] : memref<16x32xf32, #tpu.memory_space<vmem>>, vector<1x32xf32>
    tpu.vector_store %arg10[%c2, %c0_29], %106 {strides = array<i32>} : memref<16x32xf32, #tpu.memory_space<vmem>>, vector<1x32xf32>,
    %108 = vector.extract_strided_slice %39 {offsets = [3, 0], sizes = [1, 128], strides = [1, 1]} : vector<16x128xf32> to vector<1x128xf32>
    %cst_30 = arith.constant dense<0.000000e+00> : vector<1x128xf32>
    %109 = tpu.matmul %106, %31, %cst_30 {dimension_numbers = #tpu.dot_dimension_numbers<[1], [0], [0], [1], [0, 0, 1, 1], [], []>} : vector<1x32xf32>, vector<32x128xf32>, vector<1x128xf32> -> vector<1x128xf32>
    %110 = arith.addf %108, %109 : vector<1x128xf32>
    %111 = arith.negf %110 : vector<1x128xf32>
    %112 = math.exp %111 : vector<1x128xf32>
    %cst_31 = arith.constant 1.000000e+00 : f32
    %113 = vector.broadcast %cst_31 : f32 to vector<1x128xf32>
    %114 = arith.addf %113, %112 : vector<1x128xf32>
    %115 = arith.divf %113, %114 : vector<1x128xf32>
    %116 = vector.extract_strided_slice %115 {offsets = [0, 0], sizes = [1, 32], strides = [1, 1]} : vector<1x128xf32> to vector<1x32xf32>
    %117 = vector.extract_strided_slice %115 {offsets = [0, 32], sizes = [1, 32], strides = [1, 1]} : vector<1x128xf32> to vector<1x32xf32>
    %118 = vector.extract_strided_slice %115 {offsets = [0, 64], sizes = [1, 32], strides = [1, 1]} : vector<1x128xf32> to vector<1x32xf32>
    %119 = vector.extract_strided_slice %115 {offsets = [0, 96], sizes = [1, 32], strides = [1, 1]} : vector<1x128xf32> to vector<1x32xf32>
    %cst_32 = arith.constant 2.000000e+00 : f32
    %120 = vector.broadcast %cst_32 : f32 to vector<1x32xf32>
    %121 = arith.mulf %120, %119 : vector<1x32xf32>
    %cst_33 = arith.constant 1.000000e+00 : f32
    %122 = vector.broadcast %cst_33 : f32 to vector<1x32xf32>
    %123 = arith.subf %121, %122 : vector<1x32xf32>
    %124 = arith.mulf %117, %104 : vector<1x32xf32>
    %125 = arith.mulf %116, %123 : vector<1x32xf32>
    %126 = arith.addf %124, %125 : vector<1x32xf32>
    %127 = math.tanh %126 : vector<1x32xf32>
    %128 = arith.mulf %118, %127 : vector<1x32xf32>
    %c3 = arith.constant 3 : index
    %c0_34 = arith.constant 0 : index
    %129 = vector.load %arg10[%c3, %c0_34] : memref<16x32xf32, #tpu.memory_space<vmem>>, vector<1x32xf32>
    tpu.vector_store %arg10[%c3, %c0_34], %128 {strides = array<i32>} : memref<16x32xf32, #tpu.memory_space<vmem>>, vector<1x32xf32>,
    %130 = vector.extract_strided_slice %39 {offsets = [4, 0], sizes = [1, 128], strides = [1, 1]} : vector<16x128xf32> to vector<1x128xf32>
    %cst_35 = arith.constant dense<0.000000e+00> : vector<1x128xf32>
    %131 = tpu.matmul %128, %31, %cst_35 {dimension_numbers = #tpu.dot_dimension_numbers<[1], [0], [0], [1], [0, 0, 1, 1], [], []>} : vector<1x32xf32>, vector<32x128xf32>, vector<1x128xf32> -> vector<1x128xf32>
    %132 = arith.addf %130, %131 : vector<1x128xf32>
    %133 = arith.negf %132 : vector<1x128xf32>
    %134 = math.exp %133 : vector<1x128xf32>
    %cst_36 = arith.constant 1.000000e+00 : f32
    %135 = vector.broadcast %cst_36 : f32 to vector<1x128xf32>
    %136 = arith.addf %135, %134 : vector<1x128xf32>
    %137 = arith.divf %135, %136 : vector<1x128xf32>
    %138 = vector.extract_strided_slice %137 {offsets = [0, 0], sizes = [1, 32], strides = [1, 1]} : vector<1x128xf32> to vector<1x32xf32>
    %139 = vector.extract_strided_slice %137 {offsets = [0, 32], sizes = [1, 32], strides = [1, 1]} : vector<1x128xf32> to vector<1x32xf32>
    %140 = vector.extract_strided_slice %137 {offsets = [0, 64], sizes = [1, 32], strides = [1, 1]} : vector<1x128xf32> to vector<1x32xf32>
    %141 = vector.extract_strided_slice %137 {offsets = [0, 96], sizes = [1, 32], strides = [1, 1]} : vector<1x128xf32> to vector<1x32xf32>
    %cst_37 = arith.constant 2.000000e+00 : f32
    %142 = vector.broadcast %cst_37 : f32 to vector<1x32xf32>
    %143 = arith.mulf %142, %141 : vector<1x32xf32>
    %cst_38 = arith.constant 1.000000e+00 : f32
    %144 = vector.broadcast %cst_38 : f32 to vector<1x32xf32>
    %145 = arith.subf %143, %144 : vector<1x32xf32>
    %146 = arith.mulf %139, %126 : vector<1x32xf32>
    %147 = arith.mulf %138, %145 : vector<1x32xf32>
    %148 = arith.addf %146, %147 : vector<1x32xf32>
    %149 = math.tanh %148 : vector<1x32xf32>
    %150 = arith.mulf %140, %149 : vector<1x32xf32>
    %c4 = arith.constant 4 : index
    %c0_39 = arith.constant 0 : index
    %151 = vector.load %arg10[%c4, %c0_39] : memref<16x32xf32, #tpu.memory_space<vmem>>, vector<1x32xf32>
    tpu.vector_store %arg10[%c4, %c0_39], %150 {strides = array<i32>} : memref<16x32xf32, #tpu.memory_space<vmem>>, vector<1x32xf32>,
    %152 = vector.extract_strided_slice %39 {offsets = [5, 0], sizes = [1, 128], strides = [1, 1]} : vector<16x128xf32> to vector<1x128xf32>
    %cst_40 = arith.constant dense<0.000000e+00> : vector<1x128xf32>
    %153 = tpu.matmul %150, %31, %cst_40 {dimension_numbers = #tpu.dot_dimension_numbers<[1], [0], [0], [1], [0, 0, 1, 1], [], []>} : vector<1x32xf32>, vector<32x128xf32>, vector<1x128xf32> -> vector<1x128xf32>
    %154 = arith.addf %152, %153 : vector<1x128xf32>
    %155 = arith.negf %154 : vector<1x128xf32>
    %156 = math.exp %155 : vector<1x128xf32>
    %cst_41 = arith.constant 1.000000e+00 : f32
    %157 = vector.broadcast %cst_41 : f32 to vector<1x128xf32>
    %158 = arith.addf %157, %156 : vector<1x128xf32>
    %159 = arith.divf %157, %158 : vector<1x128xf32>
    %160 = vector.extract_strided_slice %159 {offsets = [0, 0], sizes = [1, 32], strides = [1, 1]} : vector<1x128xf32> to vector<1x32xf32>
    %161 = vector.extract_strided_slice %159 {offsets = [0, 32], sizes = [1, 32], strides = [1, 1]} : vector<1x128xf32> to vector<1x32xf32>
    %162 = vector.extract_strided_slice %159 {offsets = [0, 64], sizes = [1, 32], strides = [1, 1]} : vector<1x128xf32> to vector<1x32xf32>
    %163 = vector.extract_strided_slice %159 {offsets = [0, 96], sizes = [1, 32], strides = [1, 1]} : vector<1x128xf32> to vector<1x32xf32>
    %cst_42 = arith.constant 2.000000e+00 : f32
    %164 = vector.broadcast %cst_42 : f32 to vector<1x32xf32>
    %165 = arith.mulf %164, %163 : vector<1x32xf32>
    %cst_43 = arith.constant 1.000000e+00 : f32
    %166 = vector.broadcast %cst_43 : f32 to vector<1x32xf32>
    %167 = arith.subf %165, %166 : vector<1x32xf32>
    %168 = arith.mulf %161, %148 : vector<1x32xf32>
    %169 = arith.mulf %160, %167 : vector<1x32xf32>
    %170 = arith.addf %168, %169 : vector<1x32xf32>
    %171 = math.tanh %170 : vector<1x32xf32>
    %172 = arith.mulf %162, %171 : vector<1x32xf32>
    %c5 = arith.constant 5 : index
    %c0_44 = arith.constant 0 : index
    %173 = vector.load %arg10[%c5, %c0_44] : memref<16x32xf32, #tpu.memory_space<vmem>>, vector<1x32xf32>
    tpu.vector_store %arg10[%c5, %c0_44], %172 {strides = array<i32>} : memref<16x32xf32, #tpu.memory_space<vmem>>, vector<1x32xf32>,
    %174 = vector.extract_strided_slice %39 {offsets = [6, 0], sizes = [1, 128], strides = [1, 1]} : vector<16x128xf32> to vector<1x128xf32>
    %cst_45 = arith.constant dense<0.000000e+00> : vector<1x128xf32>
    %175 = tpu.matmul %172, %31, %cst_45 {dimension_numbers = #tpu.dot_dimension_numbers<[1], [0], [0], [1], [0, 0, 1, 1], [], []>} : vector<1x32xf32>, vector<32x128xf32>, vector<1x128xf32> -> vector<1x128xf32>
    %176 = arith.addf %174, %175 : vector<1x128xf32>
    %177 = arith.negf %176 : vector<1x128xf32>
    %178 = math.exp %177 : vector<1x128xf32>
    %cst_46 = arith.constant 1.000000e+00 : f32
    %179 = vector.broadcast %cst_46 : f32 to vector<1x128xf32>
    %180 = arith.addf %179, %178 : vector<1x128xf32>
    %181 = arith.divf %179, %180 : vector<1x128xf32>
    %182 = vector.extract_strided_slice %181 {offsets = [0, 0], sizes = [1, 32], strides = [1, 1]} : vector<1x128xf32> to vector<1x32xf32>
    %183 = vector.extract_strided_slice %181 {offsets = [0, 32], sizes = [1, 32], strides = [1, 1]} : vector<1x128xf32> to vector<1x32xf32>
    %184 = vector.extract_strided_slice %181 {offsets = [0, 64], sizes = [1, 32], strides = [1, 1]} : vector<1x128xf32> to vector<1x32xf32>
    %185 = vector.extract_strided_slice %181 {offsets = [0, 96], sizes = [1, 32], strides = [1, 1]} : vector<1x128xf32> to vector<1x32xf32>
    %cst_47 = arith.constant 2.000000e+00 : f32
    %186 = vector.broadcast %cst_47 : f32 to vector<1x32xf32>
    %187 = arith.mulf %186, %185 : vector<1x32xf32>
    %cst_48 = arith.constant 1.000000e+00 : f32
    %188 = vector.broadcast %cst_48 : f32 to vector<1x32xf32>
    %189 = arith.subf %187, %188 : vector<1x32xf32>
    %190 = arith.mulf %183, %170 : vector<1x32xf32>
    %191 = arith.mulf %182, %189 : vector<1x32xf32>
    %192 = arith.addf %190, %191 : vector<1x32xf32>
    %193 = math.tanh %192 : vector<1x32xf32>
    %194 = arith.mulf %184, %193 : vector<1x32xf32>
    %c6 = arith.constant 6 : index
    %c0_49 = arith.constant 0 : index
    %195 = vector.load %arg10[%c6, %c0_49] : memref<16x32xf32, #tpu.memory_space<vmem>>, vector<1x32xf32>
    tpu.vector_store %arg10[%c6, %c0_49], %194 {strides = array<i32>} : memref<16x32xf32, #tpu.memory_space<vmem>>, vector<1x32xf32>,
    %196 = vector.extract_strided_slice %39 {offsets = [7, 0], sizes = [1, 128], strides = [1, 1]} : vector<16x128xf32> to vector<1x128xf32>
    %cst_50 = arith.constant dense<0.000000e+00> : vector<1x128xf32>
    %197 = tpu.matmul %194, %31, %cst_50 {dimension_numbers = #tpu.dot_dimension_numbers<[1], [0], [0], [1], [0, 0, 1, 1], [], []>} : vector<1x32xf32>, vector<32x128xf32>, vector<1x128xf32> -> vector<1x128xf32>
    %198 = arith.addf %196, %197 : vector<1x128xf32>
    %199 = arith.negf %198 : vector<1x128xf32>
    %200 = math.exp %199 : vector<1x128xf32>
    %cst_51 = arith.constant 1.000000e+00 : f32
    %201 = vector.broadcast %cst_51 : f32 to vector<1x128xf32>
    %202 = arith.addf %201, %200 : vector<1x128xf32>
    %203 = arith.divf %201, %202 : vector<1x128xf32>
    %204 = vector.extract_strided_slice %203 {offsets = [0, 0], sizes = [1, 32], strides = [1, 1]} : vector<1x128xf32> to vector<1x32xf32>
    %205 = vector.extract_strided_slice %203 {offsets = [0, 32], sizes = [1, 32], strides = [1, 1]} : vector<1x128xf32> to vector<1x32xf32>
    %206 = vector.extract_strided_slice %203 {offsets = [0, 64], sizes = [1, 32], strides = [1, 1]} : vector<1x128xf32> to vector<1x32xf32>
    %207 = vector.extract_strided_slice %203 {offsets = [0, 96], sizes = [1, 32], strides = [1, 1]} : vector<1x128xf32> to vector<1x32xf32>
    %cst_52 = arith.constant 2.000000e+00 : f32
    %208 = vector.broadcast %cst_52 : f32 to vector<1x32xf32>
    %209 = arith.mulf %208, %207 : vector<1x32xf32>
    %cst_53 = arith.constant 1.000000e+00 : f32
    %210 = vector.broadcast %cst_53 : f32 to vector<1x32xf32>
    %211 = arith.subf %209, %210 : vector<1x32xf32>
    %212 = arith.mulf %205, %192 : vector<1x32xf32>
    %213 = arith.mulf %204, %211 : vector<1x32xf32>
    %214 = arith.addf %212, %213 : vector<1x32xf32>
    %215 = math.tanh %214 : vector<1x32xf32>
    %216 = arith.mulf %206, %215 : vector<1x32xf32>
    %c7 = arith.constant 7 : index
    %c0_54 = arith.constant 0 : index
    %217 = vector.load %arg10[%c7, %c0_54] : memref<16x32xf32, #tpu.memory_space<vmem>>, vector<1x32xf32>
    tpu.vector_store %arg10[%c7, %c0_54], %216 {strides = array<i32>} : memref<16x32xf32, #tpu.memory_space<vmem>>, vector<1x32xf32>,
    %218 = vector.extract_strided_slice %39 {offsets = [8, 0], sizes = [1, 128], strides = [1, 1]} : vector<16x128xf32> to vector<1x128xf32>
    %cst_55 = arith.constant dense<0.000000e+00> : vector<1x128xf32>
    %219 = tpu.matmul %216, %31, %cst_55 {dimension_numbers = #tpu.dot_dimension_numbers<[1], [0], [0], [1], [0, 0, 1, 1], [], []>} : vector<1x32xf32>, vector<32x128xf32>, vector<1x128xf32> -> vector<1x128xf32>
    %220 = arith.addf %218, %219 : vector<1x128xf32>
    %221 = arith.negf %220 : vector<1x128xf32>
    %222 = math.exp %221 : vector<1x128xf32>
    %cst_56 = arith.constant 1.000000e+00 : f32
    %223 = vector.broadcast %cst_56 : f32 to vector<1x128xf32>
    %224 = arith.addf %223, %222 : vector<1x128xf32>
    %225 = arith.divf %223, %224 : vector<1x128xf32>
    %226 = vector.extract_strided_slice %225 {offsets = [0, 0], sizes = [1, 32], strides = [1, 1]} : vector<1x128xf32> to vector<1x32xf32>
    %227 = vector.extract_strided_slice %225 {offsets = [0, 32], sizes = [1, 32], strides = [1, 1]} : vector<1x128xf32> to vector<1x32xf32>
    %228 = vector.extract_strided_slice %225 {offsets = [0, 64], sizes = [1, 32], strides = [1, 1]} : vector<1x128xf32> to vector<1x32xf32>
    %229 = vector.extract_strided_slice %225 {offsets = [0, 96], sizes = [1, 32], strides = [1, 1]} : vector<1x128xf32> to vector<1x32xf32>
    %cst_57 = arith.constant 2.000000e+00 : f32
    %230 = vector.broadcast %cst_57 : f32 to vector<1x32xf32>
    %231 = arith.mulf %230, %229 : vector<1x32xf32>
    %cst_58 = arith.constant 1.000000e+00 : f32
    %232 = vector.broadcast %cst_58 : f32 to vector<1x32xf32>
    %233 = arith.subf %231, %232 : vector<1x32xf32>
    %234 = arith.mulf %227, %214 : vector<1x32xf32>
    %235 = arith.mulf %226, %233 : vector<1x32xf32>
    %236 = arith.addf %234, %235 : vector<1x32xf32>
    %237 = math.tanh %236 : vector<1x32xf32>
    %238 = arith.mulf %228, %237 : vector<1x32xf32>
    %c8 = arith.constant 8 : index
    %c0_59 = arith.constant 0 : index
    %239 = vector.load %arg10[%c8, %c0_59] : memref<16x32xf32, #tpu.memory_space<vmem>>, vector<1x32xf32>
    tpu.vector_store %arg10[%c8, %c0_59], %238 {strides = array<i32>} : memref<16x32xf32, #tpu.memory_space<vmem>>, vector<1x32xf32>,
    %240 = vector.extract_strided_slice %39 {offsets = [9, 0], sizes = [1, 128], strides = [1, 1]} : vector<16x128xf32> to vector<1x128xf32>
    %cst_60 = arith.constant dense<0.000000e+00> : vector<1x128xf32>
    %241 = tpu.matmul %238, %31, %cst_60 {dimension_numbers = #tpu.dot_dimension_numbers<[1], [0], [0], [1], [0, 0, 1, 1], [], []>} : vector<1x32xf32>, vector<32x128xf32>, vector<1x128xf32> -> vector<1x128xf32>
    %242 = arith.addf %240, %241 : vector<1x128xf32>
    %243 = arith.negf %242 : vector<1x128xf32>
    %244 = math.exp %243 : vector<1x128xf32>
    %cst_61 = arith.constant 1.000000e+00 : f32
    %245 = vector.broadcast %cst_61 : f32 to vector<1x128xf32>
    %246 = arith.addf %245, %244 : vector<1x128xf32>
    %247 = arith.divf %245, %246 : vector<1x128xf32>
    %248 = vector.extract_strided_slice %247 {offsets = [0, 0], sizes = [1, 32], strides = [1, 1]} : vector<1x128xf32> to vector<1x32xf32>
    %249 = vector.extract_strided_slice %247 {offsets = [0, 32], sizes = [1, 32], strides = [1, 1]} : vector<1x128xf32> to vector<1x32xf32>
    %250 = vector.extract_strided_slice %247 {offsets = [0, 64], sizes = [1, 32], strides = [1, 1]} : vector<1x128xf32> to vector<1x32xf32>
    %251 = vector.extract_strided_slice %247 {offsets = [0, 96], sizes = [1, 32], strides = [1, 1]} : vector<1x128xf32> to vector<1x32xf32>
    %cst_62 = arith.constant 2.000000e+00 : f32
    %252 = vector.broadcast %cst_62 : f32 to vector<1x32xf32>
    %253 = arith.mulf %252, %251 : vector<1x32xf32>
    %cst_63 = arith.constant 1.000000e+00 : f32
    %254 = vector.broadcast %cst_63 : f32 to vector<1x32xf32>
    %255 = arith.subf %253, %254 : vector<1x32xf32>
    %256 = arith.mulf %249, %236 : vector<1x32xf32>
    %257 = arith.mulf %248, %255 : vector<1x32xf32>
    %258 = arith.addf %256, %257 : vector<1x32xf32>
    %259 = math.tanh %258 : vector<1x32xf32>
    %260 = arith.mulf %250, %259 : vector<1x32xf32>
    %c9 = arith.constant 9 : index
    %c0_64 = arith.constant 0 : index
    %261 = vector.load %arg10[%c9, %c0_64] : memref<16x32xf32, #tpu.memory_space<vmem>>, vector<1x32xf32>
    tpu.vector_store %arg10[%c9, %c0_64], %260 {strides = array<i32>} : memref<16x32xf32, #tpu.memory_space<vmem>>, vector<1x32xf32>,
    %262 = vector.extract_strided_slice %39 {offsets = [10, 0], sizes = [1, 128], strides = [1, 1]} : vector<16x128xf32> to vector<1x128xf32>
    %cst_65 = arith.constant dense<0.000000e+00> : vector<1x128xf32>
    %263 = tpu.matmul %260, %31, %cst_65 {dimension_numbers = #tpu.dot_dimension_numbers<[1], [0], [0], [1], [0, 0, 1, 1], [], []>} : vector<1x32xf32>, vector<32x128xf32>, vector<1x128xf32> -> vector<1x128xf32>
    %264 = arith.addf %262, %263 : vector<1x128xf32>
    %265 = arith.negf %264 : vector<1x128xf32>
    %266 = math.exp %265 : vector<1x128xf32>
    %cst_66 = arith.constant 1.000000e+00 : f32
    %267 = vector.broadcast %cst_66 : f32 to vector<1x128xf32>
    %268 = arith.addf %267, %266 : vector<1x128xf32>
    %269 = arith.divf %267, %268 : vector<1x128xf32>
    %270 = vector.extract_strided_slice %269 {offsets = [0, 0], sizes = [1, 32], strides = [1, 1]} : vector<1x128xf32> to vector<1x32xf32>
    %271 = vector.extract_strided_slice %269 {offsets = [0, 32], sizes = [1, 32], strides = [1, 1]} : vector<1x128xf32> to vector<1x32xf32>
    %272 = vector.extract_strided_slice %269 {offsets = [0, 64], sizes = [1, 32], strides = [1, 1]} : vector<1x128xf32> to vector<1x32xf32>
    %273 = vector.extract_strided_slice %269 {offsets = [0, 96], sizes = [1, 32], strides = [1, 1]} : vector<1x128xf32> to vector<1x32xf32>
    %cst_67 = arith.constant 2.000000e+00 : f32
    %274 = vector.broadcast %cst_67 : f32 to vector<1x32xf32>
    %275 = arith.mulf %274, %273 : vector<1x32xf32>
    %cst_68 = arith.constant 1.000000e+00 : f32
    %276 = vector.broadcast %cst_68 : f32 to vector<1x32xf32>
    %277 = arith.subf %275, %276 : vector<1x32xf32>
    %278 = arith.mulf %271, %258 : vector<1x32xf32>
    %279 = arith.mulf %270, %277 : vector<1x32xf32>
    %280 = arith.addf %278, %279 : vector<1x32xf32>
    %281 = math.tanh %280 : vector<1x32xf32>
    %282 = arith.mulf %272, %281 : vector<1x32xf32>
    %c10 = arith.constant 10 : index
    %c0_69 = arith.constant 0 : index
    %283 = vector.load %arg10[%c10, %c0_69] : memref<16x32xf32, #tpu.memory_space<vmem>>, vector<1x32xf32>
    tpu.vector_store %arg10[%c10, %c0_69], %282 {strides = array<i32>} : memref<16x32xf32, #tpu.memory_space<vmem>>, vector<1x32xf32>,
    %284 = vector.extract_strided_slice %39 {offsets = [11, 0], sizes = [1, 128], strides = [1, 1]} : vector<16x128xf32> to vector<1x128xf32>
    %cst_70 = arith.constant dense<0.000000e+00> : vector<1x128xf32>
    %285 = tpu.matmul %282, %31, %cst_70 {dimension_numbers = #tpu.dot_dimension_numbers<[1], [0], [0], [1], [0, 0, 1, 1], [], []>} : vector<1x32xf32>, vector<32x128xf32>, vector<1x128xf32> -> vector<1x128xf32>
    %286 = arith.addf %284, %285 : vector<1x128xf32>
    %287 = arith.negf %286 : vector<1x128xf32>
    %288 = math.exp %287 : vector<1x128xf32>
    %cst_71 = arith.constant 1.000000e+00 : f32
    %289 = vector.broadcast %cst_71 : f32 to vector<1x128xf32>
    %290 = arith.addf %289, %288 : vector<1x128xf32>
    %291 = arith.divf %289, %290 : vector<1x128xf32>
    %292 = vector.extract_strided_slice %291 {offsets = [0, 0], sizes = [1, 32], strides = [1, 1]} : vector<1x128xf32> to vector<1x32xf32>
    %293 = vector.extract_strided_slice %291 {offsets = [0, 32], sizes = [1, 32], strides = [1, 1]} : vector<1x128xf32> to vector<1x32xf32>
    %294 = vector.extract_strided_slice %291 {offsets = [0, 64], sizes = [1, 32], strides = [1, 1]} : vector<1x128xf32> to vector<1x32xf32>
    %295 = vector.extract_strided_slice %291 {offsets = [0, 96], sizes = [1, 32], strides = [1, 1]} : vector<1x128xf32> to vector<1x32xf32>
    %cst_72 = arith.constant 2.000000e+00 : f32
    %296 = vector.broadcast %cst_72 : f32 to vector<1x32xf32>
    %297 = arith.mulf %296, %295 : vector<1x32xf32>
    %cst_73 = arith.constant 1.000000e+00 : f32
    %298 = vector.broadcast %cst_73 : f32 to vector<1x32xf32>
    %299 = arith.subf %297, %298 : vector<1x32xf32>
    %300 = arith.mulf %293, %280 : vector<1x32xf32>
    %301 = arith.mulf %292, %299 : vector<1x32xf32>
    %302 = arith.addf %300, %301 : vector<1x32xf32>
    %303 = math.tanh %302 : vector<1x32xf32>
    %304 = arith.mulf %294, %303 : vector<1x32xf32>
    %c11 = arith.constant 11 : index
    %c0_74 = arith.constant 0 : index
    %305 = vector.load %arg10[%c11, %c0_74] : memref<16x32xf32, #tpu.memory_space<vmem>>, vector<1x32xf32>
    tpu.vector_store %arg10[%c11, %c0_74], %304 {strides = array<i32>} : memref<16x32xf32, #tpu.memory_space<vmem>>, vector<1x32xf32>,
    %306 = vector.extract_strided_slice %39 {offsets = [12, 0], sizes = [1, 128], strides = [1, 1]} : vector<16x128xf32> to vector<1x128xf32>
    %cst_75 = arith.constant dense<0.000000e+00> : vector<1x128xf32>
    %307 = tpu.matmul %304, %31, %cst_75 {dimension_numbers = #tpu.dot_dimension_numbers<[1], [0], [0], [1], [0, 0, 1, 1], [], []>} : vector<1x32xf32>, vector<32x128xf32>, vector<1x128xf32> -> vector<1x128xf32>
    %308 = arith.addf %306, %307 : vector<1x128xf32>
    %309 = arith.negf %308 : vector<1x128xf32>
    %310 = math.exp %309 : vector<1x128xf32>
    %cst_76 = arith.constant 1.000000e+00 : f32
    %311 = vector.broadcast %cst_76 : f32 to vector<1x128xf32>
    %312 = arith.addf %311, %310 : vector<1x128xf32>
    %313 = arith.divf %311, %312 : vector<1x128xf32>
    %314 = vector.extract_strided_slice %313 {offsets = [0, 0], sizes = [1, 32], strides = [1, 1]} : vector<1x128xf32> to vector<1x32xf32>
    %315 = vector.extract_strided_slice %313 {offsets = [0, 32], sizes = [1, 32], strides = [1, 1]} : vector<1x128xf32> to vector<1x32xf32>
    %316 = vector.extract_strided_slice %313 {offsets = [0, 64], sizes = [1, 32], strides = [1, 1]} : vector<1x128xf32> to vector<1x32xf32>
    %317 = vector.extract_strided_slice %313 {offsets = [0, 96], sizes = [1, 32], strides = [1, 1]} : vector<1x128xf32> to vector<1x32xf32>
    %cst_77 = arith.constant 2.000000e+00 : f32
    %318 = vector.broadcast %cst_77 : f32 to vector<1x32xf32>
    %319 = arith.mulf %318, %317 : vector<1x32xf32>
    %cst_78 = arith.constant 1.000000e+00 : f32
    %320 = vector.broadcast %cst_78 : f32 to vector<1x32xf32>
    %321 = arith.subf %319, %320 : vector<1x32xf32>
    %322 = arith.mulf %315, %302 : vector<1x32xf32>
    %323 = arith.mulf %314, %321 : vector<1x32xf32>
    %324 = arith.addf %322, %323 : vector<1x32xf32>
    %325 = math.tanh %324 : vector<1x32xf32>
    %326 = arith.mulf %316, %325 : vector<1x32xf32>
    %c12 = arith.constant 12 : index
    %c0_79 = arith.constant 0 : index
    %327 = vector.load %arg10[%c12, %c0_79] : memref<16x32xf32, #tpu.memory_space<vmem>>, vector<1x32xf32>
    tpu.vector_store %arg10[%c12, %c0_79], %326 {strides = array<i32>} : memref<16x32xf32, #tpu.memory_space<vmem>>, vector<1x32xf32>,
    %328 = vector.extract_strided_slice %39 {offsets = [13, 0], sizes = [1, 128], strides = [1, 1]} : vector<16x128xf32> to vector<1x128xf32>
    %cst_80 = arith.constant dense<0.000000e+00> : vector<1x128xf32>
    %329 = tpu.matmul %326, %31, %cst_80 {dimension_numbers = #tpu.dot_dimension_numbers<[1], [0], [0], [1], [0, 0, 1, 1], [], []>} : vector<1x32xf32>, vector<32x128xf32>, vector<1x128xf32> -> vector<1x128xf32>
    %330 = arith.addf %328, %329 : vector<1x128xf32>
    %331 = arith.negf %330 : vector<1x128xf32>
    %332 = math.exp %331 : vector<1x128xf32>
    %cst_81 = arith.constant 1.000000e+00 : f32
    %333 = vector.broadcast %cst_81 : f32 to vector<1x128xf32>
    %334 = arith.addf %333, %332 : vector<1x128xf32>
    %335 = arith.divf %333, %334 : vector<1x128xf32>
    %336 = vector.extract_strided_slice %335 {offsets = [0, 0], sizes = [1, 32], strides = [1, 1]} : vector<1x128xf32> to vector<1x32xf32>
    %337 = vector.extract_strided_slice %335 {offsets = [0, 32], sizes = [1, 32], strides = [1, 1]} : vector<1x128xf32> to vector<1x32xf32>
    %338 = vector.extract_strided_slice %335 {offsets = [0, 64], sizes = [1, 32], strides = [1, 1]} : vector<1x128xf32> to vector<1x32xf32>
    %339 = vector.extract_strided_slice %335 {offsets = [0, 96], sizes = [1, 32], strides = [1, 1]} : vector<1x128xf32> to vector<1x32xf32>
    %cst_82 = arith.constant 2.000000e+00 : f32
    %340 = vector.broadcast %cst_82 : f32 to vector<1x32xf32>
    %341 = arith.mulf %340, %339 : vector<1x32xf32>
    %cst_83 = arith.constant 1.000000e+00 : f32
    %342 = vector.broadcast %cst_83 : f32 to vector<1x32xf32>
    %343 = arith.subf %341, %342 : vector<1x32xf32>
    %344 = arith.mulf %337, %324 : vector<1x32xf32>
    %345 = arith.mulf %336, %343 : vector<1x32xf32>
    %346 = arith.addf %344, %345 : vector<1x32xf32>
    %347 = math.tanh %346 : vector<1x32xf32>
    %348 = arith.mulf %338, %347 : vector<1x32xf32>
    %c13 = arith.constant 13 : index
    %c0_84 = arith.constant 0 : index
    %349 = vector.load %arg10[%c13, %c0_84] : memref<16x32xf32, #tpu.memory_space<vmem>>, vector<1x32xf32>
    tpu.vector_store %arg10[%c13, %c0_84], %348 {strides = array<i32>} : memref<16x32xf32, #tpu.memory_space<vmem>>, vector<1x32xf32>,
    %350 = vector.extract_strided_slice %39 {offsets = [14, 0], sizes = [1, 128], strides = [1, 1]} : vector<16x128xf32> to vector<1x128xf32>
    %cst_85 = arith.constant dense<0.000000e+00> : vector<1x128xf32>
    %351 = tpu.matmul %348, %31, %cst_85 {dimension_numbers = #tpu.dot_dimension_numbers<[1], [0], [0], [1], [0, 0, 1, 1], [], []>} : vector<1x32xf32>, vector<32x128xf32>, vector<1x128xf32> -> vector<1x128xf32>
    %352 = arith.addf %350, %351 : vector<1x128xf32>
    %353 = arith.negf %352 : vector<1x128xf32>
    %354 = math.exp %353 : vector<1x128xf32>
    %cst_86 = arith.constant 1.000000e+00 : f32
    %355 = vector.broadcast %cst_86 : f32 to vector<1x128xf32>
    %356 = arith.addf %355, %354 : vector<1x128xf32>
    %357 = arith.divf %355, %356 : vector<1x128xf32>
    %358 = vector.extract_strided_slice %357 {offsets = [0, 0], sizes = [1, 32], strides = [1, 1]} : vector<1x128xf32> to vector<1x32xf32>
    %359 = vector.extract_strided_slice %357 {offsets = [0, 32], sizes = [1, 32], strides = [1, 1]} : vector<1x128xf32> to vector<1x32xf32>
    %360 = vector.extract_strided_slice %357 {offsets = [0, 64], sizes = [1, 32], strides = [1, 1]} : vector<1x128xf32> to vector<1x32xf32>
    %361 = vector.extract_strided_slice %357 {offsets = [0, 96], sizes = [1, 32], strides = [1, 1]} : vector<1x128xf32> to vector<1x32xf32>
    %cst_87 = arith.constant 2.000000e+00 : f32
    %362 = vector.broadcast %cst_87 : f32 to vector<1x32xf32>
    %363 = arith.mulf %362, %361 : vector<1x32xf32>
    %cst_88 = arith.constant 1.000000e+00 : f32
    %364 = vector.broadcast %cst_88 : f32 to vector<1x32xf32>
    %365 = arith.subf %363, %364 : vector<1x32xf32>
    %366 = arith.mulf %359, %346 : vector<1x32xf32>
    %367 = arith.mulf %358, %365 : vector<1x32xf32>
    %368 = arith.addf %366, %367 : vector<1x32xf32>
    %369 = math.tanh %368 : vector<1x32xf32>
    %370 = arith.mulf %360, %369 : vector<1x32xf32>
    %c14 = arith.constant 14 : index
    %c0_89 = arith.constant 0 : index
    %371 = vector.load %arg10[%c14, %c0_89] : memref<16x32xf32, #tpu.memory_space<vmem>>, vector<1x32xf32>
    tpu.vector_store %arg10[%c14, %c0_89], %370 {strides = array<i32>} : memref<16x32xf32, #tpu.memory_space<vmem>>, vector<1x32xf32>,
    %372 = vector.extract_strided_slice %39 {offsets = [15, 0], sizes = [1, 128], strides = [1, 1]} : vector<16x128xf32> to vector<1x128xf32>
    %cst_90 = arith.constant dense<0.000000e+00> : vector<1x128xf32>
    %373 = tpu.matmul %370, %31, %cst_90 {dimension_numbers = #tpu.dot_dimension_numbers<[1], [0], [0], [1], [0, 0, 1, 1], [], []>} : vector<1x32xf32>, vector<32x128xf32>, vector<1x128xf32> -> vector<1x128xf32>
    %374 = arith.addf %372, %373 : vector<1x128xf32>
    %375 = arith.negf %374 : vector<1x128xf32>
    %376 = math.exp %375 : vector<1x128xf32>
    %cst_91 = arith.constant 1.000000e+00 : f32
    %377 = vector.broadcast %cst_91 : f32 to vector<1x128xf32>
    %378 = arith.addf %377, %376 : vector<1x128xf32>
    %379 = arith.divf %377, %378 : vector<1x128xf32>
    %380 = vector.extract_strided_slice %379 {offsets = [0, 0], sizes = [1, 32], strides = [1, 1]} : vector<1x128xf32> to vector<1x32xf32>
    %381 = vector.extract_strided_slice %379 {offsets = [0, 32], sizes = [1, 32], strides = [1, 1]} : vector<1x128xf32> to vector<1x32xf32>
    %382 = vector.extract_strided_slice %379 {offsets = [0, 64], sizes = [1, 32], strides = [1, 1]} : vector<1x128xf32> to vector<1x32xf32>
    %383 = vector.extract_strided_slice %379 {offsets = [0, 96], sizes = [1, 32], strides = [1, 1]} : vector<1x128xf32> to vector<1x32xf32>
    %cst_92 = arith.constant 2.000000e+00 : f32
    %384 = vector.broadcast %cst_92 : f32 to vector<1x32xf32>
    %385 = arith.mulf %384, %383 : vector<1x32xf32>
    %cst_93 = arith.constant 1.000000e+00 : f32
    %386 = vector.broadcast %cst_93 : f32 to vector<1x32xf32>
    %387 = arith.subf %385, %386 : vector<1x32xf32>
    %388 = arith.mulf %381, %368 : vector<1x32xf32>
    %389 = arith.mulf %380, %387 : vector<1x32xf32>
    %390 = arith.addf %388, %389 : vector<1x32xf32>
    %391 = math.tanh %390 : vector<1x32xf32>
    %392 = arith.mulf %382, %391 : vector<1x32xf32>
    %c15 = arith.constant 15 : index
    %c0_94 = arith.constant 0 : index
    %393 = vector.load %arg10[%c15, %c0_94] : memref<16x32xf32, #tpu.memory_space<vmem>>, vector<1x32xf32>
    tpu.vector_store %arg10[%c15, %c0_94], %392 {strides = array<i32>} : memref<16x32xf32, #tpu.memory_space<vmem>>, vector<1x32xf32>,
    %c0_95 = arith.constant 0 : index
    %c0_96 = arith.constant 0 : index
    %394 = vector.load %arg10[%c0_95, %c0_96] : memref<16x32xf32, #tpu.memory_space<vmem>>, vector<16x32xf32>
    %cst_97 = arith.constant dense<0.000000e+00> : vector<16x32xf32>
    %395 = tpu.matmul %28, %394, %cst_97 {dimension_numbers = #tpu.dot_dimension_numbers<[1], [0], [0], [1], [0, 0, 1, 1], [], []>} : vector<16x16xf32>, vector<16x32xf32>, vector<16x32xf32> -> vector<16x32xf32>
    %396 = vector.shape_cast %21 : vector<1x32xi1> to vector<1x32xi1>
    %397 = vector.broadcast %396 : vector<1x32xi1> to vector<16x32xi1>
    %398 = arith.select %397, %394, %395 : vector<16x32xi1>, vector<16x32xf32>
    %c0_98 = arith.constant 0 : index
    %c0_99 = arith.constant 0 : index
    %399 = vector.load %arg5[%c0_98, %c0_99] : memref<32x128xf32, #tpu.memory_space<vmem>>, vector<32x128xf32>
    %c0_100 = arith.constant 0 : index
    %c0_101 = arith.constant 0 : index
    %400 = vector.load %arg6[%c0_100, %c0_101] : memref<32x128xf32, #tpu.memory_space<vmem>>, vector<32x128xf32>
    %c0_102 = arith.constant 0 : index
    %c0_103 = arith.constant 0 : index
    %401 = vector.load %arg7[%c0_102, %c0_103] : memref<1x128xf32, #tpu.memory_space<vmem>>, vector<1x128xf32>
    %cst_104 = arith.constant dense<0.000000e+00> : vector<16x128xf32>
    %402 = tpu.matmul %398, %399, %cst_104 {dimension_numbers = #tpu.dot_dimension_numbers<[1], [0], [0], [1], [0, 0, 1, 1], [], []>} : vector<16x32xf32>, vector<32x128xf32>, vector<16x128xf32> -> vector<16x128xf32>
    %403 = vector.broadcast %401 : vector<1x128xf32> to vector<16x128xf32>
    %404 = arith.addf %402, %403 : vector<16x128xf32>
    %cst_105 = arith.constant dense<0.000000e+00> : vector<16x128xf32>
    %405 = tpu.matmul %28, %404, %cst_105 {dimension_numbers = #tpu.dot_dimension_numbers<[1], [0], [0], [1], [0, 0, 1, 1], [], []>} : vector<16x16xf32>, vector<16x128xf32>, vector<16x128xf32> -> vector<16x128xf32>
    %406 = vector.shape_cast %18 : vector<1x128xi1> to vector<1x128xi1>
    %407 = vector.broadcast %406 : vector<1x128xi1> to vector<16x128xi1>
    %408 = arith.select %407, %404, %405 : vector<16x128xi1>, vector<16x128xf32>
    %cst_106 = arith.constant 0.000000e+00 : f32
    %409 = vector.broadcast %cst_106 : f32 to vector<1x32xf32>
    %cst_107 = arith.constant 0.000000e+00 : f32
    %410 = vector.broadcast %cst_107 : f32 to vector<1x32xf32>
    %411 = vector.extract_strided_slice %408 {offsets = [0, 0], sizes = [1, 128], strides = [1, 1]} : vector<16x128xf32> to vector<1x128xf32>
    %cst_108 = arith.constant dense<0.000000e+00> : vector<1x128xf32>
    %412 = tpu.matmul %409, %400, %cst_108 {dimension_numbers = #tpu.dot_dimension_numbers<[1], [0], [0], [1], [0, 0, 1, 1], [], []>} : vector<1x32xf32>, vector<32x128xf32>, vector<1x128xf32> -> vector<1x128xf32>
    %413 = arith.addf %411, %412 : vector<1x128xf32>
    %414 = arith.negf %413 : vector<1x128xf32>
    %415 = math.exp %414 : vector<1x128xf32>
    %cst_109 = arith.constant 1.000000e+00 : f32
    %416 = vector.broadcast %cst_109 : f32 to vector<1x128xf32>
    %417 = arith.addf %416, %415 : vector<1x128xf32>
    %418 = arith.divf %416, %417 : vector<1x128xf32>
    %419 = vector.extract_strided_slice %418 {offsets = [0, 0], sizes = [1, 32], strides = [1, 1]} : vector<1x128xf32> to vector<1x32xf32>
    %420 = vector.extract_strided_slice %418 {offsets = [0, 32], sizes = [1, 32], strides = [1, 1]} : vector<1x128xf32> to vector<1x32xf32>
    %421 = vector.extract_strided_slice %418 {offsets = [0, 64], sizes = [1, 32], strides = [1, 1]} : vector<1x128xf32> to vector<1x32xf32>
    %422 = vector.extract_strided_slice %418 {offsets = [0, 96], sizes = [1, 32], strides = [1, 1]} : vector<1x128xf32> to vector<1x32xf32>
    %cst_110 = arith.constant 2.000000e+00 : f32
    %423 = vector.broadcast %cst_110 : f32 to vector<1x32xf32>
    %424 = arith.mulf %423, %422 : vector<1x32xf32>
    %cst_111 = arith.constant 1.000000e+00 : f32
    %425 = vector.broadcast %cst_111 : f32 to vector<1x32xf32>
    %426 = arith.subf %424, %425 : vector<1x32xf32>
    %427 = arith.mulf %420, %410 : vector<1x32xf32>
    %428 = arith.mulf %419, %426 : vector<1x32xf32>
    %429 = arith.addf %427, %428 : vector<1x32xf32>
    %430 = math.tanh %429 : vector<1x32xf32>
    %431 = arith.mulf %421, %430 : vector<1x32xf32>
    %c0_112 = arith.constant 0 : index
    %c0_113 = arith.constant 0 : index
    %432 = vector.load %arg10[%c0_112, %c0_113] : memref<16x32xf32, #tpu.memory_space<vmem>>, vector<1x32xf32>
    tpu.vector_store %arg10[%c0_112, %c0_113], %431 {strides = array<i32>} : memref<16x32xf32, #tpu.memory_space<vmem>>, vector<1x32xf32>,
    %433 = vector.extract_strided_slice %408 {offsets = [1, 0], sizes = [1, 128], strides = [1, 1]} : vector<16x128xf32> to vector<1x128xf32>
    %cst_114 = arith.constant dense<0.000000e+00> : vector<1x128xf32>
    %434 = tpu.matmul %431, %400, %cst_114 {dimension_numbers = #tpu.dot_dimension_numbers<[1], [0], [0], [1], [0, 0, 1, 1], [], []>} : vector<1x32xf32>, vector<32x128xf32>, vector<1x128xf32> -> vector<1x128xf32>
    %435 = arith.addf %433, %434 : vector<1x128xf32>
    %436 = arith.negf %435 : vector<1x128xf32>
    %437 = math.exp %436 : vector<1x128xf32>
    %cst_115 = arith.constant 1.000000e+00 : f32
    %438 = vector.broadcast %cst_115 : f32 to vector<1x128xf32>
    %439 = arith.addf %438, %437 : vector<1x128xf32>
    %440 = arith.divf %438, %439 : vector<1x128xf32>
    %441 = vector.extract_strided_slice %440 {offsets = [0, 0], sizes = [1, 32], strides = [1, 1]} : vector<1x128xf32> to vector<1x32xf32>
    %442 = vector.extract_strided_slice %440 {offsets = [0, 32], sizes = [1, 32], strides = [1, 1]} : vector<1x128xf32> to vector<1x32xf32>
    %443 = vector.extract_strided_slice %440 {offsets = [0, 64], sizes = [1, 32], strides = [1, 1]} : vector<1x128xf32> to vector<1x32xf32>
    %444 = vector.extract_strided_slice %440 {offsets = [0, 96], sizes = [1, 32], strides = [1, 1]} : vector<1x128xf32> to vector<1x32xf32>
    %cst_116 = arith.constant 2.000000e+00 : f32
    %445 = vector.broadcast %cst_116 : f32 to vector<1x32xf32>
    %446 = arith.mulf %445, %444 : vector<1x32xf32>
    %cst_117 = arith.constant 1.000000e+00 : f32
    %447 = vector.broadcast %cst_117 : f32 to vector<1x32xf32>
    %448 = arith.subf %446, %447 : vector<1x32xf32>
    %449 = arith.mulf %442, %429 : vector<1x32xf32>
    %450 = arith.mulf %441, %448 : vector<1x32xf32>
    %451 = arith.addf %449, %450 : vector<1x32xf32>
    %452 = math.tanh %451 : vector<1x32xf32>
    %453 = arith.mulf %443, %452 : vector<1x32xf32>
    %c1_118 = arith.constant 1 : index
    %c0_119 = arith.constant 0 : index
    %454 = vector.load %arg10[%c1_118, %c0_119] : memref<16x32xf32, #tpu.memory_space<vmem>>, vector<1x32xf32>
    tpu.vector_store %arg10[%c1_118, %c0_119], %453 {strides = array<i32>} : memref<16x32xf32, #tpu.memory_space<vmem>>, vector<1x32xf32>,
    %455 = vector.extract_strided_slice %408 {offsets = [2, 0], sizes = [1, 128], strides = [1, 1]} : vector<16x128xf32> to vector<1x128xf32>
    %cst_120 = arith.constant dense<0.000000e+00> : vector<1x128xf32>
    %456 = tpu.matmul %453, %400, %cst_120 {dimension_numbers = #tpu.dot_dimension_numbers<[1], [0], [0], [1], [0, 0, 1, 1], [], []>} : vector<1x32xf32>, vector<32x128xf32>, vector<1x128xf32> -> vector<1x128xf32>
    %457 = arith.addf %455, %456 : vector<1x128xf32>
    %458 = arith.negf %457 : vector<1x128xf32>
    %459 = math.exp %458 : vector<1x128xf32>
    %cst_121 = arith.constant 1.000000e+00 : f32
    %460 = vector.broadcast %cst_121 : f32 to vector<1x128xf32>
    %461 = arith.addf %460, %459 : vector<1x128xf32>
    %462 = arith.divf %460, %461 : vector<1x128xf32>
    %463 = vector.extract_strided_slice %462 {offsets = [0, 0], sizes = [1, 32], strides = [1, 1]} : vector<1x128xf32> to vector<1x32xf32>
    %464 = vector.extract_strided_slice %462 {offsets = [0, 32], sizes = [1, 32], strides = [1, 1]} : vector<1x128xf32> to vector<1x32xf32>
    %465 = vector.extract_strided_slice %462 {offsets = [0, 64], sizes = [1, 32], strides = [1, 1]} : vector<1x128xf32> to vector<1x32xf32>
    %466 = vector.extract_strided_slice %462 {offsets = [0, 96], sizes = [1, 32], strides = [1, 1]} : vector<1x128xf32> to vector<1x32xf32>
    %cst_122 = arith.constant 2.000000e+00 : f32
    %467 = vector.broadcast %cst_122 : f32 to vector<1x32xf32>
    %468 = arith.mulf %467, %466 : vector<1x32xf32>
    %cst_123 = arith.constant 1.000000e+00 : f32
    %469 = vector.broadcast %cst_123 : f32 to vector<1x32xf32>
    %470 = arith.subf %468, %469 : vector<1x32xf32>
    %471 = arith.mulf %464, %451 : vector<1x32xf32>
    %472 = arith.mulf %463, %470 : vector<1x32xf32>
    %473 = arith.addf %471, %472 : vector<1x32xf32>
    %474 = math.tanh %473 : vector<1x32xf32>
    %475 = arith.mulf %465, %474 : vector<1x32xf32>
    %c2_124 = arith.constant 2 : index
    %c0_125 = arith.constant 0 : index
    %476 = vector.load %arg10[%c2_124, %c0_125] : memref<16x32xf32, #tpu.memory_space<vmem>>, vector<1x32xf32>
    tpu.vector_store %arg10[%c2_124, %c0_125], %475 {strides = array<i32>} : memref<16x32xf32, #tpu.memory_space<vmem>>, vector<1x32xf32>,
    %477 = vector.extract_strided_slice %408 {offsets = [3, 0], sizes = [1, 128], strides = [1, 1]} : vector<16x128xf32> to vector<1x128xf32>
    %cst_126 = arith.constant dense<0.000000e+00> : vector<1x128xf32>
    %478 = tpu.matmul %475, %400, %cst_126 {dimension_numbers = #tpu.dot_dimension_numbers<[1], [0], [0], [1], [0, 0, 1, 1], [], []>} : vector<1x32xf32>, vector<32x128xf32>, vector<1x128xf32> -> vector<1x128xf32>
    %479 = arith.addf %477, %478 : vector<1x128xf32>
    %480 = arith.negf %479 : vector<1x128xf32>
    %481 = math.exp %480 : vector<1x128xf32>
    %cst_127 = arith.constant 1.000000e+00 : f32
    %482 = vector.broadcast %cst_127 : f32 to vector<1x128xf32>
    %483 = arith.addf %482, %481 : vector<1x128xf32>
    %484 = arith.divf %482, %483 : vector<1x128xf32>
    %485 = vector.extract_strided_slice %484 {offsets = [0, 0], sizes = [1, 32], strides = [1, 1]} : vector<1x128xf32> to vector<1x32xf32>
    %486 = vector.extract_strided_slice %484 {offsets = [0, 32], sizes = [1, 32], strides = [1, 1]} : vector<1x128xf32> to vector<1x32xf32>
    %487 = vector.extract_strided_slice %484 {offsets = [0, 64], sizes = [1, 32], strides = [1, 1]} : vector<1x128xf32> to vector<1x32xf32>
    %488 = vector.extract_strided_slice %484 {offsets = [0, 96], sizes = [1, 32], strides = [1, 1]} : vector<1x128xf32> to vector<1x32xf32>
    %cst_128 = arith.constant 2.000000e+00 : f32
    %489 = vector.broadcast %cst_128 : f32 to vector<1x32xf32>
    %490 = arith.mulf %489, %488 : vector<1x32xf32>
    %cst_129 = arith.constant 1.000000e+00 : f32
    %491 = vector.broadcast %cst_129 : f32 to vector<1x32xf32>
    %492 = arith.subf %490, %491 : vector<1x32xf32>
    %493 = arith.mulf %486, %473 : vector<1x32xf32>
    %494 = arith.mulf %485, %492 : vector<1x32xf32>
    %495 = arith.addf %493, %494 : vector<1x32xf32>
    %496 = math.tanh %495 : vector<1x32xf32>
    %497 = arith.mulf %487, %496 : vector<1x32xf32>
    %c3_130 = arith.constant 3 : index
    %c0_131 = arith.constant 0 : index
    %498 = vector.load %arg10[%c3_130, %c0_131] : memref<16x32xf32, #tpu.memory_space<vmem>>, vector<1x32xf32>
    tpu.vector_store %arg10[%c3_130, %c0_131], %497 {strides = array<i32>} : memref<16x32xf32, #tpu.memory_space<vmem>>, vector<1x32xf32>,
    %499 = vector.extract_strided_slice %408 {offsets = [4, 0], sizes = [1, 128], strides = [1, 1]} : vector<16x128xf32> to vector<1x128xf32>
    %cst_132 = arith.constant dense<0.000000e+00> : vector<1x128xf32>
    %500 = tpu.matmul %497, %400, %cst_132 {dimension_numbers = #tpu.dot_dimension_numbers<[1], [0], [0], [1], [0, 0, 1, 1], [], []>} : vector<1x32xf32>, vector<32x128xf32>, vector<1x128xf32> -> vector<1x128xf32>
    %501 = arith.addf %499, %500 : vector<1x128xf32>
    %502 = arith.negf %501 : vector<1x128xf32>
    %503 = math.exp %502 : vector<1x128xf32>
    %cst_133 = arith.constant 1.000000e+00 : f32
    %504 = vector.broadcast %cst_133 : f32 to vector<1x128xf32>
    %505 = arith.addf %504, %503 : vector<1x128xf32>
    %506 = arith.divf %504, %505 : vector<1x128xf32>
    %507 = vector.extract_strided_slice %506 {offsets = [0, 0], sizes = [1, 32], strides = [1, 1]} : vector<1x128xf32> to vector<1x32xf32>
    %508 = vector.extract_strided_slice %506 {offsets = [0, 32], sizes = [1, 32], strides = [1, 1]} : vector<1x128xf32> to vector<1x32xf32>
    %509 = vector.extract_strided_slice %506 {offsets = [0, 64], sizes = [1, 32], strides = [1, 1]} : vector<1x128xf32> to vector<1x32xf32>
    %510 = vector.extract_strided_slice %506 {offsets = [0, 96], sizes = [1, 32], strides = [1, 1]} : vector<1x128xf32> to vector<1x32xf32>
    %cst_134 = arith.constant 2.000000e+00 : f32
    %511 = vector.broadcast %cst_134 : f32 to vector<1x32xf32>
    %512 = arith.mulf %511, %510 : vector<1x32xf32>
    %cst_135 = arith.constant 1.000000e+00 : f32
    %513 = vector.broadcast %cst_135 : f32 to vector<1x32xf32>
    %514 = arith.subf %512, %513 : vector<1x32xf32>
    %515 = arith.mulf %508, %495 : vector<1x32xf32>
    %516 = arith.mulf %507, %514 : vector<1x32xf32>
    %517 = arith.addf %515, %516 : vector<1x32xf32>
    %518 = math.tanh %517 : vector<1x32xf32>
    %519 = arith.mulf %509, %518 : vector<1x32xf32>
    %c4_136 = arith.constant 4 : index
    %c0_137 = arith.constant 0 : index
    %520 = vector.load %arg10[%c4_136, %c0_137] : memref<16x32xf32, #tpu.memory_space<vmem>>, vector<1x32xf32>
    tpu.vector_store %arg10[%c4_136, %c0_137], %519 {strides = array<i32>} : memref<16x32xf32, #tpu.memory_space<vmem>>, vector<1x32xf32>,
    %521 = vector.extract_strided_slice %408 {offsets = [5, 0], sizes = [1, 128], strides = [1, 1]} : vector<16x128xf32> to vector<1x128xf32>
    %cst_138 = arith.constant dense<0.000000e+00> : vector<1x128xf32>
    %522 = tpu.matmul %519, %400, %cst_138 {dimension_numbers = #tpu.dot_dimension_numbers<[1], [0], [0], [1], [0, 0, 1, 1], [], []>} : vector<1x32xf32>, vector<32x128xf32>, vector<1x128xf32> -> vector<1x128xf32>
    %523 = arith.addf %521, %522 : vector<1x128xf32>
    %524 = arith.negf %523 : vector<1x128xf32>
    %525 = math.exp %524 : vector<1x128xf32>
    %cst_139 = arith.constant 1.000000e+00 : f32
    %526 = vector.broadcast %cst_139 : f32 to vector<1x128xf32>
    %527 = arith.addf %526, %525 : vector<1x128xf32>
    %528 = arith.divf %526, %527 : vector<1x128xf32>
    %529 = vector.extract_strided_slice %528 {offsets = [0, 0], sizes = [1, 32], strides = [1, 1]} : vector<1x128xf32> to vector<1x32xf32>
    %530 = vector.extract_strided_slice %528 {offsets = [0, 32], sizes = [1, 32], strides = [1, 1]} : vector<1x128xf32> to vector<1x32xf32>
    %531 = vector.extract_strided_slice %528 {offsets = [0, 64], sizes = [1, 32], strides = [1, 1]} : vector<1x128xf32> to vector<1x32xf32>
    %532 = vector.extract_strided_slice %528 {offsets = [0, 96], sizes = [1, 32], strides = [1, 1]} : vector<1x128xf32> to vector<1x32xf32>
    %cst_140 = arith.constant 2.000000e+00 : f32
    %533 = vector.broadcast %cst_140 : f32 to vector<1x32xf32>
    %534 = arith.mulf %533, %532 : vector<1x32xf32>
    %cst_141 = arith.constant 1.000000e+00 : f32
    %535 = vector.broadcast %cst_141 : f32 to vector<1x32xf32>
    %536 = arith.subf %534, %535 : vector<1x32xf32>
    %537 = arith.mulf %530, %517 : vector<1x32xf32>
    %538 = arith.mulf %529, %536 : vector<1x32xf32>
    %539 = arith.addf %537, %538 : vector<1x32xf32>
    %540 = math.tanh %539 : vector<1x32xf32>
    %541 = arith.mulf %531, %540 : vector<1x32xf32>
    %c5_142 = arith.constant 5 : index
    %c0_143 = arith.constant 0 : index
    %542 = vector.load %arg10[%c5_142, %c0_143] : memref<16x32xf32, #tpu.memory_space<vmem>>, vector<1x32xf32>
    tpu.vector_store %arg10[%c5_142, %c0_143], %541 {strides = array<i32>} : memref<16x32xf32, #tpu.memory_space<vmem>>, vector<1x32xf32>,
    %543 = vector.extract_strided_slice %408 {offsets = [6, 0], sizes = [1, 128], strides = [1, 1]} : vector<16x128xf32> to vector<1x128xf32>
    %cst_144 = arith.constant dense<0.000000e+00> : vector<1x128xf32>
    %544 = tpu.matmul %541, %400, %cst_144 {dimension_numbers = #tpu.dot_dimension_numbers<[1], [0], [0], [1], [0, 0, 1, 1], [], []>} : vector<1x32xf32>, vector<32x128xf32>, vector<1x128xf32> -> vector<1x128xf32>
    %545 = arith.addf %543, %544 : vector<1x128xf32>
    %546 = arith.negf %545 : vector<1x128xf32>
    %547 = math.exp %546 : vector<1x128xf32>
    %cst_145 = arith.constant 1.000000e+00 : f32
    %548 = vector.broadcast %cst_145 : f32 to vector<1x128xf32>
    %549 = arith.addf %548, %547 : vector<1x128xf32>
    %550 = arith.divf %548, %549 : vector<1x128xf32>
    %551 = vector.extract_strided_slice %550 {offsets = [0, 0], sizes = [1, 32], strides = [1, 1]} : vector<1x128xf32> to vector<1x32xf32>
    %552 = vector.extract_strided_slice %550 {offsets = [0, 32], sizes = [1, 32], strides = [1, 1]} : vector<1x128xf32> to vector<1x32xf32>
    %553 = vector.extract_strided_slice %550 {offsets = [0, 64], sizes = [1, 32], strides = [1, 1]} : vector<1x128xf32> to vector<1x32xf32>
    %554 = vector.extract_strided_slice %550 {offsets = [0, 96], sizes = [1, 32], strides = [1, 1]} : vector<1x128xf32> to vector<1x32xf32>
    %cst_146 = arith.constant 2.000000e+00 : f32
    %555 = vector.broadcast %cst_146 : f32 to vector<1x32xf32>
    %556 = arith.mulf %555, %554 : vector<1x32xf32>
    %cst_147 = arith.constant 1.000000e+00 : f32
    %557 = vector.broadcast %cst_147 : f32 to vector<1x32xf32>
    %558 = arith.subf %556, %557 : vector<1x32xf32>
    %559 = arith.mulf %552, %539 : vector<1x32xf32>
    %560 = arith.mulf %551, %558 : vector<1x32xf32>
    %561 = arith.addf %559, %560 : vector<1x32xf32>
    %562 = math.tanh %561 : vector<1x32xf32>
    %563 = arith.mulf %553, %562 : vector<1x32xf32>
    %c6_148 = arith.constant 6 : index
    %c0_149 = arith.constant 0 : index
    %564 = vector.load %arg10[%c6_148, %c0_149] : memref<16x32xf32, #tpu.memory_space<vmem>>, vector<1x32xf32>
    tpu.vector_store %arg10[%c6_148, %c0_149], %563 {strides = array<i32>} : memref<16x32xf32, #tpu.memory_space<vmem>>, vector<1x32xf32>,
    %565 = vector.extract_strided_slice %408 {offsets = [7, 0], sizes = [1, 128], strides = [1, 1]} : vector<16x128xf32> to vector<1x128xf32>
    %cst_150 = arith.constant dense<0.000000e+00> : vector<1x128xf32>
    %566 = tpu.matmul %563, %400, %cst_150 {dimension_numbers = #tpu.dot_dimension_numbers<[1], [0], [0], [1], [0, 0, 1, 1], [], []>} : vector<1x32xf32>, vector<32x128xf32>, vector<1x128xf32> -> vector<1x128xf32>
    %567 = arith.addf %565, %566 : vector<1x128xf32>
    %568 = arith.negf %567 : vector<1x128xf32>
    %569 = math.exp %568 : vector<1x128xf32>
    %cst_151 = arith.constant 1.000000e+00 : f32
    %570 = vector.broadcast %cst_151 : f32 to vector<1x128xf32>
    %571 = arith.addf %570, %569 : vector<1x128xf32>
    %572 = arith.divf %570, %571 : vector<1x128xf32>
    %573 = vector.extract_strided_slice %572 {offsets = [0, 0], sizes = [1, 32], strides = [1, 1]} : vector<1x128xf32> to vector<1x32xf32>
    %574 = vector.extract_strided_slice %572 {offsets = [0, 32], sizes = [1, 32], strides = [1, 1]} : vector<1x128xf32> to vector<1x32xf32>
    %575 = vector.extract_strided_slice %572 {offsets = [0, 64], sizes = [1, 32], strides = [1, 1]} : vector<1x128xf32> to vector<1x32xf32>
    %576 = vector.extract_strided_slice %572 {offsets = [0, 96], sizes = [1, 32], strides = [1, 1]} : vector<1x128xf32> to vector<1x32xf32>
    %cst_152 = arith.constant 2.000000e+00 : f32
    %577 = vector.broadcast %cst_152 : f32 to vector<1x32xf32>
    %578 = arith.mulf %577, %576 : vector<1x32xf32>
    %cst_153 = arith.constant 1.000000e+00 : f32
    %579 = vector.broadcast %cst_153 : f32 to vector<1x32xf32>
    %580 = arith.subf %578, %579 : vector<1x32xf32>
    %581 = arith.mulf %574, %561 : vector<1x32xf32>
    %582 = arith.mulf %573, %580 : vector<1x32xf32>
    %583 = arith.addf %581, %582 : vector<1x32xf32>
    %584 = math.tanh %583 : vector<1x32xf32>
    %585 = arith.mulf %575, %584 : vector<1x32xf32>
    %c7_154 = arith.constant 7 : index
    %c0_155 = arith.constant 0 : index
    %586 = vector.load %arg10[%c7_154, %c0_155] : memref<16x32xf32, #tpu.memory_space<vmem>>, vector<1x32xf32>
    tpu.vector_store %arg10[%c7_154, %c0_155], %585 {strides = array<i32>} : memref<16x32xf32, #tpu.memory_space<vmem>>, vector<1x32xf32>,
    %587 = vector.extract_strided_slice %408 {offsets = [8, 0], sizes = [1, 128], strides = [1, 1]} : vector<16x128xf32> to vector<1x128xf32>
    %cst_156 = arith.constant dense<0.000000e+00> : vector<1x128xf32>
    %588 = tpu.matmul %585, %400, %cst_156 {dimension_numbers = #tpu.dot_dimension_numbers<[1], [0], [0], [1], [0, 0, 1, 1], [], []>} : vector<1x32xf32>, vector<32x128xf32>, vector<1x128xf32> -> vector<1x128xf32>
    %589 = arith.addf %587, %588 : vector<1x128xf32>
    %590 = arith.negf %589 : vector<1x128xf32>
    %591 = math.exp %590 : vector<1x128xf32>
    %cst_157 = arith.constant 1.000000e+00 : f32
    %592 = vector.broadcast %cst_157 : f32 to vector<1x128xf32>
    %593 = arith.addf %592, %591 : vector<1x128xf32>
    %594 = arith.divf %592, %593 : vector<1x128xf32>
    %595 = vector.extract_strided_slice %594 {offsets = [0, 0], sizes = [1, 32], strides = [1, 1]} : vector<1x128xf32> to vector<1x32xf32>
    %596 = vector.extract_strided_slice %594 {offsets = [0, 32], sizes = [1, 32], strides = [1, 1]} : vector<1x128xf32> to vector<1x32xf32>
    %597 = vector.extract_strided_slice %594 {offsets = [0, 64], sizes = [1, 32], strides = [1, 1]} : vector<1x128xf32> to vector<1x32xf32>
    %598 = vector.extract_strided_slice %594 {offsets = [0, 96], sizes = [1, 32], strides = [1, 1]} : vector<1x128xf32> to vector<1x32xf32>
    %cst_158 = arith.constant 2.000000e+00 : f32
    %599 = vector.broadcast %cst_158 : f32 to vector<1x32xf32>
    %600 = arith.mulf %599, %598 : vector<1x32xf32>
    %cst_159 = arith.constant 1.000000e+00 : f32
    %601 = vector.broadcast %cst_159 : f32 to vector<1x32xf32>
    %602 = arith.subf %600, %601 : vector<1x32xf32>
    %603 = arith.mulf %596, %583 : vector<1x32xf32>
    %604 = arith.mulf %595, %602 : vector<1x32xf32>
    %605 = arith.addf %603, %604 : vector<1x32xf32>
    %606 = math.tanh %605 : vector<1x32xf32>
    %607 = arith.mulf %597, %606 : vector<1x32xf32>
    %c8_160 = arith.constant 8 : index
    %c0_161 = arith.constant 0 : index
    %608 = vector.load %arg10[%c8_160, %c0_161] : memref<16x32xf32, #tpu.memory_space<vmem>>, vector<1x32xf32>
    tpu.vector_store %arg10[%c8_160, %c0_161], %607 {strides = array<i32>} : memref<16x32xf32, #tpu.memory_space<vmem>>, vector<1x32xf32>,
    %609 = vector.extract_strided_slice %408 {offsets = [9, 0], sizes = [1, 128], strides = [1, 1]} : vector<16x128xf32> to vector<1x128xf32>
    %cst_162 = arith.constant dense<0.000000e+00> : vector<1x128xf32>
    %610 = tpu.matmul %607, %400, %cst_162 {dimension_numbers = #tpu.dot_dimension_numbers<[1], [0], [0], [1], [0, 0, 1, 1], [], []>} : vector<1x32xf32>, vector<32x128xf32>, vector<1x128xf32> -> vector<1x128xf32>
    %611 = arith.addf %609, %610 : vector<1x128xf32>
    %612 = arith.negf %611 : vector<1x128xf32>
    %613 = math.exp %612 : vector<1x128xf32>
    %cst_163 = arith.constant 1.000000e+00 : f32
    %614 = vector.broadcast %cst_163 : f32 to vector<1x128xf32>
    %615 = arith.addf %614, %613 : vector<1x128xf32>
    %616 = arith.divf %614, %615 : vector<1x128xf32>
    %617 = vector.extract_strided_slice %616 {offsets = [0, 0], sizes = [1, 32], strides = [1, 1]} : vector<1x128xf32> to vector<1x32xf32>
    %618 = vector.extract_strided_slice %616 {offsets = [0, 32], sizes = [1, 32], strides = [1, 1]} : vector<1x128xf32> to vector<1x32xf32>
    %619 = vector.extract_strided_slice %616 {offsets = [0, 64], sizes = [1, 32], strides = [1, 1]} : vector<1x128xf32> to vector<1x32xf32>
    %620 = vector.extract_strided_slice %616 {offsets = [0, 96], sizes = [1, 32], strides = [1, 1]} : vector<1x128xf32> to vector<1x32xf32>
    %cst_164 = arith.constant 2.000000e+00 : f32
    %621 = vector.broadcast %cst_164 : f32 to vector<1x32xf32>
    %622 = arith.mulf %621, %620 : vector<1x32xf32>
    %cst_165 = arith.constant 1.000000e+00 : f32
    %623 = vector.broadcast %cst_165 : f32 to vector<1x32xf32>
    %624 = arith.subf %622, %623 : vector<1x32xf32>
    %625 = arith.mulf %618, %605 : vector<1x32xf32>
    %626 = arith.mulf %617, %624 : vector<1x32xf32>
    %627 = arith.addf %625, %626 : vector<1x32xf32>
    %628 = math.tanh %627 : vector<1x32xf32>
    %629 = arith.mulf %619, %628 : vector<1x32xf32>
    %c9_166 = arith.constant 9 : index
    %c0_167 = arith.constant 0 : index
    %630 = vector.load %arg10[%c9_166, %c0_167] : memref<16x32xf32, #tpu.memory_space<vmem>>, vector<1x32xf32>
    tpu.vector_store %arg10[%c9_166, %c0_167], %629 {strides = array<i32>} : memref<16x32xf32, #tpu.memory_space<vmem>>, vector<1x32xf32>,
    %631 = vector.extract_strided_slice %408 {offsets = [10, 0], sizes = [1, 128], strides = [1, 1]} : vector<16x128xf32> to vector<1x128xf32>
    %cst_168 = arith.constant dense<0.000000e+00> : vector<1x128xf32>
    %632 = tpu.matmul %629, %400, %cst_168 {dimension_numbers = #tpu.dot_dimension_numbers<[1], [0], [0], [1], [0, 0, 1, 1], [], []>} : vector<1x32xf32>, vector<32x128xf32>, vector<1x128xf32> -> vector<1x128xf32>
    %633 = arith.addf %631, %632 : vector<1x128xf32>
    %634 = arith.negf %633 : vector<1x128xf32>
    %635 = math.exp %634 : vector<1x128xf32>
    %cst_169 = arith.constant 1.000000e+00 : f32
    %636 = vector.broadcast %cst_169 : f32 to vector<1x128xf32>
    %637 = arith.addf %636, %635 : vector<1x128xf32>
    %638 = arith.divf %636, %637 : vector<1x128xf32>
    %639 = vector.extract_strided_slice %638 {offsets = [0, 0], sizes = [1, 32], strides = [1, 1]} : vector<1x128xf32> to vector<1x32xf32>
    %640 = vector.extract_strided_slice %638 {offsets = [0, 32], sizes = [1, 32], strides = [1, 1]} : vector<1x128xf32> to vector<1x32xf32>
    %641 = vector.extract_strided_slice %638 {offsets = [0, 64], sizes = [1, 32], strides = [1, 1]} : vector<1x128xf32> to vector<1x32xf32>
    %642 = vector.extract_strided_slice %638 {offsets = [0, 96], sizes = [1, 32], strides = [1, 1]} : vector<1x128xf32> to vector<1x32xf32>
    %cst_170 = arith.constant 2.000000e+00 : f32
    %643 = vector.broadcast %cst_170 : f32 to vector<1x32xf32>
    %644 = arith.mulf %643, %642 : vector<1x32xf32>
    %cst_171 = arith.constant 1.000000e+00 : f32
    %645 = vector.broadcast %cst_171 : f32 to vector<1x32xf32>
    %646 = arith.subf %644, %645 : vector<1x32xf32>
    %647 = arith.mulf %640, %627 : vector<1x32xf32>
    %648 = arith.mulf %639, %646 : vector<1x32xf32>
    %649 = arith.addf %647, %648 : vector<1x32xf32>
    %650 = math.tanh %649 : vector<1x32xf32>
    %651 = arith.mulf %641, %650 : vector<1x32xf32>
    %c10_172 = arith.constant 10 : index
    %c0_173 = arith.constant 0 : index
    %652 = vector.load %arg10[%c10_172, %c0_173] : memref<16x32xf32, #tpu.memory_space<vmem>>, vector<1x32xf32>
    tpu.vector_store %arg10[%c10_172, %c0_173], %651 {strides = array<i32>} : memref<16x32xf32, #tpu.memory_space<vmem>>, vector<1x32xf32>,
    %653 = vector.extract_strided_slice %408 {offsets = [11, 0], sizes = [1, 128], strides = [1, 1]} : vector<16x128xf32> to vector<1x128xf32>
    %cst_174 = arith.constant dense<0.000000e+00> : vector<1x128xf32>
    %654 = tpu.matmul %651, %400, %cst_174 {dimension_numbers = #tpu.dot_dimension_numbers<[1], [0], [0], [1], [0, 0, 1, 1], [], []>} : vector<1x32xf32>, vector<32x128xf32>, vector<1x128xf32> -> vector<1x128xf32>
    %655 = arith.addf %653, %654 : vector<1x128xf32>
    %656 = arith.negf %655 : vector<1x128xf32>
    %657 = math.exp %656 : vector<1x128xf32>
    %cst_175 = arith.constant 1.000000e+00 : f32
    %658 = vector.broadcast %cst_175 : f32 to vector<1x128xf32>
    %659 = arith.addf %658, %657 : vector<1x128xf32>
    %660 = arith.divf %658, %659 : vector<1x128xf32>
    %661 = vector.extract_strided_slice %660 {offsets = [0, 0], sizes = [1, 32], strides = [1, 1]} : vector<1x128xf32> to vector<1x32xf32>
    %662 = vector.extract_strided_slice %660 {offsets = [0, 32], sizes = [1, 32], strides = [1, 1]} : vector<1x128xf32> to vector<1x32xf32>
    %663 = vector.extract_strided_slice %660 {offsets = [0, 64], sizes = [1, 32], strides = [1, 1]} : vector<1x128xf32> to vector<1x32xf32>
    %664 = vector.extract_strided_slice %660 {offsets = [0, 96], sizes = [1, 32], strides = [1, 1]} : vector<1x128xf32> to vector<1x32xf32>
    %cst_176 = arith.constant 2.000000e+00 : f32
    %665 = vector.broadcast %cst_176 : f32 to vector<1x32xf32>
    %666 = arith.mulf %665, %664 : vector<1x32xf32>
    %cst_177 = arith.constant 1.000000e+00 : f32
    %667 = vector.broadcast %cst_177 : f32 to vector<1x32xf32>
    %668 = arith.subf %666, %667 : vector<1x32xf32>
    %669 = arith.mulf %662, %649 : vector<1x32xf32>
    %670 = arith.mulf %661, %668 : vector<1x32xf32>
    %671 = arith.addf %669, %670 : vector<1x32xf32>
    %672 = math.tanh %671 : vector<1x32xf32>
    %673 = arith.mulf %663, %672 : vector<1x32xf32>
    %c11_178 = arith.constant 11 : index
    %c0_179 = arith.constant 0 : index
    %674 = vector.load %arg10[%c11_178, %c0_179] : memref<16x32xf32, #tpu.memory_space<vmem>>, vector<1x32xf32>
    tpu.vector_store %arg10[%c11_178, %c0_179], %673 {strides = array<i32>} : memref<16x32xf32, #tpu.memory_space<vmem>>, vector<1x32xf32>,
    %675 = vector.extract_strided_slice %408 {offsets = [12, 0], sizes = [1, 128], strides = [1, 1]} : vector<16x128xf32> to vector<1x128xf32>
    %cst_180 = arith.constant dense<0.000000e+00> : vector<1x128xf32>
    %676 = tpu.matmul %673, %400, %cst_180 {dimension_numbers = #tpu.dot_dimension_numbers<[1], [0], [0], [1], [0, 0, 1, 1], [], []>} : vector<1x32xf32>, vector<32x128xf32>, vector<1x128xf32> -> vector<1x128xf32>
    %677 = arith.addf %675, %676 : vector<1x128xf32>
    %678 = arith.negf %677 : vector<1x128xf32>
    %679 = math.exp %678 : vector<1x128xf32>
    %cst_181 = arith.constant 1.000000e+00 : f32
    %680 = vector.broadcast %cst_181 : f32 to vector<1x128xf32>
    %681 = arith.addf %680, %679 : vector<1x128xf32>
    %682 = arith.divf %680, %681 : vector<1x128xf32>
    %683 = vector.extract_strided_slice %682 {offsets = [0, 0], sizes = [1, 32], strides = [1, 1]} : vector<1x128xf32> to vector<1x32xf32>
    %684 = vector.extract_strided_slice %682 {offsets = [0, 32], sizes = [1, 32], strides = [1, 1]} : vector<1x128xf32> to vector<1x32xf32>
    %685 = vector.extract_strided_slice %682 {offsets = [0, 64], sizes = [1, 32], strides = [1, 1]} : vector<1x128xf32> to vector<1x32xf32>
    %686 = vector.extract_strided_slice %682 {offsets = [0, 96], sizes = [1, 32], strides = [1, 1]} : vector<1x128xf32> to vector<1x32xf32>
    %cst_182 = arith.constant 2.000000e+00 : f32
    %687 = vector.broadcast %cst_182 : f32 to vector<1x32xf32>
    %688 = arith.mulf %687, %686 : vector<1x32xf32>
    %cst_183 = arith.constant 1.000000e+00 : f32
    %689 = vector.broadcast %cst_183 : f32 to vector<1x32xf32>
    %690 = arith.subf %688, %689 : vector<1x32xf32>
    %691 = arith.mulf %684, %671 : vector<1x32xf32>
    %692 = arith.mulf %683, %690 : vector<1x32xf32>
    %693 = arith.addf %691, %692 : vector<1x32xf32>
    %694 = math.tanh %693 : vector<1x32xf32>
    %695 = arith.mulf %685, %694 : vector<1x32xf32>
    %c12_184 = arith.constant 12 : index
    %c0_185 = arith.constant 0 : index
    %696 = vector.load %arg10[%c12_184, %c0_185] : memref<16x32xf32, #tpu.memory_space<vmem>>, vector<1x32xf32>
    tpu.vector_store %arg10[%c12_184, %c0_185], %695 {strides = array<i32>} : memref<16x32xf32, #tpu.memory_space<vmem>>, vector<1x32xf32>,
    %697 = vector.extract_strided_slice %408 {offsets = [13, 0], sizes = [1, 128], strides = [1, 1]} : vector<16x128xf32> to vector<1x128xf32>
    %cst_186 = arith.constant dense<0.000000e+00> : vector<1x128xf32>
    %698 = tpu.matmul %695, %400, %cst_186 {dimension_numbers = #tpu.dot_dimension_numbers<[1], [0], [0], [1], [0, 0, 1, 1], [], []>} : vector<1x32xf32>, vector<32x128xf32>, vector<1x128xf32> -> vector<1x128xf32>
    %699 = arith.addf %697, %698 : vector<1x128xf32>
    %700 = arith.negf %699 : vector<1x128xf32>
    %701 = math.exp %700 : vector<1x128xf32>
    %cst_187 = arith.constant 1.000000e+00 : f32
    %702 = vector.broadcast %cst_187 : f32 to vector<1x128xf32>
    %703 = arith.addf %702, %701 : vector<1x128xf32>
    %704 = arith.divf %702, %703 : vector<1x128xf32>
    %705 = vector.extract_strided_slice %704 {offsets = [0, 0], sizes = [1, 32], strides = [1, 1]} : vector<1x128xf32> to vector<1x32xf32>
    %706 = vector.extract_strided_slice %704 {offsets = [0, 32], sizes = [1, 32], strides = [1, 1]} : vector<1x128xf32> to vector<1x32xf32>
    %707 = vector.extract_strided_slice %704 {offsets = [0, 64], sizes = [1, 32], strides = [1, 1]} : vector<1x128xf32> to vector<1x32xf32>
    %708 = vector.extract_strided_slice %704 {offsets = [0, 96], sizes = [1, 32], strides = [1, 1]} : vector<1x128xf32> to vector<1x32xf32>
    %cst_188 = arith.constant 2.000000e+00 : f32
    %709 = vector.broadcast %cst_188 : f32 to vector<1x32xf32>
    %710 = arith.mulf %709, %708 : vector<1x32xf32>
    %cst_189 = arith.constant 1.000000e+00 : f32
    %711 = vector.broadcast %cst_189 : f32 to vector<1x32xf32>
    %712 = arith.subf %710, %711 : vector<1x32xf32>
    %713 = arith.mulf %706, %693 : vector<1x32xf32>
    %714 = arith.mulf %705, %712 : vector<1x32xf32>
    %715 = arith.addf %713, %714 : vector<1x32xf32>
    %716 = math.tanh %715 : vector<1x32xf32>
    %717 = arith.mulf %707, %716 : vector<1x32xf32>
    %c13_190 = arith.constant 13 : index
    %c0_191 = arith.constant 0 : index
    %718 = vector.load %arg10[%c13_190, %c0_191] : memref<16x32xf32, #tpu.memory_space<vmem>>, vector<1x32xf32>
    tpu.vector_store %arg10[%c13_190, %c0_191], %717 {strides = array<i32>} : memref<16x32xf32, #tpu.memory_space<vmem>>, vector<1x32xf32>,
    %719 = vector.extract_strided_slice %408 {offsets = [14, 0], sizes = [1, 128], strides = [1, 1]} : vector<16x128xf32> to vector<1x128xf32>
    %cst_192 = arith.constant dense<0.000000e+00> : vector<1x128xf32>
    %720 = tpu.matmul %717, %400, %cst_192 {dimension_numbers = #tpu.dot_dimension_numbers<[1], [0], [0], [1], [0, 0, 1, 1], [], []>} : vector<1x32xf32>, vector<32x128xf32>, vector<1x128xf32> -> vector<1x128xf32>
    %721 = arith.addf %719, %720 : vector<1x128xf32>
    %722 = arith.negf %721 : vector<1x128xf32>
    %723 = math.exp %722 : vector<1x128xf32>
    %cst_193 = arith.constant 1.000000e+00 : f32
    %724 = vector.broadcast %cst_193 : f32 to vector<1x128xf32>
    %725 = arith.addf %724, %723 : vector<1x128xf32>
    %726 = arith.divf %724, %725 : vector<1x128xf32>
    %727 = vector.extract_strided_slice %726 {offsets = [0, 0], sizes = [1, 32], strides = [1, 1]} : vector<1x128xf32> to vector<1x32xf32>
    %728 = vector.extract_strided_slice %726 {offsets = [0, 32], sizes = [1, 32], strides = [1, 1]} : vector<1x128xf32> to vector<1x32xf32>
    %729 = vector.extract_strided_slice %726 {offsets = [0, 64], sizes = [1, 32], strides = [1, 1]} : vector<1x128xf32> to vector<1x32xf32>
    %730 = vector.extract_strided_slice %726 {offsets = [0, 96], sizes = [1, 32], strides = [1, 1]} : vector<1x128xf32> to vector<1x32xf32>
    %cst_194 = arith.constant 2.000000e+00 : f32
    %731 = vector.broadcast %cst_194 : f32 to vector<1x32xf32>
    %732 = arith.mulf %731, %730 : vector<1x32xf32>
    %cst_195 = arith.constant 1.000000e+00 : f32
    %733 = vector.broadcast %cst_195 : f32 to vector<1x32xf32>
    %734 = arith.subf %732, %733 : vector<1x32xf32>
    %735 = arith.mulf %728, %715 : vector<1x32xf32>
    %736 = arith.mulf %727, %734 : vector<1x32xf32>
    %737 = arith.addf %735, %736 : vector<1x32xf32>
    %738 = math.tanh %737 : vector<1x32xf32>
    %739 = arith.mulf %729, %738 : vector<1x32xf32>
    %c14_196 = arith.constant 14 : index
    %c0_197 = arith.constant 0 : index
    %740 = vector.load %arg10[%c14_196, %c0_197] : memref<16x32xf32, #tpu.memory_space<vmem>>, vector<1x32xf32>
    tpu.vector_store %arg10[%c14_196, %c0_197], %739 {strides = array<i32>} : memref<16x32xf32, #tpu.memory_space<vmem>>, vector<1x32xf32>,
    %741 = vector.extract_strided_slice %408 {offsets = [15, 0], sizes = [1, 128], strides = [1, 1]} : vector<16x128xf32> to vector<1x128xf32>
    %cst_198 = arith.constant dense<0.000000e+00> : vector<1x128xf32>
    %742 = tpu.matmul %739, %400, %cst_198 {dimension_numbers = #tpu.dot_dimension_numbers<[1], [0], [0], [1], [0, 0, 1, 1], [], []>} : vector<1x32xf32>, vector<32x128xf32>, vector<1x128xf32> -> vector<1x128xf32>
    %743 = arith.addf %741, %742 : vector<1x128xf32>
    %744 = arith.negf %743 : vector<1x128xf32>
    %745 = math.exp %744 : vector<1x128xf32>
    %cst_199 = arith.constant 1.000000e+00 : f32
    %746 = vector.broadcast %cst_199 : f32 to vector<1x128xf32>
    %747 = arith.addf %746, %745 : vector<1x128xf32>
    %748 = arith.divf %746, %747 : vector<1x128xf32>
    %749 = vector.extract_strided_slice %748 {offsets = [0, 0], sizes = [1, 32], strides = [1, 1]} : vector<1x128xf32> to vector<1x32xf32>
    %750 = vector.extract_strided_slice %748 {offsets = [0, 32], sizes = [1, 32], strides = [1, 1]} : vector<1x128xf32> to vector<1x32xf32>
    %751 = vector.extract_strided_slice %748 {offsets = [0, 64], sizes = [1, 32], strides = [1, 1]} : vector<1x128xf32> to vector<1x32xf32>
    %752 = vector.extract_strided_slice %748 {offsets = [0, 96], sizes = [1, 32], strides = [1, 1]} : vector<1x128xf32> to vector<1x32xf32>
    %cst_200 = arith.constant 2.000000e+00 : f32
    %753 = vector.broadcast %cst_200 : f32 to vector<1x32xf32>
    %754 = arith.mulf %753, %752 : vector<1x32xf32>
    %cst_201 = arith.constant 1.000000e+00 : f32
    %755 = vector.broadcast %cst_201 : f32 to vector<1x32xf32>
    %756 = arith.subf %754, %755 : vector<1x32xf32>
    %757 = arith.mulf %750, %737 : vector<1x32xf32>
    %758 = arith.mulf %749, %756 : vector<1x32xf32>
    %759 = arith.addf %757, %758 : vector<1x32xf32>
    %760 = math.tanh %759 : vector<1x32xf32>
    %761 = arith.mulf %751, %760 : vector<1x32xf32>
    %c15_202 = arith.constant 15 : index
    %c0_203 = arith.constant 0 : index
    %762 = vector.load %arg10[%c15_202, %c0_203] : memref<16x32xf32, #tpu.memory_space<vmem>>, vector<1x32xf32>
    tpu.vector_store %arg10[%c15_202, %c0_203], %761 {strides = array<i32>} : memref<16x32xf32, #tpu.memory_space<vmem>>, vector<1x32xf32>,
    %c0_204 = arith.constant 0 : index
    %c0_205 = arith.constant 0 : index
    %763 = vector.load %arg10[%c0_204, %c0_205] : memref<16x32xf32, #tpu.memory_space<vmem>>, vector<16x32xf32>
    %cst_206 = arith.constant dense<0.000000e+00> : vector<16x32xf32>
    %764 = tpu.matmul %28, %763, %cst_206 {dimension_numbers = #tpu.dot_dimension_numbers<[1], [0], [0], [1], [0, 0, 1, 1], [], []>} : vector<16x16xf32>, vector<16x32xf32>, vector<16x32xf32> -> vector<16x32xf32>
    %765 = vector.shape_cast %21 : vector<1x32xi1> to vector<1x32xi1>
    %766 = vector.broadcast %765 : vector<1x32xi1> to vector<16x32xi1>
    %767 = arith.select %766, %763, %764 : vector<16x32xi1>, vector<16x32xf32>
    %768 = tpu.iota {dimensions = array<i32: 0>} : vector<5x16xi32>
    %769 = tpu.iota {dimensions = array<i32: 1>} : vector<5x16xi32>
    %cst_207 = arith.constant 0.000000e+00 : f32
    %770 = vector.broadcast %cst_207 : f32 to vector<5x16xf32>
    %c0_208 = arith.constant 0 : index
    %771 = memref.load %arg0[%c0_208] : memref<5xi32, #tpu.memory_space<smem>>
    %c0_i32_209 = arith.constant 0 : i32
    %772 = vector.broadcast %c0_i32_209 : i32 to vector<5x16xi32>
    %773 = arith.cmpi eq, %768, %772 : vector<5x16xi32>
    %774 = vector.broadcast %771 : i32 to vector<5x16xi32>
    %775 = arith.cmpi eq, %769, %774 : vector<5x16xi32>
    %776 = arith.andi %773, %775 : vector<5x16xi1>
    %cst_210 = arith.constant 1.000000e+00 : f32
    %777 = vector.broadcast %cst_210 : f32 to vector<5x16xf32>
    %778 = arith.select %776, %777, %770 : vector<5x16xi1>, vector<5x16xf32>
    %c1_211 = arith.constant 1 : index
    %779 = memref.load %arg0[%c1_211] : memref<5xi32, #tpu.memory_space<smem>>
    %c1_i32_212 = arith.constant 1 : i32
    %780 = vector.broadcast %c1_i32_212 : i32 to vector<5x16xi32>
    %781 = arith.cmpi eq, %768, %780 : vector<5x16xi32>
    %782 = vector.broadcast %779 : i32 to vector<5x16xi32>
    %783 = arith.cmpi eq, %769, %782 : vector<5x16xi32>
    %784 = arith.andi %781, %783 : vector<5x16xi1>
    %cst_213 = arith.constant 1.000000e+00 : f32
    %785 = vector.broadcast %cst_213 : f32 to vector<5x16xf32>
    %786 = arith.select %784, %785, %778 : vector<5x16xi1>, vector<5x16xf32>
    %c2_214 = arith.constant 2 : index
    %787 = memref.load %arg0[%c2_214] : memref<5xi32, #tpu.memory_space<smem>>
    %c2_i32 = arith.constant 2 : i32
    %788 = vector.broadcast %c2_i32 : i32 to vector<5x16xi32>
    %789 = arith.cmpi eq, %768, %788 : vector<5x16xi32>
    %790 = vector.broadcast %787 : i32 to vector<5x16xi32>
    %791 = arith.cmpi eq, %769, %790 : vector<5x16xi32>
    %792 = arith.andi %789, %791 : vector<5x16xi1>
    %cst_215 = arith.constant 1.000000e+00 : f32
    %793 = vector.broadcast %cst_215 : f32 to vector<5x16xf32>
    %794 = arith.select %792, %793, %786 : vector<5x16xi1>, vector<5x16xf32>
    %c3_216 = arith.constant 3 : index
    %795 = memref.load %arg0[%c3_216] : memref<5xi32, #tpu.memory_space<smem>>
    %c3_i32 = arith.constant 3 : i32
    %796 = vector.broadcast %c3_i32 : i32 to vector<5x16xi32>
    %797 = arith.cmpi eq, %768, %796 : vector<5x16xi32>
    %798 = vector.broadcast %795 : i32 to vector<5x16xi32>
    %799 = arith.cmpi eq, %769, %798 : vector<5x16xi32>
    %800 = arith.andi %797, %799 : vector<5x16xi1>
    %cst_217 = arith.constant 1.000000e+00 : f32
    %801 = vector.broadcast %cst_217 : f32 to vector<5x16xf32>
    %802 = arith.select %800, %801, %794 : vector<5x16xi1>, vector<5x16xf32>
    %c4_218 = arith.constant 4 : index
    %803 = memref.load %arg0[%c4_218] : memref<5xi32, #tpu.memory_space<smem>>
    %c4_i32 = arith.constant 4 : i32
    %804 = vector.broadcast %c4_i32 : i32 to vector<5x16xi32>
    %805 = arith.cmpi eq, %768, %804 : vector<5x16xi32>
    %806 = vector.broadcast %803 : i32 to vector<5x16xi32>
    %807 = arith.cmpi eq, %769, %806 : vector<5x16xi32>
    %808 = arith.andi %805, %807 : vector<5x16xi1>
    %cst_219 = arith.constant 1.000000e+00 : f32
    %809 = vector.broadcast %cst_219 : f32 to vector<5x16xf32>
    %810 = arith.select %808, %809, %802 : vector<5x16xi1>, vector<5x16xf32>
    %cst_220 = arith.constant dense<0.000000e+00> : vector<5x32xf32>
    %811 = tpu.matmul %810, %767, %cst_220 {dimension_numbers = #tpu.dot_dimension_numbers<[1], [0], [0], [1], [0, 0, 1, 1], [], []>} : vector<5x16xf32>, vector<16x32xf32>, vector<5x32xf32> -> vector<5x32xf32>
    %c0_221 = arith.constant 0 : index
    %c0_222 = arith.constant 0 : index
    %812 = vector.load %arg8[%c0_221, %c0_222] : memref<32x8xf32, #tpu.memory_space<vmem>>, vector<32x8xf32>
    %cst_223 = arith.constant dense<0.000000e+00> : vector<5x8xf32>
    %813 = tpu.matmul %811, %812, %cst_223 {dimension_numbers = #tpu.dot_dimension_numbers<[1], [0], [0], [1], [0, 0, 1, 1], [], []>} : vector<5x32xf32>, vector<32x8xf32>, vector<5x8xf32> -> vector<5x8xf32>
    %c0_224 = arith.constant 0 : index
    %c0_225 = arith.constant 0 : index
    %814 = vector.load %arg9[%c0_224, %c0_225] : memref<5x8xf32, #tpu.memory_space<vmem>>, vector<5x8xf32>
    tpu.vector_store %arg9[%c0_224, %c0_225], %813 {strides = array<i32>} : memref<5x8xf32, #tpu.memory_space<vmem>>, vector<5x8xf32>,
    return
  }
}

</mosaic_0001>

<llo_original>
// kernel: rnn_induce_forward.1
$region0: #{rnn_induce_forward.1}
  #allocation0 [shape = 'u32[]', space=smem, size = 0x4, offset = 0x4, fixed_abs, tag = 'smem constant byte address 0x4 - core index']
  #allocation1 [shape = 'u32[144,128]{1,0:T(1,128)}', space=vmem, size = 0x12000, scoped, tag = 'internal scratch']
  #allocation2 [shape = 'f32[16,32]{1,0:T(8,128)}', space=vmem, size = 0x2000, scoped, tag = 'scratch operand']
  %s0 = inlined_call_operand.vmem [shape: s32[5], index: 0, kind: input, shape index: {}]
  %s1 = inlined_call_operand.vmem [shape: f32[16,8], index: 1, kind: input, shape index: {}]
  %s2 = inlined_call_operand.vmem [shape: f32[8,128], index: 2, kind: input, shape index: {}]
  %s3 = inlined_call_operand.vmem [shape: f32[32,128], index: 3, kind: input, shape index: {}]
  %s4 = inlined_call_operand.vmem [shape: f32[1,128], index: 4, kind: input, shape index: {}]
  %s5 = inlined_call_operand.vmem [shape: f32[32,128], index: 5, kind: input, shape index: {}]
  %s6 = inlined_call_operand.vmem [shape: f32[32,128], index: 6, kind: input, shape index: {}]
  %s7 = inlined_call_operand.vmem [shape: f32[1,128], index: 7, kind: input, shape index: {}]
  %s8 = inlined_call_operand.vmem [shape: f32[32,8], index: 8, kind: input, shape index: {}]
  %s9 = inlined_call_operand.vmem [shape: f32[5,8], index: 9, kind: output, shape index: {}]
  %s10 = sld [smem:[#allocation0]]
  $region50: #{rnn_induce_forward.1} parent=0
    _
  %s12 = ssub.s32 1, %s10
  %s13 = scalar_select 0, %s12, %s10
  $region1: #{rnn_induce_forward.1} parent=0
    #allocation3 [shape = 'u8[512]{0}', space=smem, size = 0x200, scoped, tag = 'input window, operand 0, single buffered']
    #allocation4 [shape = 's32[1]{0}', space=sflag, size = 0x4, scoped, tag = 'scoped memory for rnn_induce_forward.1']
    %14 = vsyncpa [#allocation4], 0
    // Predicated region
    $region2: #{rnn_induce_forward.1} parent=1 // pred_check
      _
    $region3: #{rnn_induce_forward.1} parent=1 // pred_check_branch
      %16 = sbr.rel (0) target = $region5
    $region4: #{rnn_induce_forward.1} parent=1 // pred_region
      %s18 = ssub.s32 16, 16
      %19 = vsyncadd [#allocation4], %s18
      %s21 = sshll.u32 %s0, 4
      %s22 = int_to_ptr.vmem [resolvable:$true] %s21
      %24 = dma.vmem_to_smem %s22, 16, [#allocation3], [#allocation4]
    $region5: #{rnn_induce_forward.1} parent=1 // pred_fallthru
      _
    // Predicated region
    $region6: #{rnn_induce_forward.1} parent=1 // pred_check
      _
    $region7: #{rnn_induce_forward.1} parent=1 // pred_check_branch
      %26 = sbr.rel (0) target = $region9
    $region8: #{rnn_induce_forward.1} parent=1 // pred_region
      _
    $region9: #{rnn_induce_forward.1} parent=1 // pred_fallthru
      _
    // Predicated region
    $region10: #{rnn_induce_forward.1} parent=1 // pred_check
      _
    $region11: #{rnn_induce_forward.1} parent=1 // pred_check_branch
      %28 = sbr.rel (0) target = $region13
    $region12: #{rnn_induce_forward.1} parent=1 // pred_region
      _
    $region13: #{rnn_induce_forward.1} parent=1 // pred_fallthru
      _
    // Predicated region
    $region14: #{rnn_induce_forward.1} parent=1 // pred_check
      _
    $region15: #{rnn_induce_forward.1} parent=1 // pred_check_branch
      %30 = sbr.rel (0) target = $region17
    $region16: #{rnn_induce_forward.1} parent=1 // pred_region
      _
    $region17: #{rnn_induce_forward.1} parent=1 // pred_fallthru
      _
    // Predicated region
    $region18: #{rnn_induce_forward.1} parent=1 // pred_check
      _
    $region19: #{rnn_induce_forward.1} parent=1 // pred_check_branch
      %32 = sbr.rel (0) target = $region21
    $region20: #{rnn_induce_forward.1} parent=1 // pred_region
      _
    $region21: #{rnn_induce_forward.1} parent=1 // pred_fallthru
      _
    // Predicated region
    $region22: #{rnn_induce_forward.1} parent=1 // pred_check
      _
    $region23: #{rnn_induce_forward.1} parent=1 // pred_check_branch
      %34 = sbr.rel (0) target = $region25
    $region24: #{rnn_induce_forward.1} parent=1 // pred_region
      _
    $region25: #{rnn_induce_forward.1} parent=1 // pred_fallthru
      _
    // Predicated region
    $region26: #{rnn_induce_forward.1} parent=1 // pred_check
      _
    $region27: #{rnn_induce_forward.1} parent=1 // pred_check_branch
      %36 = sbr.rel (0) target = $region29
    $region28: #{rnn_induce_forward.1} parent=1 // pred_region
      _
    $region29: #{rnn_induce_forward.1} parent=1 // pred_fallthru
      _
    // Predicated region
    $region30: #{rnn_induce_forward.1} parent=1 // pred_check
      _
    $region31: #{rnn_induce_forward.1} parent=1 // pred_check_branch
      %38 = sbr.rel (0) target = $region33
    $region32: #{rnn_induce_forward.1} parent=1 // pred_region
      _
    $region33: #{rnn_induce_forward.1} parent=1 // pred_fallthru
      _
    // Predicated region
    $region34: #{rnn_induce_forward.1} parent=1 // pred_check
      _
    $region35: #{rnn_induce_forward.1} parent=1 // pred_check_branch
      %40 = sbr.rel (0) target = $region37
    $region36: #{rnn_induce_forward.1} parent=1 // pred_region
      _
    $region37: #{rnn_induce_forward.1} parent=1 // pred_fallthru
      _
    // Predicated region
    $region38: #{rnn_induce_forward.1} parent=1 // pred_check
      _
    $region39: #{rnn_induce_forward.1} parent=1 // pred_check_branch
      %42 = sbr.rel (0) target = $region41
    $region40: #{rnn_induce_forward.1} parent=1 // pred_region
      %43 = dma.done [#allocation4], 16
    $region41: #{rnn_induce_forward.1} parent=1 // pred_fallthru
      _
    %44 = sfence
    %v45 = vlaneseq
    %v46 = vand.u32 %v45, 127
    %vm47 = vcmp.lt.s32.totalorder %v46, 0
    %v48 = vsub.s32 0, %v46
    %v49 = vsel %vm47, %v48, %v46
    %v50 = vshrl.u32 %v49, 5
    %v51 = vand.u32 %v49, 31
    %v52 = vsub.s32 0, %v51
    %v53 = vsel %vm47, %v52, %v51
    %vm54 = vcmp.ne.s32.totalorder %v53, 0
    %vm55 = vcmp.lt.s32.totalorder %v53, 0
    %vm56 = vmand %vm55, %vm54
    %v57 = vadd.s32 %v53, 32
    %v58 = vsel %vm56, %v57, %v53
    %vm59 = vcmp.lt.s32.totalorder %v58, 16
    %vm60 = vcmp.lt.s32.totalorder %v46, 16
    %v61 = vlaneseq
    %v62 = vshrl.u32 %v61, 7
    %v63 = vadd.s32 %v62, 8
    %v64 = vadd.s32 %v62, %v46
    %v65 = vadd.s32 %v63, %v46
    %vm66 = vcmp.eq.s32.totalorder %v64, 15
    %vm67 = vcmp.eq.s32.totalorder %v65, 15
    %v68 = vsel %vm66, 1, 0
    %v69 = vsel %vm67, 1, 0
    %v70 = vcvt.s32.f32 %v68
    %v71 = vcvt.s32.f32 %v69
    %v72 = vld [vmem:[%s1] sm:$0xff]
    %v73 = vld [vmem:[%s1 + $0x8] sm:$0xff]
    %v74 = vld [vmem:[%s2] sm:$0xff]
    %v75 = vld [vmem:[%s3] sm:$0xff]
    %v76 = vld [vmem:[%s3 + $0x8] sm:$0xff]
    %v77 = vld [vmem:[%s3 + $0x10] sm:$0xff]
    %v78 = vld [vmem:[%s3 + $0x18] sm:$0xff]
    %v79 = vld [vmem:[%s4] sm:$0x1]
    %v81 = vlaneseq
    %v82 = vshrl.u32 %v81, 7
    %v83 = vsub.s32 0, %v82
    %v84 = vrot.slane %v79, %v83
    %vm86 = vcmask 64512
    %v88 = vsel %vm86, %v72, 0
    %v91 = vsel %vm86, %v73, 0
    %93 = vmatprep.subr.mxu0 0.0
    %94 = vmatpush1.msra.mxu0 %v74
    %95 = vmatprep.subr.mxu0 0.0
    %96 = vmatpush1.msra.mxu0 0.0
    %97 = vmatprep.subr.mxu0 0.0
    %98 = vmatpush1.msra.mxu0 0.0
    %99 = vmatprep.subr.mxu0 0.0
    %100 = vmatpush1.msra.mxu0 0.0
    %101 = vmatprep.subr.mxu0 0.0
    %102 = vmatpush1.msra.mxu0 0.0
    %103 = vmatprep.subr.mxu0 0.0
    %104 = vmatpush1.msra.mxu0 0.0
    %105 = vmatprep.subr.mxu0 0.0
    %106 = vmatpush1.msra.mxu0 0.0
    %107 = vmatprep.subr.mxu0 0.0
    %108 = vmatpush1.msra.mxu0 0.0
    %109 = vmatprep.subr.mxu0 0.0
    %110 = vmatpush1.msra.mxu0 0.0
    %111 = vmatprep.subr.mxu0 0.0
    %112 = vmatpush1.msra.mxu0 0.0
    %113 = vmatprep.subr.mxu0 0.0
    %114 = vmatpush1.msra.mxu0 0.0
    %115 = vmatprep.subr.mxu0 0.0
    %116 = vmatpush1.msra.mxu0 0.0
    %117 = vmatprep.subr.mxu0 0.0
    %118 = vmatpush1.msra.mxu0 0.0
    %119 = vmatprep.subr.mxu0 0.0
    %120 = vmatpush1.msra.mxu0 0.0
    %121 = vmatprep.subr.mxu0 0.0
    %122 = vmatpush1.msra.mxu0 0.0
    %123 = vmatprep.subr.mxu0 0.0
    %124 = vmatpush1.msra.mxu0 0.0
    %125 = vmatprep.subr.mxu0 0.0
    %126 = vmatpush1.msra.mxu0 0.0
    %127 = vmatprep.subr.mxu0 0.0
    %128 = vmatpush1.msra.mxu0 0.0
    %129 = vmatprep.subr.mxu0 0.0
    %130 = vmatpush1.msra.mxu0 0.0
    %131 = vmatprep.subr.mxu0 0.0
    %132 = vmatpush1.msra.mxu0 0.0
    %133 = vmatprep.subr.mxu0 0.0
    %134 = vmatpush1.msra.mxu0 0.0
    %135 = vmatprep.subr.mxu0 0.0
    %136 = vmatpush1.msra.mxu0 0.0
    %137 = vmatprep.subr.mxu0 0.0
    %138 = vmatpush1.msra.mxu0 0.0
    %139 = vmatprep.subr.mxu0 0.0
    %140 = vmatpush1.msra.mxu0 0.0
    %141 = vmatprep.subr.mxu0 0.0
    %142 = vmatpush1.msra.mxu0 0.0
    %143 = vmatprep.subr.mxu0 0.0
    %144 = vmatpush1.msra.mxu0 0.0
    %145 = vmatprep.subr.mxu0 0.0
    %146 = vmatpush1.msra.mxu0 0.0
    %147 = vmatprep.subr.mxu0 0.0
    %148 = vmatpush1.msra.mxu0 0.0
    %149 = vmatprep.subr.mxu0 0.0
    %150 = vmatpush1.msra.mxu0 0.0
    %151 = vmatprep.subr.mxu0 0.0
    %152 = vmatpush1.msra.mxu0 0.0
    %153 = vmatprep.subr.mxu0 0.0
    %154 = vmatpush1.msra.mxu0 0.0
    %155 = vmatprep.subr.mxu0 0.0
    %156 = vmatpush1.msra.mxu0 0.0
    %157 = vmatprep.mubr.f32.mxu0 0.0
    %158 = vmatmul.mubr.f32.gmra.mrb[0].mxu0 %v88
    %v159 = vpop.f32.mrb[0].mxu0
    %v160 = vadd.f32 %v84, %v159
    %v161 = vpop.f32.mrb[0].mxu0
    %162 = vmatprep.mubr.f32.mxu0 0.0
    %163 = vmatmul.mubr.f32.gmra.mrb[0].mxu0 %v91
    %v164 = vpop.f32.mrb[0].mxu0
    %v165 = vadd.f32 %v84, %v164
    %v166 = vpop.f32.mrb[0].mxu0
    %167 = vdwg.mxu0
    %vm168 = vcmask 130048
    %v170 = vsel %vm168, %v70, 0
    %v173 = vsel %vm168, %v71, 0
    %175 = vmatprep.subr.mxu0 0.0
    %176 = vmatpush1.msra.mxu0 %v160
    %177 = vmatprep.subr.mxu0 0.0
    %178 = vmatpush1.msra.mxu0 %v165
    %179 = vmatprep.subr.mxu0 0.0
    %180 = vmatpush1.msra.mxu0 0.0
    %181 = vmatprep.subr.mxu0 0.0
    %182 = vmatpush1.msra.mxu0 0.0
    %183 = vmatprep.subr.mxu0 0.0
    %184 = vmatpush1.msra.mxu0 0.0
    %185 = vmatprep.subr.mxu0 0.0
    %186 = vmatpush1.msra.mxu0 0.0
    %187 = vmatprep.subr.mxu0 0.0
    %188 = vmatpush1.msra.mxu0 0.0
    %189 = vmatprep.subr.mxu0 0.0
    %190 = vmatpush1.msra.mxu0 0.0
    %191 = vmatprep.subr.mxu0 0.0
    %192 = vmatpush1.msra.mxu0 0.0
    %193 = vmatprep.subr.mxu0 0.0
    %194 = vmatpush1.msra.mxu0 0.0
    %195 = vmatprep.subr.mxu0 0.0
    %196 = vmatpush1.msra.mxu0 0.0
    %197 = vmatprep.subr.mxu0 0.0
    %198 = vmatpush1.msra.mxu0 0.0
    %199 = vmatprep.subr.mxu0 0.0
    %200 = vmatpush1.msra.mxu0 0.0
    %201 = vmatprep.subr.mxu0 0.0
    %202 = vmatpush1.msra.mxu0 0.0
    %203 = vmatprep.subr.mxu0 0.0
    %204 = vmatpush1.msra.mxu0 0.0
    %205 = vmatprep.subr.mxu0 0.0
    %206 = vmatpush1.msra.mxu0 0.0
    %207 = vmatprep.subr.mxu0 0.0
    %208 = vmatpush1.msra.mxu0 0.0
    %209 = vmatprep.subr.mxu0 0.0
    %210 = vmatpush1.msra.mxu0 0.0
    %211 = vmatprep.subr.mxu0 0.0
    %212 = vmatpush1.msra.mxu0 0.0
    %213 = vmatprep.subr.mxu0 0.0
    %214 = vmatpush1.msra.mxu0 0.0
    %215 = vmatprep.subr.mxu0 0.0
    %216 = vmatpush1.msra.mxu0 0.0
    %217 = vmatprep.subr.mxu0 0.0
    %218 = vmatpush1.msra.mxu0 0.0
    %219 = vmatprep.subr.mxu0 0.0
    %220 = vmatpush1.msra.mxu0 0.0
    %221 = vmatprep.subr.mxu0 0.0
    %222 = vmatpush1.msra.mxu0 0.0
    %223 = vmatprep.subr.mxu0 0.0
    %224 = vmatpush1.msra.mxu0 0.0
    %225 = vmatprep.subr.mxu0 0.0
    %226 = vmatpush1.msra.mxu0 0.0
    %227 = vmatprep.subr.mxu0 0.0
    %228 = vmatpush1.msra.mxu0 0.0
    %229 = vmatprep.subr.mxu0 0.0
    %230 = vmatpush1.msra.mxu0 0.0
    %231 = vmatprep.subr.mxu0 0.0
    %232 = vmatpush1.msra.mxu0 0.0
    %233 = vmatprep.subr.mxu0 0.0
    %234 = vmatpush1.msra.mxu0 0.0
    %235 = vmatprep.subr.mxu0 0.0
    %236 = vmatpush1.msra.mxu0 0.0
    %237 = vmatprep.subr.mxu0 0.0
    %238 = vmatpush1.msra.mxu0 0.0
    %239 = vmatprep.mubr.f32.mxu0 0.0
    %240 = vmatmul.mubr.f32.gmra.mrb[0].mxu0 %v170
    %v241 = vpop.f32.mrb[0].mxu0
    %v242 = vadd.f32 0.0, %v241
    %v243 = vpop.f32.mrb[0].mxu0
    %244 = vmatprep.mubr.f32.mxu0 0.0
    %245 = vmatmul.mubr.f32.gmra.mrb[0].mxu0 %v173
    %v246 = vpop.f32.mrb[0].mxu0
    %v247 = vadd.f32 0.0, %v246
    %v248 = vpop.f32.mrb[0].mxu0
    %249 = vdwg.mxu0
    %v250 = vsel %vm59, 1, 0
    %vm251 = vcmp.eq.s32.totalorder %v250, 1
    %v252 = vsel %vm251, %v160, %v242
    %v253 = vsel %vm251, %v165, %v247
    %vm254 = vcmask 261120
    %v256 = vsel %vm254, 0.0, 0
    %258 = vmatprep.subr.mxu0 0.0
    %259 = vmatpush1.msra.mxu0 %v75
    %260 = vmatprep.subr.mxu0 0.0
    %261 = vmatpush1.msra.mxu0 %v76
    %262 = vmatprep.subr.mxu0 0.0
    %263 = vmatpush1.msra.mxu0 %v77
    %264 = vmatprep.subr.mxu0 0.0
    %265 = vmatpush1.msra.mxu0 %v78
    %266 = vmatprep.subr.mxu0 0.0
    %267 = vmatpush1.msra.mxu0 0.0
    %268 = vmatprep.subr.mxu0 0.0
    %269 = vmatpush1.msra.mxu0 0.0
    %270 = vmatprep.subr.mxu0 0.0
    %271 = vmatpush1.msra.mxu0 0.0
    %272 = vmatprep.subr.mxu0 0.0
    %273 = vmatpush1.msra.mxu0 0.0
    %274 = vmatprep.subr.mxu0 0.0
    %275 = vmatpush1.msra.mxu0 0.0
    %276 = vmatprep.subr.mxu0 0.0
    %277 = vmatpush1.msra.mxu0 0.0
    %278 = vmatprep.subr.mxu0 0.0
    %279 = vmatpush1.msra.mxu0 0.0
    %280 = vmatprep.subr.mxu0 0.0
    %281 = vmatpush1.msra.mxu0 0.0
    %282 = vmatprep.subr.mxu0 0.0
    %283 = vmatpush1.msra.mxu0 0.0
    %284 = vmatprep.subr.mxu0 0.0
    %285 = vmatpush1.msra.mxu0 0.0
    %286 = vmatprep.subr.mxu0 0.0
    %287 = vmatpush1.msra.mxu0 0.0
    %288 = vmatprep.subr.mxu0 0.0
    %289 = vmatpush1.msra.mxu0 0.0
    %290 = vmatprep.subr.mxu0 0.0
    %291 = vmatpush1.msra.mxu0 0.0
    %292 = vmatprep.subr.mxu0 0.0
    %293 = vmatpush1.msra.mxu0 0.0
    %294 = vmatprep.subr.mxu0 0.0
    %295 = vmatpush1.msra.mxu0 0.0
    %296 = vmatprep.subr.mxu0 0.0
    %297 = vmatpush1.msra.mxu0 0.0
    %298 = vmatprep.subr.mxu0 0.0
    %299 = vmatpush1.msra.mxu0 0.0
    %300 = vmatprep.subr.mxu0 0.0
    %301 = vmatpush1.msra.mxu0 0.0
    %302 = vmatprep.subr.mxu0 0.0
    %303 = vmatpush1.msra.mxu0 0.0
    %304 = vmatprep.subr.mxu0 0.0
    %305 = vmatpush1.msra.mxu0 0.0
    %306 = vmatprep.subr.mxu0 0.0
    %307 = vmatpush1.msra.mxu0 0.0
    %308 = vmatprep.subr.mxu0 0.0
    %309 = vmatpush1.msra.mxu0 0.0
    %310 = vmatprep.subr.mxu0 0.0
    %311 = vmatpush1.msra.mxu0 0.0
    %312 = vmatprep.subr.mxu0 0.0
    %313 = vmatpush1.msra.mxu0 0.0
    %314 = vmatprep.subr.mxu0 0.0
    %315 = vmatpush1.msra.mxu0 0.0
    %316 = vmatprep.subr.mxu0 0.0
    %317 = vmatpush1.msra.mxu0 0.0
    %318 = vmatprep.subr.mxu0 0.0
    %319 = vmatpush1.msra.mxu0 0.0
    %320 = vmatprep.subr.mxu0 0.0
    %321 = vmatpush1.msra.mxu0 0.0
    %322 = vmatprep.mubr.f32.mxu0 0.0
    %323 = vmatmul.mubr.f32.gmra.mrb[0].mxu0 %v256
    %v324 = vpop.f32.mrb[0].mxu0
    %v325 = vadd.f32 0.0, %v324
    %v326 = vpop.f32.mrb[0].mxu0
    %327 = vdwg.mxu0
    %v328 = vadd.f32 %v252, %v325
    %v329 = vxor.u32 %v328, 2147483648
    %v330 = vmul.f32 %v329, 1.442695
    %v331 = vpow.pop %v330
    %v332 = vadd.f32 %v331, 1.0
    %v333 = vrcp.pop %v332
    %v334 = vmul.f32 1.0, %v333
    %v335 = vmul.f32 %v334, 2.0
    %v336 = vsub.f32 %v335, 1.0
    %v337 = vmul.f32 %v334, 0.0
    %339 = vrot.lane.b32.xlu0 %v336, 32
    %v340 = vpop.permute.xlu0 %339
    %v342 = vmul.f32 %v334, %v340
    %344 = vrot.lane.b32.xlu0 %v342, 32
    %v345 = vpop.permute.xlu0 %344
    %v347 = vadd.f32 %v337, %v345
    %v348 = vtanh.pop %v347
    %350 = vrot.lane.b32.xlu0 %v348, 32
    %v351 = vpop.permute.xlu0 %350
    %v353 = vmul.f32 %v334, %v351
    %355 = vrot.lane.b32.xlu0 %v353, 64
    %v356 = vpop.permute.xlu0 %355
    %vm358 = vcmask 253952
    %359 = vst.msk [vmem:[#allocation2] sm:$0x1] %vm358, %v356
    %v360 = vsel %vm254, %v356, 0
    %362 = vmatprep.subr.mxu0 0.0
    %363 = vmatpush1.msra.mxu0 %v75
    %364 = vmatprep.subr.mxu0 0.0
    %365 = vmatpush1.msra.mxu0 %v76
    %366 = vmatprep.subr.mxu0 0.0
    %367 = vmatpush1.msra.mxu0 %v77
    %368 = vmatprep.subr.mxu0 0.0
    %369 = vmatpush1.msra.mxu0 %v78
    %370 = vmatprep.subr.mxu0 0.0
    %371 = vmatpush1.msra.mxu0 0.0
    %372 = vmatprep.subr.mxu0 0.0
    %373 = vmatpush1.msra.mxu0 0.0
    %374 = vmatprep.subr.mxu0 0.0
    %375 = vmatpush1.msra.mxu0 0.0
    %376 = vmatprep.subr.mxu0 0.0
    %377 = vmatpush1.msra.mxu0 0.0
    %378 = vmatprep.subr.mxu0 0.0
    %379 = vmatpush1.msra.mxu0 0.0
    %380 = vmatprep.subr.mxu0 0.0
    %381 = vmatpush1.msra.mxu0 0.0
    %382 = vmatprep.subr.mxu0 0.0
    %383 = vmatpush1.msra.mxu0 0.0
    %384 = vmatprep.subr.mxu0 0.0
    %385 = vmatpush1.msra.mxu0 0.0
    %386 = vmatprep.subr.mxu0 0.0
    %387 = vmatpush1.msra.mxu0 0.0
    %388 = vmatprep.subr.mxu0 0.0
    %389 = vmatpush1.msra.mxu0 0.0
    %390 = vmatprep.subr.mxu0 0.0
    %391 = vmatpush1.msra.mxu0 0.0
    %392 = vmatprep.subr.mxu0 0.0
    %393 = vmatpush1.msra.mxu0 0.0
    %394 = vmatprep.subr.mxu0 0.0
    %395 = vmatpush1.msra.mxu0 0.0
    %396 = vmatprep.subr.mxu0 0.0
    %397 = vmatpush1.msra.mxu0 0.0
    %398 = vmatprep.subr.mxu0 0.0
    %399 = vmatpush1.msra.mxu0 0.0
    %400 = vmatprep.subr.mxu0 0.0
    %401 = vmatpush1.msra.mxu0 0.0
    %402 = vmatprep.subr.mxu0 0.0
    %403 = vmatpush1.msra.mxu0 0.0
    %404 = vmatprep.subr.mxu0 0.0
    %405 = vmatpush1.msra.mxu0 0.0
    %406 = vmatprep.subr.mxu0 0.0
    %407 = vmatpush1.msra.mxu0 0.0
    %408 = vmatprep.subr.mxu0 0.0
    %409 = vmatpush1.msra.mxu0 0.0
    %410 = vmatprep.subr.mxu0 0.0
    %411 = vmatpush1.msra.mxu0 0.0
    %412 = vmatprep.subr.mxu0 0.0
    %413 = vmatpush1.msra.mxu0 0.0
    %414 = vmatprep.subr.mxu0 0.0
    %415 = vmatpush1.msra.mxu0 0.0
    %416 = vmatprep.subr.mxu0 0.0
    %417 = vmatpush1.msra.mxu0 0.0
    %418 = vmatprep.subr.mxu0 0.0
    %419 = vmatpush1.msra.mxu0 0.0
    %420 = vmatprep.subr.mxu0 0.0
    %421 = vmatpush1.msra.mxu0 0.0
    %422 = vmatprep.subr.mxu0 0.0
    %423 = vmatpush1.msra.mxu0 0.0
    %424 = vmatprep.subr.mxu0 0.0
    %425 = vmatpush1.msra.mxu0 0.0
    %426 = vmatprep.mubr.f32.mxu0 0.0
    %427 = vmatmul.mubr.f32.gmra.mrb[0].mxu0 %v360
    %v428 = vpop.f32.mrb[0].mxu0
    %v429 = vadd.f32 0.0, %v428
    %v430 = vpop.f32.mrb[0].mxu0
    %431 = vdwg.mxu0
    %v433 = vrot.slane %v429, 7
    %v435 = vadd.f32 %v252, %v433
    %v436 = vxor.u32 %v435, 2147483648
    %v437 = vmul.f32 %v436, 1.442695
    %v438 = vpow.pop %v437
    %v439 = vadd.f32 %v438, 1.0
    %v440 = vrcp.pop %v439
    %v441 = vmul.f32 1.0, %v440
    %v442 = vmul.f32 %v441, 2.0
    %v443 = vsub.f32 %v442, 1.0
    %v445 = vrot.slane %v347, 7
    %v447 = vmul.f32 %v441, %v445
    %449 = vrot.lane.b32.xlu0 %v443, 32
    %v450 = vpop.permute.xlu0 %449
    %v452 = vmul.f32 %v441, %v450
    %454 = vrot.lane.b32.xlu0 %v452, 32
    %v455 = vpop.permute.xlu0 %454
    %v457 = vadd.f32 %v447, %v455
    %v458 = vtanh.pop %v457
    %460 = vrot.lane.b32.xlu0 %v458, 32
    %v461 = vpop.permute.xlu0 %460
    %v463 = vmul.f32 %v441, %v461
    %465 = vrot.lane.b32.xlu0 %v463, 64
    %v466 = vpop.permute.xlu0 %465
    %vm468 = vcmask 254977
    %469 = vst.msk [vmem:[#allocation2] sm:$0x2] %vm468, %v466
    %v470 = vrot.slane %v463, 1
    %471 = vrot.lane.b32.xlu0 %v470, 64
    %v472 = vpop.permute.xlu0 %471
    %v473 = vsel %vm254, %v472, 0
    %475 = vmatprep.subr.mxu0 0.0
    %476 = vmatpush1.msra.mxu0 %v75
    %477 = vmatprep.subr.mxu0 0.0
    %478 = vmatpush1.msra.mxu0 %v76
    %479 = vmatprep.subr.mxu0 0.0
    %480 = vmatpush1.msra.mxu0 %v77
    %481 = vmatprep.subr.mxu0 0.0
    %482 = vmatpush1.msra.mxu0 %v78
    %483 = vmatprep.subr.mxu0 0.0
    %484 = vmatpush1.msra.mxu0 0.0
    %485 = vmatprep.subr.mxu0 0.0
    %486 = vmatpush1.msra.mxu0 0.0
    %487 = vmatprep.subr.mxu0 0.0
    %488 = vmatpush1.msra.mxu0 0.0
    %489 = vmatprep.subr.mxu0 0.0
    %490 = vmatpush1.msra.mxu0 0.0
    %491 = vmatprep.subr.mxu0 0.0
    %492 = vmatpush1.msra.mxu0 0.0
    %493 = vmatprep.subr.mxu0 0.0
    %494 = vmatpush1.msra.mxu0 0.0
    %495 = vmatprep.subr.mxu0 0.0
    %496 = vmatpush1.msra.mxu0 0.0
    %497 = vmatprep.subr.mxu0 0.0
    %498 = vmatpush1.msra.mxu0 0.0
    %499 = vmatprep.subr.mxu0 0.0
    %500 = vmatpush1.msra.mxu0 0.0
    %501 = vmatprep.subr.mxu0 0.0
    %502 = vmatpush1.msra.mxu0 0.0
    %503 = vmatprep.subr.mxu0 0.0
    %504 = vmatpush1.msra.mxu0 0.0
    %505 = vmatprep.subr.mxu0 0.0
    %506 = vmatpush1.msra.mxu0 0.0
    %507 = vmatprep.subr.mxu0 0.0
    %508 = vmatpush1.msra.mxu0 0.0
    %509 = vmatprep.subr.mxu0 0.0
    %510 = vmatpush1.msra.mxu0 0.0
    %511 = vmatprep.subr.mxu0 0.0
    %512 = vmatpush1.msra.mxu0 0.0
    %513 = vmatprep.subr.mxu0 0.0
    %514 = vmatpush1.msra.mxu0 0.0
    %515 = vmatprep.subr.mxu0 0.0
    %516 = vmatpush1.msra.mxu0 0.0
    %517 = vmatprep.subr.mxu0 0.0
    %518 = vmatpush1.msra.mxu0 0.0
    %519 = vmatprep.subr.mxu0 0.0
    %520 = vmatpush1.msra.mxu0 0.0
    %521 = vmatprep.subr.mxu0 0.0
    %522 = vmatpush1.msra.mxu0 0.0
    %523 = vmatprep.subr.mxu0 0.0
    %524 = vmatpush1.msra.mxu0 0.0
    %525 = vmatprep.subr.mxu0 0.0
    %526 = vmatpush1.msra.mxu0 0.0
    %527 = vmatprep.subr.mxu0 0.0
    %528 = vmatpush1.msra.mxu0 0.0
    %529 = vmatprep.subr.mxu0 0.0
    %530 = vmatpush1.msra.mxu0 0.0
    %531 = vmatprep.subr.mxu0 0.0
    %532 = vmatpush1.msra.mxu0 0.0
    %533 = vmatprep.subr.mxu0 0.0
    %534 = vmatpush1.msra.mxu0 0.0
    %535 = vmatprep.subr.mxu0 0.0
    %536 = vmatpush1.msra.mxu0 0.0
    %537 = vmatprep.subr.mxu0 0.0
    %538 = vmatpush1.msra.mxu0 0.0
    %539 = vmatprep.mubr.f32.mxu0 0.0
    %540 = vmatmul.mubr.f32.gmra.mrb[0].mxu0 %v473
    %v541 = vpop.f32.mrb[0].mxu0
    %v542 = vadd.f32 0.0, %v541
    %v543 = vpop.f32.mrb[0].mxu0
    %544 = vdwg.mxu0
    %v546 = vrot.slane %v542, 6
    %v548 = vadd.f32 %v252, %v546
    %v549 = vxor.u32 %v548, 2147483648
    %v550 = vmul.f32 %v549, 1.442695
    %v551 = vpow.pop %v550
    %v552 = vadd.f32 %v551, 1.0
    %v553 = vrcp.pop %v552
    %v554 = vmul.f32 1.0, %v553
    %v555 = vmul.f32 %v554, 2.0
    %v556 = vsub.f32 %v555, 1.0
    %v558 = vrot.slane %v457, 7
    %v560 = vmul.f32 %v554, %v558
    %562 = vrot.lane.b32.xlu0 %v556, 32
    %v563 = vpop.permute.xlu0 %562
    %v565 = vmul.f32 %v554, %v563
    %567 = vrot.lane.b32.xlu0 %v565, 32
    %v568 = vpop.permute.xlu0 %567
    %v570 = vadd.f32 %v560, %v568
    %v571 = vtanh.pop %v570
    %573 = vrot.lane.b32.xlu0 %v571, 32
    %v574 = vpop.permute.xlu0 %573
    %v576 = vmul.f32 %v554, %v574
    %578 = vrot.lane.b32.xlu0 %v576, 64
    %v579 = vpop.permute.xlu0 %578
    %vm581 = vcmask 256002
    %582 = vst.msk [vmem:[#allocation2] sm:$0x4] %vm581, %v579
    %v583 = vrot.slane %v576, 2
    %584 = vrot.lane.b32.xlu0 %v583, 64
    %v585 = vpop.permute.xlu0 %584
    %v586 = vsel %vm254, %v585, 0
    %588 = vmatprep.subr.mxu0 0.0
    %589 = vmatpush1.msra.mxu0 %v75
    %590 = vmatprep.subr.mxu0 0.0
    %591 = vmatpush1.msra.mxu0 %v76
    %592 = vmatprep.subr.mxu0 0.0
    %593 = vmatpush1.msra.mxu0 %v77
    %594 = vmatprep.subr.mxu0 0.0
    %595 = vmatpush1.msra.mxu0 %v78
    %596 = vmatprep.subr.mxu0 0.0
    %597 = vmatpush1.msra.mxu0 0.0
    %598 = vmatprep.subr.mxu0 0.0
    %599 = vmatpush1.msra.mxu0 0.0
    %600 = vmatprep.subr.mxu0 0.0
    %601 = vmatpush1.msra.mxu0 0.0
    %602 = vmatprep.subr.mxu0 0.0
    %603 = vmatpush1.msra.mxu0 0.0
    %604 = vmatprep.subr.mxu0 0.0
    %605 = vmatpush1.msra.mxu0 0.0
    %606 = vmatprep.subr.mxu0 0.0
    %607 = vmatpush1.msra.mxu0 0.0
    %608 = vmatprep.subr.mxu0 0.0
    %609 = vmatpush1.msra.mxu0 0.0
    %610 = vmatprep.subr.mxu0 0.0
    %611 = vmatpush1.msra.mxu0 0.0
    %612 = vmatprep.subr.mxu0 0.0
    %613 = vmatpush1.msra.mxu0 0.0
    %614 = vmatprep.subr.mxu0 0.0
    %615 = vmatpush1.msra.mxu0 0.0
    %616 = vmatprep.subr.mxu0 0.0
    %617 = vmatpush1.msra.mxu0 0.0
    %618 = vmatprep.subr.mxu0 0.0
    %619 = vmatpush1.msra.mxu0 0.0
    %620 = vmatprep.subr.mxu0 0.0
    %621 = vmatpush1.msra.mxu0 0.0
    %622 = vmatprep.subr.mxu0 0.0
    %623 = vmatpush1.msra.mxu0 0.0
    %624 = vmatprep.subr.mxu0 0.0
    %625 = vmatpush1.msra.mxu0 0.0
    %626 = vmatprep.subr.mxu0 0.0
    %627 = vmatpush1.msra.mxu0 0.0
    %628 = vmatprep.subr.mxu0 0.0
    %629 = vmatpush1.msra.mxu0 0.0
    %630 = vmatprep.subr.mxu0 0.0
    %631 = vmatpush1.msra.mxu0 0.0
    %632 = vmatprep.subr.mxu0 0.0
    %633 = vmatpush1.msra.mxu0 0.0
    %634 = vmatprep.subr.mxu0 0.0
    %635 = vmatpush1.msra.mxu0 0.0
    %636 = vmatprep.subr.mxu0 0.0
    %637 = vmatpush1.msra.mxu0 0.0
    %638 = vmatprep.subr.mxu0 0.0
    %639 = vmatpush1.msra.mxu0 0.0
    %640 = vmatprep.subr.mxu0 0.0
    %641 = vmatpush1.msra.mxu0 0.0
    %642 = vmatprep.subr.mxu0 0.0
    %643 = vmatpush1.msra.mxu0 0.0
    %644 = vmatprep.subr.mxu0 0.0
    %645 = vmatpush1.msra.mxu0 0.0
    %646 = vmatprep.subr.mxu0 0.0
    %647 = vmatpush1.msra.mxu0 0.0
    %648 = vmatprep.subr.mxu0 0.0
    %649 = vmatpush1.msra.mxu0 0.0
    %650 = vmatprep.subr.mxu0 0.0
    %651 = vmatpush1.msra.mxu0 0.0
    %652 = vmatprep.mubr.f32.mxu0 0.0
    %653 = vmatmul.mubr.f32.gmra.mrb[0].mxu0 %v586
    %v654 = vpop.f32.mrb[0].mxu0
    %v655 = vadd.f32 0.0, %v654
    %v656 = vpop.f32.mrb[0].mxu0
    %657 = vdwg.mxu0
    %v659 = vrot.slane %v655, 5
    %v661 = vadd.f32 %v252, %v659
    %v662 = vxor.u32 %v661, 2147483648
    %v663 = vmul.f32 %v662, 1.442695
    %v664 = vpow.pop %v663
    %v665 = vadd.f32 %v664, 1.0
    %v666 = vrcp.pop %v665
    %v667 = vmul.f32 1.0, %v666
    %v668 = vmul.f32 %v667, 2.0
    %v669 = vsub.f32 %v668, 1.0
    %v671 = vrot.slane %v570, 7
    %v673 = vmul.f32 %v667, %v671
    %675 = vrot.lane.b32.xlu0 %v669, 32
    %v676 = vpop.permute.xlu0 %675
    %v678 = vmul.f32 %v667, %v676
    %680 = vrot.lane.b32.xlu0 %v678, 32
    %v681 = vpop.permute.xlu0 %680
    %v683 = vadd.f32 %v673, %v681
    %v684 = vtanh.pop %v683
    %686 = vrot.lane.b32.xlu0 %v684, 32
    %v687 = vpop.permute.xlu0 %686
    %v689 = vmul.f32 %v667, %v687
    %691 = vrot.lane.b32.xlu0 %v689, 64
    %v692 = vpop.permute.xlu0 %691
    %vm694 = vcmask 257027
    %695 = vst.msk [vmem:[#allocation2] sm:$0x8] %vm694, %v692
    %v696 = vrot.slane %v689, 3
    %697 = vrot.lane.b32.xlu0 %v696, 64
    %v698 = vpop.permute.xlu0 %697
    %v699 = vsel %vm254, %v698, 0
    %701 = vmatprep.subr.mxu0 0.0
    %702 = vmatpush1.msra.mxu0 %v75
    %703 = vmatprep.subr.mxu0 0.0
    %704 = vmatpush1.msra.mxu0 %v76
    %705 = vmatprep.subr.mxu0 0.0
    %706 = vmatpush1.msra.mxu0 %v77
    %707 = vmatprep.subr.mxu0 0.0
    %708 = vmatpush1.msra.mxu0 %v78
    %709 = vmatprep.subr.mxu0 0.0
    %710 = vmatpush1.msra.mxu0 0.0
    %711 = vmatprep.subr.mxu0 0.0
    %712 = vmatpush1.msra.mxu0 0.0
    %713 = vmatprep.subr.mxu0 0.0
    %714 = vmatpush1.msra.mxu0 0.0
    %715 = vmatprep.subr.mxu0 0.0
    %716 = vmatpush1.msra.mxu0 0.0
    %717 = vmatprep.subr.mxu0 0.0
    %718 = vmatpush1.msra.mxu0 0.0
    %719 = vmatprep.subr.mxu0 0.0
    %720 = vmatpush1.msra.mxu0 0.0
    %721 = vmatprep.subr.mxu0 0.0
    %722 = vmatpush1.msra.mxu0 0.0
    %723 = vmatprep.subr.mxu0 0.0
    %724 = vmatpush1.msra.mxu0 0.0
    %725 = vmatprep.subr.mxu0 0.0
    %726 = vmatpush1.msra.mxu0 0.0
    %727 = vmatprep.subr.mxu0 0.0
    %728 = vmatpush1.msra.mxu0 0.0
    %729 = vmatprep.subr.mxu0 0.0
    %730 = vmatpush1.msra.mxu0 0.0
    %731 = vmatprep.subr.mxu0 0.0
    %732 = vmatpush1.msra.mxu0 0.0
    %733 = vmatprep.subr.mxu0 0.0
    %734 = vmatpush1.msra.mxu0 0.0
    %735 = vmatprep.subr.mxu0 0.0
    %736 = vmatpush1.msra.mxu0 0.0
    %737 = vmatprep.subr.mxu0 0.0
    %738 = vmatpush1.msra.mxu0 0.0
    %739 = vmatprep.subr.mxu0 0.0
    %740 = vmatpush1.msra.mxu0 0.0
    %741 = vmatprep.subr.mxu0 0.0
    %742 = vmatpush1.msra.mxu0 0.0
    %743 = vmatprep.subr.mxu0 0.0
    %744 = vmatpush1.msra.mxu0 0.0
    %745 = vmatprep.subr.mxu0 0.0
    %746 = vmatpush1.msra.mxu0 0.0
    %747 = vmatprep.subr.mxu0 0.0
    %748 = vmatpush1.msra.mxu0 0.0
    %749 = vmatprep.subr.mxu0 0.0
    %750 = vmatpush1.msra.mxu0 0.0
    %751 = vmatprep.subr.mxu0 0.0
    %752 = vmatpush1.msra.mxu0 0.0
    %753 = vmatprep.subr.mxu0 0.0
    %754 = vmatpush1.msra.mxu0 0.0
    %755 = vmatprep.subr.mxu0 0.0
    %756 = vmatpush1.msra.mxu0 0.0
    %757 = vmatprep.subr.mxu0 0.0
    %758 = vmatpush1.msra.mxu0 0.0
    %759 = vmatprep.subr.mxu0 0.0
    %760 = vmatpush1.msra.mxu0 0.0
    %761 = vmatprep.subr.mxu0 0.0
    %762 = vmatpush1.msra.mxu0 0.0
    %763 = vmatprep.subr.mxu0 0.0
    %764 = vmatpush1.msra.mxu0 0.0
    %765 = vmatprep.mubr.f32.mxu0 0.0
    %766 = vmatmul.mubr.f32.gmra.mrb[0].mxu0 %v699
    %v767 = vpop.f32.mrb[0].mxu0
    %v768 = vadd.f32 0.0, %v767
    %v769 = vpop.f32.mrb[0].mxu0
    %770 = vdwg.mxu0
    %v772 = vrot.slane %v768, 4
    %v774 = vadd.f32 %v252, %v772
    %v775 = vxor.u32 %v774, 2147483648
    %v776 = vmul.f32 %v775, 1.442695
    %v777 = vpow.pop %v776
    %v778 = vadd.f32 %v777, 1.0
    %v779 = vrcp.pop %v778
    %v780 = vmul.f32 1.0, %v779
    %v781 = vmul.f32 %v780, 2.0
    %v782 = vsub.f32 %v781, 1.0
    %v784 = vrot.slane %v683, 7
    %v786 = vmul.f32 %v780, %v784
    %788 = vrot.lane.b32.xlu0 %v782, 32
    %v789 = vpop.permute.xlu0 %788
    %v791 = vmul.f32 %v780, %v789
    %793 = vrot.lane.b32.xlu0 %v791, 32
    %v794 = vpop.permute.xlu0 %793
    %v796 = vadd.f32 %v786, %v794
    %v797 = vtanh.pop %v796
    %799 = vrot.lane.b32.xlu0 %v797, 32
    %v800 = vpop.permute.xlu0 %799
    %v802 = vmul.f32 %v780, %v800
    %804 = vrot.lane.b32.xlu0 %v802, 64
    %v805 = vpop.permute.xlu0 %804
    %vm807 = vcmask 258052
    %808 = vst.msk [vmem:[#allocation2] sm:$0x10] %vm807, %v805
    %v809 = vrot.slane %v802, 4
    %810 = vrot.lane.b32.xlu0 %v809, 64
    %v811 = vpop.permute.xlu0 %810
    %v812 = vsel %vm254, %v811, 0
    %814 = vmatprep.subr.mxu0 0.0
    %815 = vmatpush1.msra.mxu0 %v75
    %816 = vmatprep.subr.mxu0 0.0
    %817 = vmatpush1.msra.mxu0 %v76
    %818 = vmatprep.subr.mxu0 0.0
    %819 = vmatpush1.msra.mxu0 %v77
    %820 = vmatprep.subr.mxu0 0.0
    %821 = vmatpush1.msra.mxu0 %v78
    %822 = vmatprep.subr.mxu0 0.0
    %823 = vmatpush1.msra.mxu0 0.0
    %824 = vmatprep.subr.mxu0 0.0
    %825 = vmatpush1.msra.mxu0 0.0
    %826 = vmatprep.subr.mxu0 0.0
    %827 = vmatpush1.msra.mxu0 0.0
    %828 = vmatprep.subr.mxu0 0.0
    %829 = vmatpush1.msra.mxu0 0.0
    %830 = vmatprep.subr.mxu0 0.0
    %831 = vmatpush1.msra.mxu0 0.0
    %832 = vmatprep.subr.mxu0 0.0
    %833 = vmatpush1.msra.mxu0 0.0
    %834 = vmatprep.subr.mxu0 0.0
    %835 = vmatpush1.msra.mxu0 0.0
    %836 = vmatprep.subr.mxu0 0.0
    %837 = vmatpush1.msra.mxu0 0.0
    %838 = vmatprep.subr.mxu0 0.0
    %839 = vmatpush1.msra.mxu0 0.0
    %840 = vmatprep.subr.mxu0 0.0
    %841 = vmatpush1.msra.mxu0 0.0
    %842 = vmatprep.subr.mxu0 0.0
    %843 = vmatpush1.msra.mxu0 0.0
    %844 = vmatprep.subr.mxu0 0.0
    %845 = vmatpush1.msra.mxu0 0.0
    %846 = vmatprep.subr.mxu0 0.0
    %847 = vmatpush1.msra.mxu0 0.0
    %848 = vmatprep.subr.mxu0 0.0
    %849 = vmatpush1.msra.mxu0 0.0
    %850 = vmatprep.subr.mxu0 0.0
    %851 = vmatpush1.msra.mxu0 0.0
    %852 = vmatprep.subr.mxu0 0.0
    %853 = vmatpush1.msra.mxu0 0.0
    %854 = vmatprep.subr.mxu0 0.0
    %855 = vmatpush1.msra.mxu0 0.0
    %856 = vmatprep.subr.mxu0 0.0
    %857 = vmatpush1.msra.mxu0 0.0
    %858 = vmatprep.subr.mxu0 0.0
    %859 = vmatpush1.msra.mxu0 0.0
    %860 = vmatprep.subr.mxu0 0.0
    %861 = vmatpush1.msra.mxu0 0.0
    %862 = vmatprep.subr.mxu0 0.0
    %863 = vmatpush1.msra.mxu0 0.0
    %864 = vmatprep.subr.mxu0 0.0
    %865 = vmatpush1.msra.mxu0 0.0
    %866 = vmatprep.subr.mxu0 0.0
    %867 = vmatpush1.msra.mxu0 0.0
    %868 = vmatprep.subr.mxu0 0.0
    %869 = vmatpush1.msra.mxu0 0.0
    %870 = vmatprep.subr.mxu0 0.0
    %871 = vmatpush1.msra.mxu0 0.0
    %872 = vmatprep.subr.mxu0 0.0
    %873 = vmatpush1.msra.mxu0 0.0
    %874 = vmatprep.subr.mxu0 0.0
    %875 = vmatpush1.msra.mxu0 0.0
    %876 = vmatprep.subr.mxu0 0.0
    %877 = vmatpush1.msra.mxu0 0.0
    %878 = vmatprep.mubr.f32.mxu0 0.0
    %879 = vmatmul.mubr.f32.gmra.mrb[0].mxu0 %v812
    %v880 = vpop.f32.mrb[0].mxu0
    %v881 = vadd.f32 0.0, %v880
    %v882 = vpop.f32.mrb[0].mxu0
    %883 = vdwg.mxu0
    %v885 = vrot.slane %v881, 3
    %v887 = vadd.f32 %v252, %v885
    %v888 = vxor.u32 %v887, 2147483648
    %v889 = vmul.f32 %v888, 1.442695
    %v890 = vpow.pop %v889
    %v891 = vadd.f32 %v890, 1.0
    %v892 = vrcp.pop %v891
    %v893 = vmul.f32 1.0, %v892
    %v894 = vmul.f32 %v893, 2.0
    %v895 = vsub.f32 %v894, 1.0
    %v897 = vrot.slane %v796, 7
    %v899 = vmul.f32 %v893, %v897
    %901 = vrot.lane.b32.xlu0 %v895, 32
    %v902 = vpop.permute.xlu0 %901
    %v904 = vmul.f32 %v893, %v902
    %906 = vrot.lane.b32.xlu0 %v904, 32
    %v907 = vpop.permute.xlu0 %906
    %v909 = vadd.f32 %v899, %v907
    %v910 = vtanh.pop %v909
    %912 = vrot.lane.b32.xlu0 %v910, 32
    %v913 = vpop.permute.xlu0 %912
    %v915 = vmul.f32 %v893, %v913
    %917 = vrot.lane.b32.xlu0 %v915, 64
    %v918 = vpop.permute.xlu0 %917
    %vm920 = vcmask 259077
    %921 = vst.msk [vmem:[#allocation2] sm:$0x20] %vm920, %v918
    %v922 = vrot.slane %v915, 5
    %923 = vrot.lane.b32.xlu0 %v922, 64
    %v924 = vpop.permute.xlu0 %923
    %v925 = vsel %vm254, %v924, 0
    %927 = vmatprep.subr.mxu0 0.0
    %928 = vmatpush1.msra.mxu0 %v75
    %929 = vmatprep.subr.mxu0 0.0
    %930 = vmatpush1.msra.mxu0 %v76
    %931 = vmatprep.subr.mxu0 0.0
    %932 = vmatpush1.msra.mxu0 %v77
    %933 = vmatprep.subr.mxu0 0.0
    %934 = vmatpush1.msra.mxu0 %v78
    %935 = vmatprep.subr.mxu0 0.0
    %936 = vmatpush1.msra.mxu0 0.0
    %937 = vmatprep.subr.mxu0 0.0
    %938 = vmatpush1.msra.mxu0 0.0
    %939 = vmatprep.subr.mxu0 0.0
    %940 = vmatpush1.msra.mxu0 0.0
    %941 = vmatprep.subr.mxu0 0.0
    %942 = vmatpush1.msra.mxu0 0.0
    %943 = vmatprep.subr.mxu0 0.0
    %944 = vmatpush1.msra.mxu0 0.0
    %945 = vmatprep.subr.mxu0 0.0
    %946 = vmatpush1.msra.mxu0 0.0
    %947 = vmatprep.subr.mxu0 0.0
    %948 = vmatpush1.msra.mxu0 0.0
    %949 = vmatprep.subr.mxu0 0.0
    %950 = vmatpush1.msra.mxu0 0.0
    %951 = vmatprep.subr.mxu0 0.0
    %952 = vmatpush1.msra.mxu0 0.0
    %953 = vmatprep.subr.mxu0 0.0
    %954 = vmatpush1.msra.mxu0 0.0
    %955 = vmatprep.subr.mxu0 0.0
    %956 = vmatpush1.msra.mxu0 0.0
    %957 = vmatprep.subr.mxu0 0.0
    %958 = vmatpush1.msra.mxu0 0.0
    %959 = vmatprep.subr.mxu0 0.0
    %960 = vmatpush1.msra.mxu0 0.0
    %961 = vmatprep.subr.mxu0 0.0
    %962 = vmatpush1.msra.mxu0 0.0
    %963 = vmatprep.subr.mxu0 0.0
    %964 = vmatpush1.msra.mxu0 0.0
    %965 = vmatprep.subr.mxu0 0.0
    %966 = vmatpush1.msra.mxu0 0.0
    %967 = vmatprep.subr.mxu0 0.0
    %968 = vmatpush1.msra.mxu0 0.0
    %969 = vmatprep.subr.mxu0 0.0
    %970 = vmatpush1.msra.mxu0 0.0
    %971 = vmatprep.subr.mxu0 0.0
    %972 = vmatpush1.msra.mxu0 0.0
    %973 = vmatprep.subr.mxu0 0.0
    %974 = vmatpush1.msra.mxu0 0.0
    %975 = vmatprep.subr.mxu0 0.0
    %976 = vmatpush1.msra.mxu0 0.0
    %977 = vmatprep.subr.mxu0 0.0
    %978 = vmatpush1.msra.mxu0 0.0
    %979 = vmatprep.subr.mxu0 0.0
    %980 = vmatpush1.msra.mxu0 0.0
    %981 = vmatprep.subr.mxu0 0.0
    %982 = vmatpush1.msra.mxu0 0.0
    %983 = vmatprep.subr.mxu0 0.0
    %984 = vmatpush1.msra.mxu0 0.0
    %985 = vmatprep.subr.mxu0 0.0
    %986 = vmatpush1.msra.mxu0 0.0
    %987 = vmatprep.subr.mxu0 0.0
    %988 = vmatpush1.msra.mxu0 0.0
    %989 = vmatprep.subr.mxu0 0.0
    %990 = vmatpush1.msra.mxu0 0.0
    %991 = vmatprep.mubr.f32.mxu0 0.0
    %992 = vmatmul.mubr.f32.gmra.mrb[0].mxu0 %v925
    %v993 = vpop.f32.mrb[0].mxu0
    %v994 = vadd.f32 0.0, %v993
    %v995 = vpop.f32.mrb[0].mxu0
    %996 = vdwg.mxu0
    %v998 = vrot.slane %v994, 2
    %v1000 = vadd.f32 %v252, %v998
    %v1001 = vxor.u32 %v1000, 2147483648
    %v1002 = vmul.f32 %v1001, 1.442695
    %v1003 = vpow.pop %v1002
    %v1004 = vadd.f32 %v1003, 1.0
    %v1005 = vrcp.pop %v1004
    %v1006 = vmul.f32 1.0, %v1005
    %v1007 = vmul.f32 %v1006, 2.0
    %v1008 = vsub.f32 %v1007, 1.0
    %v1010 = vrot.slane %v909, 7
    %v1012 = vmul.f32 %v1006, %v1010
    %1014 = vrot.lane.b32.xlu0 %v1008, 32
    %v1015 = vpop.permute.xlu0 %1014
    %v1017 = vmul.f32 %v1006, %v1015
    %1019 = vrot.lane.b32.xlu0 %v1017, 32
    %v1020 = vpop.permute.xlu0 %1019
    %v1022 = vadd.f32 %v1012, %v1020
    %v1023 = vtanh.pop %v1022
    %1025 = vrot.lane.b32.xlu0 %v1023, 32
    %v1026 = vpop.permute.xlu0 %1025
    %v1028 = vmul.f32 %v1006, %v1026
    %1030 = vrot.lane.b32.xlu0 %v1028, 64
    %v1031 = vpop.permute.xlu0 %1030
    %vm1033 = vcmask 260102
    %1034 = vst.msk [vmem:[#allocation2] sm:$0x40] %vm1033, %v1031
    %v1035 = vrot.slane %v1028, 6
    %1036 = vrot.lane.b32.xlu0 %v1035, 64
    %v1037 = vpop.permute.xlu0 %1036
    %v1038 = vsel %vm254, %v1037, 0
    %1040 = vmatprep.subr.mxu0 0.0
    %1041 = vmatpush1.msra.mxu0 %v75
    %1042 = vmatprep.subr.mxu0 0.0
    %1043 = vmatpush1.msra.mxu0 %v76
    %1044 = vmatprep.subr.mxu0 0.0
    %1045 = vmatpush1.msra.mxu0 %v77
    %1046 = vmatprep.subr.mxu0 0.0
    %1047 = vmatpush1.msra.mxu0 %v78
    %1048 = vmatprep.subr.mxu0 0.0
    %1049 = vmatpush1.msra.mxu0 0.0
    %1050 = vmatprep.subr.mxu0 0.0
    %1051 = vmatpush1.msra.mxu0 0.0
    %1052 = vmatprep.subr.mxu0 0.0
    %1053 = vmatpush1.msra.mxu0 0.0
    %1054 = vmatprep.subr.mxu0 0.0
    %1055 = vmatpush1.msra.mxu0 0.0
    %1056 = vmatprep.subr.mxu0 0.0
    %1057 = vmatpush1.msra.mxu0 0.0
    %1058 = vmatprep.subr.mxu0 0.0
    %1059 = vmatpush1.msra.mxu0 0.0
    %1060 = vmatprep.subr.mxu0 0.0
    %1061 = vmatpush1.msra.mxu0 0.0
    %1062 = vmatprep.subr.mxu0 0.0
    %1063 = vmatpush1.msra.mxu0 0.0
    %1064 = vmatprep.subr.mxu0 0.0
    %1065 = vmatpush1.msra.mxu0 0.0
    %1066 = vmatprep.subr.mxu0 0.0
    %1067 = vmatpush1.msra.mxu0 0.0
    %1068 = vmatprep.subr.mxu0 0.0
    %1069 = vmatpush1.msra.mxu0 0.0
    %1070 = vmatprep.subr.mxu0 0.0
    %1071 = vmatpush1.msra.mxu0 0.0
    %1072 = vmatprep.subr.mxu0 0.0
    %1073 = vmatpush1.msra.mxu0 0.0
    %1074 = vmatprep.subr.mxu0 0.0
    %1075 = vmatpush1.msra.mxu0 0.0
    %1076 = vmatprep.subr.mxu0 0.0
    %1077 = vmatpush1.msra.mxu0 0.0
    %1078 = vmatprep.subr.mxu0 0.0
    %1079 = vmatpush1.msra.mxu0 0.0
    %1080 = vmatprep.subr.mxu0 0.0
    %1081 = vmatpush1.msra.mxu0 0.0
    %1082 = vmatprep.subr.mxu0 0.0
    %1083 = vmatpush1.msra.mxu0 0.0
    %1084 = vmatprep.subr.mxu0 0.0
    %1085 = vmatpush1.msra.mxu0 0.0
    %1086 = vmatprep.subr.mxu0 0.0
    %1087 = vmatpush1.msra.mxu0 0.0
    %1088 = vmatprep.subr.mxu0 0.0
    %1089 = vmatpush1.msra.mxu0 0.0
    %1090 = vmatprep.subr.mxu0 0.0
    %1091 = vmatpush1.msra.mxu0 0.0
    %1092 = vmatprep.subr.mxu0 0.0
    %1093 = vmatpush1.msra.mxu0 0.0
    %1094 = vmatprep.subr.mxu0 0.0
    %1095 = vmatpush1.msra.mxu0 0.0
    %1096 = vmatprep.subr.mxu0 0.0
    %1097 = vmatpush1.msra.mxu0 0.0
    %1098 = vmatprep.subr.mxu0 0.0
    %1099 = vmatpush1.msra.mxu0 0.0
    %1100 = vmatprep.subr.mxu0 0.0
    %1101 = vmatpush1.msra.mxu0 0.0
    %1102 = vmatprep.subr.mxu0 0.0
    %1103 = vmatpush1.msra.mxu0 0.0
    %1104 = vmatprep.mubr.f32.mxu0 0.0
    %1105 = vmatmul.mubr.f32.gmra.mrb[0].mxu0 %v1038
    %v1106 = vpop.f32.mrb[0].mxu0
    %v1107 = vadd.f32 0.0, %v1106
    %v1108 = vpop.f32.mrb[0].mxu0
    %1109 = vdwg.mxu0
    %v1111 = vrot.slane %v1107, 1
    %v1113 = vadd.f32 %v252, %v1111
    %v1114 = vxor.u32 %v1113, 2147483648
    %v1115 = vmul.f32 %v1114, 1.442695
    %v1116 = vpow.pop %v1115
    %v1117 = vadd.f32 %v1116, 1.0
    %v1118 = vrcp.pop %v1117
    %v1119 = vmul.f32 1.0, %v1118
    %v1120 = vmul.f32 %v1119, 2.0
    %v1121 = vsub.f32 %v1120, 1.0
    %v1123 = vrot.slane %v1022, 7
    %v1125 = vmul.f32 %v1119, %v1123
    %1127 = vrot.lane.b32.xlu0 %v1121, 32
    %v1128 = vpop.permute.xlu0 %1127
    %v1130 = vmul.f32 %v1119, %v1128
    %1132 = vrot.lane.b32.xlu0 %v1130, 32
    %v1133 = vpop.permute.xlu0 %1132
    %v1135 = vadd.f32 %v1125, %v1133
    %v1136 = vtanh.pop %v1135
    %1138 = vrot.lane.b32.xlu0 %v1136, 32
    %v1139 = vpop.permute.xlu0 %1138
    %v1141 = vmul.f32 %v1119, %v1139
    %1143 = vrot.lane.b32.xlu0 %v1141, 64
    %v1144 = vpop.permute.xlu0 %1143
    %vm1146 = vcmask 261127
    %1147 = vst.msk [vmem:[#allocation2] sm:$0x80] %vm1146, %v1144
    %v1148 = vrot.slane %v1141, 7
    %1149 = vrot.lane.b32.xlu0 %v1148, 64
    %v1150 = vpop.permute.xlu0 %1149
    %v1151 = vsel %vm254, %v1150, 0
    %1153 = vmatprep.subr.mxu0 0.0
    %1154 = vmatpush1.msra.mxu0 %v75
    %1155 = vmatprep.subr.mxu0 0.0
    %1156 = vmatpush1.msra.mxu0 %v76
    %1157 = vmatprep.subr.mxu0 0.0
    %1158 = vmatpush1.msra.mxu0 %v77
    %1159 = vmatprep.subr.mxu0 0.0
    %1160 = vmatpush1.msra.mxu0 %v78
    %1161 = vmatprep.subr.mxu0 0.0
    %1162 = vmatpush1.msra.mxu0 0.0
    %1163 = vmatprep.subr.mxu0 0.0
    %1164 = vmatpush1.msra.mxu0 0.0
    %1165 = vmatprep.subr.mxu0 0.0
    %1166 = vmatpush1.msra.mxu0 0.0
    %1167 = vmatprep.subr.mxu0 0.0
    %1168 = vmatpush1.msra.mxu0 0.0
    %1169 = vmatprep.subr.mxu0 0.0
    %1170 = vmatpush1.msra.mxu0 0.0
    %1171 = vmatprep.subr.mxu0 0.0
    %1172 = vmatpush1.msra.mxu0 0.0
    %1173 = vmatprep.subr.mxu0 0.0
    %1174 = vmatpush1.msra.mxu0 0.0
    %1175 = vmatprep.subr.mxu0 0.0
    %1176 = vmatpush1.msra.mxu0 0.0
    %1177 = vmatprep.subr.mxu0 0.0
    %1178 = vmatpush1.msra.mxu0 0.0
    %1179 = vmatprep.subr.mxu0 0.0
    %1180 = vmatpush1.msra.mxu0 0.0
    %1181 = vmatprep.subr.mxu0 0.0
    %1182 = vmatpush1.msra.mxu0 0.0
    %1183 = vmatprep.subr.mxu0 0.0
    %1184 = vmatpush1.msra.mxu0 0.0
    %1185 = vmatprep.subr.mxu0 0.0
    %1186 = vmatpush1.msra.mxu0 0.0
    %1187 = vmatprep.subr.mxu0 0.0
    %1188 = vmatpush1.msra.mxu0 0.0
    %1189 = vmatprep.subr.mxu0 0.0
    %1190 = vmatpush1.msra.mxu0 0.0
    %1191 = vmatprep.subr.mxu0 0.0
    %1192 = vmatpush1.msra.mxu0 0.0
    %1193 = vmatprep.subr.mxu0 0.0
    %1194 = vmatpush1.msra.mxu0 0.0
    %1195 = vmatprep.subr.mxu0 0.0
    %1196 = vmatpush1.msra.mxu0 0.0
    %1197 = vmatprep.subr.mxu0 0.0
    %1198 = vmatpush1.msra.mxu0 0.0
    %1199 = vmatprep.subr.mxu0 0.0
    %1200 = vmatpush1.msra.mxu0 0.0
    %1201 = vmatprep.subr.mxu0 0.0
    %1202 = vmatpush1.msra.mxu0 0.0
    %1203 = vmatprep.subr.mxu0 0.0
    %1204 = vmatpush1.msra.mxu0 0.0
    %1205 = vmatprep.subr.mxu0 0.0
    %1206 = vmatpush1.msra.mxu0 0.0
    %1207 = vmatprep.subr.mxu0 0.0
    %1208 = vmatpush1.msra.mxu0 0.0
    %1209 = vmatprep.subr.mxu0 0.0
    %1210 = vmatpush1.msra.mxu0 0.0
    %1211 = vmatprep.subr.mxu0 0.0
    %1212 = vmatpush1.msra.mxu0 0.0
    %1213 = vmatprep.subr.mxu0 0.0
    %1214 = vmatpush1.msra.mxu0 0.0
    %1215 = vmatprep.subr.mxu0 0.0
    %1216 = vmatpush1.msra.mxu0 0.0
    %1217 = vmatprep.mubr.f32.mxu0 0.0
    %1218 = vmatmul.mubr.f32.gmra.mrb[0].mxu0 %v1151
    %v1219 = vpop.f32.mrb[0].mxu0
    %v1220 = vadd.f32 0.0, %v1219
    %v1221 = vpop.f32.mrb[0].mxu0
    %1222 = vdwg.mxu0
    %v1223 = vadd.f32 %v253, %v1220
    %v1224 = vxor.u32 %v1223, 2147483648
    %v1225 = vmul.f32 %v1224, 1.442695
    %v1226 = vpow.pop %v1225
    %v1227 = vadd.f32 %v1226, 1.0
    %v1228 = vrcp.pop %v1227
    %v1229 = vmul.f32 1.0, %v1228
    %v1230 = vmul.f32 %v1229, 2.0
    %v1231 = vsub.f32 %v1230, 1.0
    %v1233 = vrot.slane %v1135, 7
    %v1235 = vmul.f32 %v1229, %v1233
    %1237 = vrot.lane.b32.xlu0 %v1231, 32
    %v1238 = vpop.permute.xlu0 %1237
    %v1240 = vmul.f32 %v1229, %v1238
    %1242 = vrot.lane.b32.xlu0 %v1240, 32
    %v1243 = vpop.permute.xlu0 %1242
    %v1245 = vadd.f32 %v1235, %v1243
    %v1246 = vtanh.pop %v1245
    %1248 = vrot.lane.b32.xlu0 %v1246, 32
    %v1249 = vpop.permute.xlu0 %1248
    %v1251 = vmul.f32 %v1229, %v1249
    %1253 = vrot.lane.b32.xlu0 %v1251, 64
    %v1254 = vpop.permute.xlu0 %1253
    %1256 = vst.msk [vmem:[#allocation2 + $0x8] sm:$0x1] %vm358, %v1254
    %v1257 = vsel %vm254, %v1254, 0
    %1259 = vmatprep.subr.mxu0 0.0
    %1260 = vmatpush1.msra.mxu0 %v75
    %1261 = vmatprep.subr.mxu0 0.0
    %1262 = vmatpush1.msra.mxu0 %v76
    %1263 = vmatprep.subr.mxu0 0.0
    %1264 = vmatpush1.msra.mxu0 %v77
    %1265 = vmatprep.subr.mxu0 0.0
    %1266 = vmatpush1.msra.mxu0 %v78
    %1267 = vmatprep.subr.mxu0 0.0
    %1268 = vmatpush1.msra.mxu0 0.0
    %1269 = vmatprep.subr.mxu0 0.0
    %1270 = vmatpush1.msra.mxu0 0.0
    %1271 = vmatprep.subr.mxu0 0.0
    %1272 = vmatpush1.msra.mxu0 0.0
    %1273 = vmatprep.subr.mxu0 0.0
    %1274 = vmatpush1.msra.mxu0 0.0
    %1275 = vmatprep.subr.mxu0 0.0
    %1276 = vmatpush1.msra.mxu0 0.0
    %1277 = vmatprep.subr.mxu0 0.0
    %1278 = vmatpush1.msra.mxu0 0.0
    %1279 = vmatprep.subr.mxu0 0.0
    %1280 = vmatpush1.msra.mxu0 0.0
    %1281 = vmatprep.subr.mxu0 0.0
    %1282 = vmatpush1.msra.mxu0 0.0
    %1283 = vmatprep.subr.mxu0 0.0
    %1284 = vmatpush1.msra.mxu0 0.0
    %1285 = vmatprep.subr.mxu0 0.0
    %1286 = vmatpush1.msra.mxu0 0.0
    %1287 = vmatprep.subr.mxu0 0.0
    %1288 = vmatpush1.msra.mxu0 0.0
    %1289 = vmatprep.subr.mxu0 0.0
    %1290 = vmatpush1.msra.mxu0 0.0
    %1291 = vmatprep.subr.mxu0 0.0
    %1292 = vmatpush1.msra.mxu0 0.0
    %1293 = vmatprep.subr.mxu0 0.0
    %1294 = vmatpush1.msra.mxu0 0.0
    %1295 = vmatprep.subr.mxu0 0.0
    %1296 = vmatpush1.msra.mxu0 0.0
    %1297 = vmatprep.subr.mxu0 0.0
    %1298 = vmatpush1.msra.mxu0 0.0
    %1299 = vmatprep.subr.mxu0 0.0
    %1300 = vmatpush1.msra.mxu0 0.0
    %1301 = vmatprep.subr.mxu0 0.0
    %1302 = vmatpush1.msra.mxu0 0.0
    %1303 = vmatprep.subr.mxu0 0.0
    %1304 = vmatpush1.msra.mxu0 0.0
    %1305 = vmatprep.subr.mxu0 0.0
    %1306 = vmatpush1.msra.mxu0 0.0
    %1307 = vmatprep.subr.mxu0 0.0
    %1308 = vmatpush1.msra.mxu0 0.0
    %1309 = vmatprep.subr.mxu0 0.0
    %1310 = vmatpush1.msra.mxu0 0.0
    %1311 = vmatprep.subr.mxu0 0.0
    %1312 = vmatpush1.msra.mxu0 0.0
    %1313 = vmatprep.subr.mxu0 0.0
    %1314 = vmatpush1.msra.mxu0 0.0
    %1315 = vmatprep.subr.mxu0 0.0
    %1316 = vmatpush1.msra.mxu0 0.0
    %1317 = vmatprep.subr.mxu0 0.0
    %1318 = vmatpush1.msra.mxu0 0.0
    %1319 = vmatprep.subr.mxu0 0.0
    %1320 = vmatpush1.msra.mxu0 0.0
    %1321 = vmatprep.subr.mxu0 0.0
    %1322 = vmatpush1.msra.mxu0 0.0
    %1323 = vmatprep.mubr.f32.mxu0 0.0
    %1324 = vmatmul.mubr.f32.gmra.mrb[0].mxu0 %v1257
    %v1325 = vpop.f32.mrb[0].mxu0
    %v1326 = vadd.f32 0.0, %v1325
    %v1327 = vpop.f32.mrb[0].mxu0
    %1328 = vdwg.mxu0
    %v1330 = vrot.slane %v1326, 7
    %v1332 = vadd.f32 %v253, %v1330
    %v1333 = vxor.u32 %v1332, 2147483648
    %v1334 = vmul.f32 %v1333, 1.442695
    %v1335 = vpow.pop %v1334
    %v1336 = vadd.f32 %v1335, 1.0
    %v1337 = vrcp.pop %v1336
    %v1338 = vmul.f32 1.0, %v1337
    %v1339 = vmul.f32 %v1338, 2.0
    %v1340 = vsub.f32 %v1339, 1.0
    %v1342 = vrot.slane %v1245, 7
    %v1344 = vmul.f32 %v1338, %v1342
    %1346 = vrot.lane.b32.xlu0 %v1340, 32
    %v1347 = vpop.permute.xlu0 %1346
    %v1349 = vmul.f32 %v1338, %v1347
    %1351 = vrot.lane.b32.xlu0 %v1349, 32
    %v1352 = vpop.permute.xlu0 %1351
    %v1354 = vadd.f32 %v1344, %v1352
    %v1355 = vtanh.pop %v1354
    %1357 = vrot.lane.b32.xlu0 %v1355, 32
    %v1358 = vpop.permute.xlu0 %1357
    %v1360 = vmul.f32 %v1338, %v1358
    %1362 = vrot.lane.b32.xlu0 %v1360, 64
    %v1363 = vpop.permute.xlu0 %1362
    %1365 = vst.msk [vmem:[#allocation2 + $0x8] sm:$0x2] %vm468, %v1363
    %v1366 = vrot.slane %v1360, 1
    %1367 = vrot.lane.b32.xlu0 %v1366, 64
    %v1368 = vpop.permute.xlu0 %1367
    %v1369 = vsel %vm254, %v1368, 0
    %1371 = vmatprep.subr.mxu0 0.0
    %1372 = vmatpush1.msra.mxu0 %v75
    %1373 = vmatprep.subr.mxu0 0.0
    %1374 = vmatpush1.msra.mxu0 %v76
    %1375 = vmatprep.subr.mxu0 0.0
    %1376 = vmatpush1.msra.mxu0 %v77
    %1377 = vmatprep.subr.mxu0 0.0
    %1378 = vmatpush1.msra.mxu0 %v78
    %1379 = vmatprep.subr.mxu0 0.0
    %1380 = vmatpush1.msra.mxu0 0.0
    %1381 = vmatprep.subr.mxu0 0.0
    %1382 = vmatpush1.msra.mxu0 0.0
    %1383 = vmatprep.subr.mxu0 0.0
    %1384 = vmatpush1.msra.mxu0 0.0
    %1385 = vmatprep.subr.mxu0 0.0
    %1386 = vmatpush1.msra.mxu0 0.0
    %1387 = vmatprep.subr.mxu0 0.0
    %1388 = vmatpush1.msra.mxu0 0.0
    %1389 = vmatprep.subr.mxu0 0.0
    %1390 = vmatpush1.msra.mxu0 0.0
    %1391 = vmatprep.subr.mxu0 0.0
    %1392 = vmatpush1.msra.mxu0 0.0
    %1393 = vmatprep.subr.mxu0 0.0
    %1394 = vmatpush1.msra.mxu0 0.0
    %1395 = vmatprep.subr.mxu0 0.0
    %1396 = vmatpush1.msra.mxu0 0.0
    %1397 = vmatprep.subr.mxu0 0.0
    %1398 = vmatpush1.msra.mxu0 0.0
    %1399 = vmatprep.subr.mxu0 0.0
    %1400 = vmatpush1.msra.mxu0 0.0
    %1401 = vmatprep.subr.mxu0 0.0
    %1402 = vmatpush1.msra.mxu0 0.0
    %1403 = vmatprep.subr.mxu0 0.0
    %1404 = vmatpush1.msra.mxu0 0.0
    %1405 = vmatprep.subr.mxu0 0.0
    %1406 = vmatpush1.msra.mxu0 0.0
    %1407 = vmatprep.subr.mxu0 0.0
    %1408 = vmatpush1.msra.mxu0 0.0
    %1409 = vmatprep.subr.mxu0 0.0
    %1410 = vmatpush1.msra.mxu0 0.0
    %1411 = vmatprep.subr.mxu0 0.0
    %1412 = vmatpush1.msra.mxu0 0.0
    %1413 = vmatprep.subr.mxu0 0.0
    %1414 = vmatpush1.msra.mxu0 0.0
    %1415 = vmatprep.subr.mxu0 0.0
    %1416 = vmatpush1.msra.mxu0 0.0
    %1417 = vmatprep.subr.mxu0 0.0
    %1418 = vmatpush1.msra.mxu0 0.0
    %1419 = vmatprep.subr.mxu0 0.0
    %1420 = vmatpush1.msra.mxu0 0.0
    %1421 = vmatprep.subr.mxu0 0.0
    %1422 = vmatpush1.msra.mxu0 0.0
    %1423 = vmatprep.subr.mxu0 0.0
    %1424 = vmatpush1.msra.mxu0 0.0
    %1425 = vmatprep.subr.mxu0 0.0
    %1426 = vmatpush1.msra.mxu0 0.0
    %1427 = vmatprep.subr.mxu0 0.0
    %1428 = vmatpush1.msra.mxu0 0.0
    %1429 = vmatprep.subr.mxu0 0.0
    %1430 = vmatpush1.msra.mxu0 0.0
    %1431 = vmatprep.subr.mxu0 0.0
    %1432 = vmatpush1.msra.mxu0 0.0
    %1433 = vmatprep.subr.mxu0 0.0
    %1434 = vmatpush1.msra.mxu0 0.0
    %1435 = vmatprep.mubr.f32.mxu0 0.0
    %1436 = vmatmul.mubr.f32.gmra.mrb[0].mxu0 %v1369
    %v1437 = vpop.f32.mrb[0].mxu0
    %v1438 = vadd.f32 0.0, %v1437
    %v1439 = vpop.f32.mrb[0].mxu0
    %1440 = vdwg.mxu0
    %v1442 = vrot.slane %v1438, 6
    %v1444 = vadd.f32 %v253, %v1442
    %v1445 = vxor.u32 %v1444, 2147483648
    %v1446 = vmul.f32 %v1445, 1.442695
    %v1447 = vpow.pop %v1446
    %v1448 = vadd.f32 %v1447, 1.0
    %v1449 = vrcp.pop %v1448
    %v1450 = vmul.f32 1.0, %v1449
    %v1451 = vmul.f32 %v1450, 2.0
    %v1452 = vsub.f32 %v1451, 1.0
    %v1454 = vrot.slane %v1354, 7
    %v1456 = vmul.f32 %v1450, %v1454
    %1458 = vrot.lane.b32.xlu0 %v1452, 32
    %v1459 = vpop.permute.xlu0 %1458
    %v1461 = vmul.f32 %v1450, %v1459
    %1463 = vrot.lane.b32.xlu0 %v1461, 32
    %v1464 = vpop.permute.xlu0 %1463
    %v1466 = vadd.f32 %v1456, %v1464
    %v1467 = vtanh.pop %v1466
    %1469 = vrot.lane.b32.xlu0 %v1467, 32
    %v1470 = vpop.permute.xlu0 %1469
    %v1472 = vmul.f32 %v1450, %v1470
    %1474 = vrot.lane.b32.xlu0 %v1472, 64
    %v1475 = vpop.permute.xlu0 %1474
    %1477 = vst.msk [vmem:[#allocation2 + $0x8] sm:$0x4] %vm581, %v1475
    %v1478 = vrot.slane %v1472, 2
    %1479 = vrot.lane.b32.xlu0 %v1478, 64
    %v1480 = vpop.permute.xlu0 %1479
    %v1481 = vsel %vm254, %v1480, 0
    %1483 = vmatprep.subr.mxu0 0.0
    %1484 = vmatpush1.msra.mxu0 %v75
    %1485 = vmatprep.subr.mxu0 0.0
    %1486 = vmatpush1.msra.mxu0 %v76
    %1487 = vmatprep.subr.mxu0 0.0
    %1488 = vmatpush1.msra.mxu0 %v77
    %1489 = vmatprep.subr.mxu0 0.0
    %1490 = vmatpush1.msra.mxu0 %v78
    %1491 = vmatprep.subr.mxu0 0.0
    %1492 = vmatpush1.msra.mxu0 0.0
    %1493 = vmatprep.subr.mxu0 0.0
    %1494 = vmatpush1.msra.mxu0 0.0
    %1495 = vmatprep.subr.mxu0 0.0
    %1496 = vmatpush1.msra.mxu0 0.0
    %1497 = vmatprep.subr.mxu0 0.0
    %1498 = vmatpush1.msra.mxu0 0.0
    %1499 = vmatprep.subr.mxu0 0.0
    %1500 = vmatpush1.msra.mxu0 0.0
    %1501 = vmatprep.subr.mxu0 0.0
    %1502 = vmatpush1.msra.mxu0 0.0
    %1503 = vmatprep.subr.mxu0 0.0
    %1504 = vmatpush1.msra.mxu0 0.0
    %1505 = vmatprep.subr.mxu0 0.0
    %1506 = vmatpush1.msra.mxu0 0.0
    %1507 = vmatprep.subr.mxu0 0.0
    %1508 = vmatpush1.msra.mxu0 0.0
    %1509 = vmatprep.subr.mxu0 0.0
    %1510 = vmatpush1.msra.mxu0 0.0
    %1511 = vmatprep.subr.mxu0 0.0
    %1512 = vmatpush1.msra.mxu0 0.0
    %1513 = vmatprep.subr.mxu0 0.0
    %1514 = vmatpush1.msra.mxu0 0.0
    %1515 = vmatprep.subr.mxu0 0.0
    %1516 = vmatpush1.msra.mxu0 0.0
    %1517 = vmatprep.subr.mxu0 0.0
    %1518 = vmatpush1.msra.mxu0 0.0
    %1519 = vmatprep.subr.mxu0 0.0
    %1520 = vmatpush1.msra.mxu0 0.0
    %1521 = vmatprep.subr.mxu0 0.0
    %1522 = vmatpush1.msra.mxu0 0.0
    %1523 = vmatprep.subr.mxu0 0.0
    %1524 = vmatpush1.msra.mxu0 0.0
    %1525 = vmatprep.subr.mxu0 0.0
    %1526 = vmatpush1.msra.mxu0 0.0
    %1527 = vmatprep.subr.mxu0 0.0
    %1528 = vmatpush1.msra.mxu0 0.0
    %1529 = vmatprep.subr.mxu0 0.0
    %1530 = vmatpush1.msra.mxu0 0.0
    %1531 = vmatprep.subr.mxu0 0.0
    %1532 = vmatpush1.msra.mxu0 0.0
    %1533 = vmatprep.subr.mxu0 0.0
    %1534 = vmatpush1.msra.mxu0 0.0
    %1535 = vmatprep.subr.mxu0 0.0
    %1536 = vmatpush1.msra.mxu0 0.0
    %1537 = vmatprep.subr.mxu0 0.0
    %1538 = vmatpush1.msra.mxu0 0.0
    %1539 = vmatprep.subr.mxu0 0.0
    %1540 = vmatpush1.msra.mxu0 0.0
    %1541 = vmatprep.subr.mxu0 0.0
    %1542 = vmatpush1.msra.mxu0 0.0
    %1543 = vmatprep.subr.mxu0 0.0
    %1544 = vmatpush1.msra.mxu0 0.0
    %1545 = vmatprep.subr.mxu0 0.0
    %1546 = vmatpush1.msra.mxu0 0.0
    %1547 = vmatprep.mubr.f32.mxu0 0.0
    %1548 = vmatmul.mubr.f32.gmra.mrb[0].mxu0 %v1481
    %v1549 = vpop.f32.mrb[0].mxu0
    %v1550 = vadd.f32 0.0, %v1549
    %v1551 = vpop.f32.mrb[0].mxu0
    %1552 = vdwg.mxu0
    %v1554 = vrot.slane %v1550, 5
    %v1556 = vadd.f32 %v253, %v1554
    %v1557 = vxor.u32 %v1556, 2147483648
    %v1558 = vmul.f32 %v1557, 1.442695
    %v1559 = vpow.pop %v1558
    %v1560 = vadd.f32 %v1559, 1.0
    %v1561 = vrcp.pop %v1560
    %v1562 = vmul.f32 1.0, %v1561
    %v1563 = vmul.f32 %v1562, 2.0
    %v1564 = vsub.f32 %v1563, 1.0
    %v1566 = vrot.slane %v1466, 7
    %v1568 = vmul.f32 %v1562, %v1566
    %1570 = vrot.lane.b32.xlu0 %v1564, 32
    %v1571 = vpop.permute.xlu0 %1570
    %v1573 = vmul.f32 %v1562, %v1571
    %1575 = vrot.lane.b32.xlu0 %v1573, 32
    %v1576 = vpop.permute.xlu0 %1575
    %v1578 = vadd.f32 %v1568, %v1576
    %v1579 = vtanh.pop %v1578
    %1581 = vrot.lane.b32.xlu0 %v1579, 32
    %v1582 = vpop.permute.xlu0 %1581
    %v1584 = vmul.f32 %v1562, %v1582
    %1586 = vrot.lane.b32.xlu0 %v1584, 64
    %v1587 = vpop.permute.xlu0 %1586
    %1589 = vst.msk [vmem:[#allocation2 + $0x8] sm:$0x8] %vm694, %v1587
    %v1590 = vrot.slane %v1584, 3
    %1591 = vrot.lane.b32.xlu0 %v1590, 64
    %v1592 = vpop.permute.xlu0 %1591
    %v1593 = vsel %vm254, %v1592, 0
    %1595 = vmatprep.subr.mxu0 0.0
    %1596 = vmatpush1.msra.mxu0 %v75
    %1597 = vmatprep.subr.mxu0 0.0
    %1598 = vmatpush1.msra.mxu0 %v76
    %1599 = vmatprep.subr.mxu0 0.0
    %1600 = vmatpush1.msra.mxu0 %v77
    %1601 = vmatprep.subr.mxu0 0.0
    %1602 = vmatpush1.msra.mxu0 %v78
    %1603 = vmatprep.subr.mxu0 0.0
    %1604 = vmatpush1.msra.mxu0 0.0
    %1605 = vmatprep.subr.mxu0 0.0
    %1606 = vmatpush1.msra.mxu0 0.0
    %1607 = vmatprep.subr.mxu0 0.0
    %1608 = vmatpush1.msra.mxu0 0.0
    %1609 = vmatprep.subr.mxu0 0.0
    %1610 = vmatpush1.msra.mxu0 0.0
    %1611 = vmatprep.subr.mxu0 0.0
    %1612 = vmatpush1.msra.mxu0 0.0
    %1613 = vmatprep.subr.mxu0 0.0
    %1614 = vmatpush1.msra.mxu0 0.0
    %1615 = vmatprep.subr.mxu0 0.0
    %1616 = vmatpush1.msra.mxu0 0.0
    %1617 = vmatprep.subr.mxu0 0.0
    %1618 = vmatpush1.msra.mxu0 0.0
    %1619 = vmatprep.subr.mxu0 0.0
    %1620 = vmatpush1.msra.mxu0 0.0
    %1621 = vmatprep.subr.mxu0 0.0
    %1622 = vmatpush1.msra.mxu0 0.0
    %1623 = vmatprep.subr.mxu0 0.0
    %1624 = vmatpush1.msra.mxu0 0.0
    %1625 = vmatprep.subr.mxu0 0.0
    %1626 = vmatpush1.msra.mxu0 0.0
    %1627 = vmatprep.subr.mxu0 0.0
    %1628 = vmatpush1.msra.mxu0 0.0
    %1629 = vmatprep.subr.mxu0 0.0
    %1630 = vmatpush1.msra.mxu0 0.0
    %1631 = vmatprep.subr.mxu0 0.0
    %1632 = vmatpush1.msra.mxu0 0.0
    %1633 = vmatprep.subr.mxu0 0.0
    %1634 = vmatpush1.msra.mxu0 0.0
    %1635 = vmatprep.subr.mxu0 0.0
    %1636 = vmatpush1.msra.mxu0 0.0
    %1637 = vmatprep.subr.mxu0 0.0
    %1638 = vmatpush1.msra.mxu0 0.0
    %1639 = vmatprep.subr.mxu0 0.0
    %1640 = vmatpush1.msra.mxu0 0.0
    %1641 = vmatprep.subr.mxu0 0.0
    %1642 = vmatpush1.msra.mxu0 0.0
    %1643 = vmatprep.subr.mxu0 0.0
    %1644 = vmatpush1.msra.mxu0 0.0
    %1645 = vmatprep.subr.mxu0 0.0
    %1646 = vmatpush1.msra.mxu0 0.0
    %1647 = vmatprep.subr.mxu0 0.0
    %1648 = vmatpush1.msra.mxu0 0.0
    %1649 = vmatprep.subr.mxu0 0.0
    %1650 = vmatpush1.msra.mxu0 0.0
    %1651 = vmatprep.subr.mxu0 0.0
    %1652 = vmatpush1.msra.mxu0 0.0
    %1653 = vmatprep.subr.mxu0 0.0
    %1654 = vmatpush1.msra.mxu0 0.0
    %1655 = vmatprep.subr.mxu0 0.0
    %1656 = vmatpush1.msra.mxu0 0.0
    %1657 = vmatprep.subr.mxu0 0.0
    %1658 = vmatpush1.msra.mxu0 0.0
    %1659 = vmatprep.mubr.f32.mxu0 0.0
    %1660 = vmatmul.mubr.f32.gmra.mrb[0].mxu0 %v1593
    %v1661 = vpop.f32.mrb[0].mxu0
    %v1662 = vadd.f32 0.0, %v1661
    %v1663 = vpop.f32.mrb[0].mxu0
    %1664 = vdwg.mxu0
    %v1666 = vrot.slane %v1662, 4
    %v1668 = vadd.f32 %v253, %v1666
    %v1669 = vxor.u32 %v1668, 2147483648
    %v1670 = vmul.f32 %v1669, 1.442695
    %v1671 = vpow.pop %v1670
    %v1672 = vadd.f32 %v1671, 1.0
    %v1673 = vrcp.pop %v1672
    %v1674 = vmul.f32 1.0, %v1673
    %v1675 = vmul.f32 %v1674, 2.0
    %v1676 = vsub.f32 %v1675, 1.0
    %v1678 = vrot.slane %v1578, 7
    %v1680 = vmul.f32 %v1674, %v1678
    %1682 = vrot.lane.b32.xlu0 %v1676, 32
    %v1683 = vpop.permute.xlu0 %1682
    %v1685 = vmul.f32 %v1674, %v1683
    %1687 = vrot.lane.b32.xlu0 %v1685, 32
    %v1688 = vpop.permute.xlu0 %1687
    %v1690 = vadd.f32 %v1680, %v1688
    %v1691 = vtanh.pop %v1690
    %1693 = vrot.lane.b32.xlu0 %v1691, 32
    %v1694 = vpop.permute.xlu0 %1693
    %v1696 = vmul.f32 %v1674, %v1694
    %1698 = vrot.lane.b32.xlu0 %v1696, 64
    %v1699 = vpop.permute.xlu0 %1698
    %1701 = vst.msk [vmem:[#allocation2 + $0x8] sm:$0x10] %vm807, %v1699
    %v1702 = vrot.slane %v1696, 4
    %1703 = vrot.lane.b32.xlu0 %v1702, 64
    %v1704 = vpop.permute.xlu0 %1703
    %v1705 = vsel %vm254, %v1704, 0
    %1707 = vmatprep.subr.mxu0 0.0
    %1708 = vmatpush1.msra.mxu0 %v75
    %1709 = vmatprep.subr.mxu0 0.0
    %1710 = vmatpush1.msra.mxu0 %v76
    %1711 = vmatprep.subr.mxu0 0.0
    %1712 = vmatpush1.msra.mxu0 %v77
    %1713 = vmatprep.subr.mxu0 0.0
    %1714 = vmatpush1.msra.mxu0 %v78
    %1715 = vmatprep.subr.mxu0 0.0
    %1716 = vmatpush1.msra.mxu0 0.0
    %1717 = vmatprep.subr.mxu0 0.0
    %1718 = vmatpush1.msra.mxu0 0.0
    %1719 = vmatprep.subr.mxu0 0.0
    %1720 = vmatpush1.msra.mxu0 0.0
    %1721 = vmatprep.subr.mxu0 0.0
    %1722 = vmatpush1.msra.mxu0 0.0
    %1723 = vmatprep.subr.mxu0 0.0
    %1724 = vmatpush1.msra.mxu0 0.0
    %1725 = vmatprep.subr.mxu0 0.0
    %1726 = vmatpush1.msra.mxu0 0.0
    %1727 = vmatprep.subr.mxu0 0.0
    %1728 = vmatpush1.msra.mxu0 0.0
    %1729 = vmatprep.subr.mxu0 0.0
    %1730 = vmatpush1.msra.mxu0 0.0
    %1731 = vmatprep.subr.mxu0 0.0
    %1732 = vmatpush1.msra.mxu0 0.0
    %1733 = vmatprep.subr.mxu0 0.0
    %1734 = vmatpush1.msra.mxu0 0.0
    %1735 = vmatprep.subr.mxu0 0.0
    %1736 = vmatpush1.msra.mxu0 0.0
    %1737 = vmatprep.subr.mxu0 0.0
    %1738 = vmatpush1.msra.mxu0 0.0
    %1739 = vmatprep.subr.mxu0 0.0
    %1740 = vmatpush1.msra.mxu0 0.0
    %1741 = vmatprep.subr.mxu0 0.0
    %1742 = vmatpush1.msra.mxu0 0.0
    %1743 = vmatprep.subr.mxu0 0.0
    %1744 = vmatpush1.msra.mxu0 0.0
    %1745 = vmatprep.subr.mxu0 0.0
    %1746 = vmatpush1.msra.mxu0 0.0
    %1747 = vmatprep.subr.mxu0 0.0
    %1748 = vmatpush1.msra.mxu0 0.0
    %1749 = vmatprep.subr.mxu0 0.0
    %1750 = vmatpush1.msra.mxu0 0.0
    %1751 = vmatprep.subr.mxu0 0.0
    %1752 = vmatpush1.msra.mxu0 0.0
    %1753 = vmatprep.subr.mxu0 0.0
    %1754 = vmatpush1.msra.mxu0 0.0
    %1755 = vmatprep.subr.mxu0 0.0
    %1756 = vmatpush1.msra.mxu0 0.0
    %1757 = vmatprep.subr.mxu0 0.0
    %1758 = vmatpush1.msra.mxu0 0.0
    %1759 = vmatprep.subr.mxu0 0.0
    %1760 = vmatpush1.msra.mxu0 0.0
    %1761 = vmatprep.subr.mxu0 0.0
    %1762 = vmatpush1.msra.mxu0 0.0
    %1763 = vmatprep.subr.mxu0 0.0
    %1764 = vmatpush1.msra.mxu0 0.0
    %1765 = vmatprep.subr.mxu0 0.0
    %1766 = vmatpush1.msra.mxu0 0.0
    %1767 = vmatprep.subr.mxu0 0.0
    %1768 = vmatpush1.msra.mxu0 0.0
    %1769 = vmatprep.subr.mxu0 0.0
    %1770 = vmatpush1.msra.mxu0 0.0
    %1771 = vmatprep.mubr.f32.mxu0 0.0
    %1772 = vmatmul.mubr.f32.gmra.mrb[0].mxu0 %v1705
    %v1773 = vpop.f32.mrb[0].mxu0
    %v1774 = vadd.f32 0.0, %v1773
    %v1775 = vpop.f32.mrb[0].mxu0
    %1776 = vdwg.mxu0
    %v1778 = vrot.slane %v1774, 3
    %v1780 = vadd.f32 %v253, %v1778
    %v1781 = vxor.u32 %v1780, 2147483648
    %v1782 = vmul.f32 %v1781, 1.442695
    %v1783 = vpow.pop %v1782
    %v1784 = vadd.f32 %v1783, 1.0
    %v1785 = vrcp.pop %v1784
    %v1786 = vmul.f32 1.0, %v1785
    %v1787 = vmul.f32 %v1786, 2.0
    %v1788 = vsub.f32 %v1787, 1.0
    %v1790 = vrot.slane %v1690, 7
    %v1792 = vmul.f32 %v1786, %v1790
    %1794 = vrot.lane.b32.xlu0 %v1788, 32
    %v1795 = vpop.permute.xlu0 %1794
    %v1797 = vmul.f32 %v1786, %v1795
    %1799 = vrot.lane.b32.xlu0 %v1797, 32
    %v1800 = vpop.permute.xlu0 %1799
    %v1802 = vadd.f32 %v1792, %v1800
    %v1803 = vtanh.pop %v1802
    %1805 = vrot.lane.b32.xlu0 %v1803, 32
    %v1806 = vpop.permute.xlu0 %1805
    %v1808 = vmul.f32 %v1786, %v1806
    %1810 = vrot.lane.b32.xlu0 %v1808, 64
    %v1811 = vpop.permute.xlu0 %1810
    %1813 = vst.msk [vmem:[#allocation2 + $0x8] sm:$0x20] %vm920, %v1811
    %v1814 = vrot.slane %v1808, 5
    %1815 = vrot.lane.b32.xlu0 %v1814, 64
    %v1816 = vpop.permute.xlu0 %1815
    %v1817 = vsel %vm254, %v1816, 0
    %1819 = vmatprep.subr.mxu0 0.0
    %1820 = vmatpush1.msra.mxu0 %v75
    %1821 = vmatprep.subr.mxu0 0.0
    %1822 = vmatpush1.msra.mxu0 %v76
    %1823 = vmatprep.subr.mxu0 0.0
    %1824 = vmatpush1.msra.mxu0 %v77
    %1825 = vmatprep.subr.mxu0 0.0
    %1826 = vmatpush1.msra.mxu0 %v78
    %1827 = vmatprep.subr.mxu0 0.0
    %1828 = vmatpush1.msra.mxu0 0.0
    %1829 = vmatprep.subr.mxu0 0.0
    %1830 = vmatpush1.msra.mxu0 0.0
    %1831 = vmatprep.subr.mxu0 0.0
    %1832 = vmatpush1.msra.mxu0 0.0
    %1833 = vmatprep.subr.mxu0 0.0
    %1834 = vmatpush1.msra.mxu0 0.0
    %1835 = vmatprep.subr.mxu0 0.0
    %1836 = vmatpush1.msra.mxu0 0.0
    %1837 = vmatprep.subr.mxu0 0.0
    %1838 = vmatpush1.msra.mxu0 0.0
    %1839 = vmatprep.subr.mxu0 0.0
    %1840 = vmatpush1.msra.mxu0 0.0
    %1841 = vmatprep.subr.mxu0 0.0
    %1842 = vmatpush1.msra.mxu0 0.0
    %1843 = vmatprep.subr.mxu0 0.0
    %1844 = vmatpush1.msra.mxu0 0.0
    %1845 = vmatprep.subr.mxu0 0.0
    %1846 = vmatpush1.msra.mxu0 0.0
    %1847 = vmatprep.subr.mxu0 0.0
    %1848 = vmatpush1.msra.mxu0 0.0
    %1849 = vmatprep.subr.mxu0 0.0
    %1850 = vmatpush1.msra.mxu0 0.0
    %1851 = vmatprep.subr.mxu0 0.0
    %1852 = vmatpush1.msra.mxu0 0.0
    %1853 = vmatprep.subr.mxu0 0.0
    %1854 = vmatpush1.msra.mxu0 0.0
    %1855 = vmatprep.subr.mxu0 0.0
    %1856 = vmatpush1.msra.mxu0 0.0
    %1857 = vmatprep.subr.mxu0 0.0
    %1858 = vmatpush1.msra.mxu0 0.0
    %1859 = vmatprep.subr.mxu0 0.0
    %1860 = vmatpush1.msra.mxu0 0.0
    %1861 = vmatprep.subr.mxu0 0.0
    %1862 = vmatpush1.msra.mxu0 0.0
    %1863 = vmatprep.subr.mxu0 0.0
    %1864 = vmatpush1.msra.mxu0 0.0
    %1865 = vmatprep.subr.mxu0 0.0
    %1866 = vmatpush1.msra.mxu0 0.0
    %1867 = vmatprep.subr.mxu0 0.0
    %1868 = vmatpush1.msra.mxu0 0.0
    %1869 = vmatprep.subr.mxu0 0.0
    %1870 = vmatpush1.msra.mxu0 0.0
    %1871 = vmatprep.subr.mxu0 0.0
    %1872 = vmatpush1.msra.mxu0 0.0
    %1873 = vmatprep.subr.mxu0 0.0
    %1874 = vmatpush1.msra.mxu0 0.0
    %1875 = vmatprep.subr.mxu0 0.0
    %1876 = vmatpush1.msra.mxu0 0.0
    %1877 = vmatprep.subr.mxu0 0.0
    %1878 = vmatpush1.msra.mxu0 0.0
    %1879 = vmatprep.subr.mxu0 0.0
    %1880 = vmatpush1.msra.mxu0 0.0
    %1881 = vmatprep.subr.mxu0 0.0
    %1882 = vmatpush1.msra.mxu0 0.0
    %1883 = vmatprep.mubr.f32.mxu0 0.0
    %1884 = vmatmul.mubr.f32.gmra.mrb[0].mxu0 %v1817
    %v1885 = vpop.f32.mrb[0].mxu0
    %v1886 = vadd.f32 0.0, %v1885
    %v1887 = vpop.f32.mrb[0].mxu0
    %1888 = vdwg.mxu0
    %v1890 = vrot.slane %v1886, 2
    %v1892 = vadd.f32 %v253, %v1890
    %v1893 = vxor.u32 %v1892, 2147483648
    %v1894 = vmul.f32 %v1893, 1.442695
    %v1895 = vpow.pop %v1894
    %v1896 = vadd.f32 %v1895, 1.0
    %v1897 = vrcp.pop %v1896
    %v1898 = vmul.f32 1.0, %v1897
    %v1899 = vmul.f32 %v1898, 2.0
    %v1900 = vsub.f32 %v1899, 1.0
    %v1902 = vrot.slane %v1802, 7
    %v1904 = vmul.f32 %v1898, %v1902
    %1906 = vrot.lane.b32.xlu0 %v1900, 32
    %v1907 = vpop.permute.xlu0 %1906
    %v1909 = vmul.f32 %v1898, %v1907
    %1911 = vrot.lane.b32.xlu0 %v1909, 32
    %v1912 = vpop.permute.xlu0 %1911
    %v1914 = vadd.f32 %v1904, %v1912
    %v1915 = vtanh.pop %v1914
    %1917 = vrot.lane.b32.xlu0 %v1915, 32
    %v1918 = vpop.permute.xlu0 %1917
    %v1920 = vmul.f32 %v1898, %v1918
    %1922 = vrot.lane.b32.xlu0 %v1920, 64
    %v1923 = vpop.permute.xlu0 %1922
    %1925 = vst.msk [vmem:[#allocation2 + $0x8] sm:$0x40] %vm1033, %v1923
    %v1926 = vrot.slane %v1920, 6
    %1927 = vrot.lane.b32.xlu0 %v1926, 64
    %v1928 = vpop.permute.xlu0 %1927
    %v1929 = vsel %vm254, %v1928, 0
    %1931 = vmatprep.subr.mxu0 0.0
    %1932 = vmatpush1.msra.mxu0 %v75
    %1933 = vmatprep.subr.mxu0 0.0
    %1934 = vmatpush1.msra.mxu0 %v76
    %1935 = vmatprep.subr.mxu0 0.0
    %1936 = vmatpush1.msra.mxu0 %v77
    %1937 = vmatprep.subr.mxu0 0.0
    %1938 = vmatpush1.msra.mxu0 %v78
    %1939 = vmatprep.subr.mxu0 0.0
    %1940 = vmatpush1.msra.mxu0 0.0
    %1941 = vmatprep.subr.mxu0 0.0
    %1942 = vmatpush1.msra.mxu0 0.0
    %1943 = vmatprep.subr.mxu0 0.0
    %1944 = vmatpush1.msra.mxu0 0.0
    %1945 = vmatprep.subr.mxu0 0.0
    %1946 = vmatpush1.msra.mxu0 0.0
    %1947 = vmatprep.subr.mxu0 0.0
    %1948 = vmatpush1.msra.mxu0 0.0
    %1949 = vmatprep.subr.mxu0 0.0
    %1950 = vmatpush1.msra.mxu0 0.0
    %1951 = vmatprep.subr.mxu0 0.0
    %1952 = vmatpush1.msra.mxu0 0.0
    %1953 = vmatprep.subr.mxu0 0.0
    %1954 = vmatpush1.msra.mxu0 0.0
    %1955 = vmatprep.subr.mxu0 0.0
    %1956 = vmatpush1.msra.mxu0 0.0
    %1957 = vmatprep.subr.mxu0 0.0
    %1958 = vmatpush1.msra.mxu0 0.0
    %1959 = vmatprep.subr.mxu0 0.0
    %1960 = vmatpush1.msra.mxu0 0.0
    %1961 = vmatprep.subr.mxu0 0.0
    %1962 = vmatpush1.msra.mxu0 0.0
    %1963 = vmatprep.subr.mxu0 0.0
    %1964 = vmatpush1.msra.mxu0 0.0
    %1965 = vmatprep.subr.mxu0 0.0
    %1966 = vmatpush1.msra.mxu0 0.0
    %1967 = vmatprep.subr.mxu0 0.0
    %1968 = vmatpush1.msra.mxu0 0.0
    %1969 = vmatprep.subr.mxu0 0.0
    %1970 = vmatpush1.msra.mxu0 0.0
    %1971 = vmatprep.subr.mxu0 0.0
    %1972 = vmatpush1.msra.mxu0 0.0
    %1973 = vmatprep.subr.mxu0 0.0
    %1974 = vmatpush1.msra.mxu0 0.0
    %1975 = vmatprep.subr.mxu0 0.0
    %1976 = vmatpush1.msra.mxu0 0.0
    %1977 = vmatprep.subr.mxu0 0.0
    %1978 = vmatpush1.msra.mxu0 0.0
    %1979 = vmatprep.subr.mxu0 0.0
    %1980 = vmatpush1.msra.mxu0 0.0
    %1981 = vmatprep.subr.mxu0 0.0
    %1982 = vmatpush1.msra.mxu0 0.0
    %1983 = vmatprep.subr.mxu0 0.0
    %1984 = vmatpush1.msra.mxu0 0.0
    %1985 = vmatprep.subr.mxu0 0.0
    %1986 = vmatpush1.msra.mxu0 0.0
    %1987 = vmatprep.subr.mxu0 0.0
    %1988 = vmatpush1.msra.mxu0 0.0
    %1989 = vmatprep.subr.mxu0 0.0
    %1990 = vmatpush1.msra.mxu0 0.0
    %1991 = vmatprep.subr.mxu0 0.0
    %1992 = vmatpush1.msra.mxu0 0.0
    %1993 = vmatprep.subr.mxu0 0.0
    %1994 = vmatpush1.msra.mxu0 0.0
    %1995 = vmatprep.mubr.f32.mxu0 0.0
    %1996 = vmatmul.mubr.f32.gmra.mrb[0].mxu0 %v1929
    %v1997 = vpop.f32.mrb[0].mxu0
    %v1998 = vadd.f32 0.0, %v1997
    %v1999 = vpop.f32.mrb[0].mxu0
    %2000 = vdwg.mxu0
    %v2002 = vrot.slane %v1998, 1
    %v2004 = vadd.f32 %v253, %v2002
    %v2005 = vxor.u32 %v2004, 2147483648
    %v2006 = vmul.f32 %v2005, 1.442695
    %v2007 = vpow.pop %v2006
    %v2008 = vadd.f32 %v2007, 1.0
    %v2009 = vrcp.pop %v2008
    %v2010 = vmul.f32 1.0, %v2009
    %v2011 = vmul.f32 %v2010, 2.0
    %v2012 = vsub.f32 %v2011, 1.0
    %v2014 = vrot.slane %v1914, 7
    %v2016 = vmul.f32 %v2010, %v2014
    %2018 = vrot.lane.b32.xlu0 %v2012, 32
    %v2019 = vpop.permute.xlu0 %2018
    %v2021 = vmul.f32 %v2010, %v2019
    %2023 = vrot.lane.b32.xlu0 %v2021, 32
    %v2024 = vpop.permute.xlu0 %2023
    %v2026 = vadd.f32 %v2016, %v2024
    %v2027 = vtanh.pop %v2026
    %2029 = vrot.lane.b32.xlu0 %v2027, 32
    %v2030 = vpop.permute.xlu0 %2029
    %v2032 = vmul.f32 %v2010, %v2030
    %2034 = vrot.lane.b32.xlu0 %v2032, 64
    %v2035 = vpop.permute.xlu0 %2034
    %2037 = vst.msk [vmem:[#allocation2 + $0x8] sm:$0x80] %vm1146, %v2035
    %v2038 = vld [vmem:[#allocation2] sm:$0xff]
    %v2039 = vld [vmem:[#allocation2 + $0x8] sm:$0xff]
    %2040 = vmatprep.subr.mxu0 0.0
    %2041 = vmatpush1.msra.mxu0 %v2038
    %2042 = vmatprep.subr.mxu0 0.0
    %2043 = vmatpush1.msra.mxu0 %v2039
    %2044 = vmatprep.subr.mxu0 0.0
    %2045 = vmatpush1.msra.mxu0 0.0
    %2046 = vmatprep.subr.mxu0 0.0
    %2047 = vmatpush1.msra.mxu0 0.0
    %2048 = vmatprep.subr.mxu0 0.0
    %2049 = vmatpush1.msra.mxu0 0.0
    %2050 = vmatprep.subr.mxu0 0.0
    %2051 = vmatpush1.msra.mxu0 0.0
    %2052 = vmatprep.subr.mxu0 0.0
    %2053 = vmatpush1.msra.mxu0 0.0
    %2054 = vmatprep.subr.mxu0 0.0
    %2055 = vmatpush1.msra.mxu0 0.0
    %2056 = vmatprep.subr.mxu0 0.0
    %2057 = vmatpush1.msra.mxu0 0.0
    %2058 = vmatprep.subr.mxu0 0.0
    %2059 = vmatpush1.msra.mxu0 0.0
    %2060 = vmatprep.subr.mxu0 0.0
    %2061 = vmatpush1.msra.mxu0 0.0
    %2062 = vmatprep.subr.mxu0 0.0
    %2063 = vmatpush1.msra.mxu0 0.0
    %2064 = vmatprep.subr.mxu0 0.0
    %2065 = vmatpush1.msra.mxu0 0.0
    %2066 = vmatprep.subr.mxu0 0.0
    %2067 = vmatpush1.msra.mxu0 0.0
    %2068 = vmatprep.subr.mxu0 0.0
    %2069 = vmatpush1.msra.mxu0 0.0
    %2070 = vmatprep.subr.mxu0 0.0
    %2071 = vmatpush1.msra.mxu0 0.0
    %2072 = vmatprep.subr.mxu0 0.0
    %2073 = vmatpush1.msra.mxu0 0.0
    %2074 = vmatprep.subr.mxu0 0.0
    %2075 = vmatpush1.msra.mxu0 0.0
    %2076 = vmatprep.subr.mxu0 0.0
    %2077 = vmatpush1.msra.mxu0 0.0
    %2078 = vmatprep.subr.mxu0 0.0
    %2079 = vmatpush1.msra.mxu0 0.0
    %2080 = vmatprep.subr.mxu0 0.0
    %2081 = vmatpush1.msra.mxu0 0.0
    %2082 = vmatprep.subr.mxu0 0.0
    %2083 = vmatpush1.msra.mxu0 0.0
    %2084 = vmatprep.subr.mxu0 0.0
    %2085 = vmatpush1.msra.mxu0 0.0
    %2086 = vmatprep.subr.mxu0 0.0
    %2087 = vmatpush1.msra.mxu0 0.0
    %2088 = vmatprep.subr.mxu0 0.0
    %2089 = vmatpush1.msra.mxu0 0.0
    %2090 = vmatprep.subr.mxu0 0.0
    %2091 = vmatpush1.msra.mxu0 0.0
    %2092 = vmatprep.subr.mxu0 0.0
    %2093 = vmatpush1.msra.mxu0 0.0
    %2094 = vmatprep.subr.mxu0 0.0
    %2095 = vmatpush1.msra.mxu0 0.0
    %2096 = vmatprep.subr.mxu0 0.0
    %2097 = vmatpush1.msra.mxu0 0.0
    %2098 = vmatprep.subr.mxu0 0.0
    %2099 = vmatpush1.msra.mxu0 0.0
    %2100 = vmatprep.subr.mxu0 0.0
    %2101 = vmatpush1.msra.mxu0 0.0
    %2102 = vmatprep.subr.mxu0 0.0
    %2103 = vmatpush1.msra.mxu0 0.0
    %2104 = vmatprep.mubr.f32.mxu0 0.0
    %2105 = vmatmul.mubr.f32.gmra.mrb[0].mxu0 %v170
    %v2106 = vpop.f32.mrb[0].mxu0
    %v2107 = vadd.f32 0.0, %v2106
    %v2108 = vpop.f32.mrb[0].mxu0
    %2109 = vmatprep.mubr.f32.mxu0 0.0
    %2110 = vmatmul.mubr.f32.gmra.mrb[0].mxu0 %v173
    %v2111 = vpop.f32.mrb[0].mxu0
    %v2112 = vadd.f32 0.0, %v2111
    %v2113 = vpop.f32.mrb[0].mxu0
    %2114 = vdwg.mxu0
    %v2115 = vsel %vm60, 1, 0
    %vm2116 = vcmp.eq.s32.totalorder %v2115, 1
    %v2117 = vsel %vm2116, %v2038, %v2107
    %v2118 = vsel %vm2116, %v2039, %v2112
    %v2119 = vld [vmem:[%s5] sm:$0xff]
    %v2120 = vld [vmem:[%s5 + $0x8] sm:$0xff]
    %v2121 = vld [vmem:[%s5 + $0x10] sm:$0xff]
    %v2122 = vld [vmem:[%s5 + $0x18] sm:$0xff]
    %v2123 = vld [vmem:[%s6] sm:$0xff]
    %v2124 = vld [vmem:[%s6 + $0x8] sm:$0xff]
    %v2125 = vld [vmem:[%s6 + $0x10] sm:$0xff]
    %v2126 = vld [vmem:[%s6 + $0x18] sm:$0xff]
    %v2127 = vld [vmem:[%s7] sm:$0x1]
    %v2129 = vlaneseq
    %v2130 = vshrl.u32 %v2129, 7
    %v2131 = vsub.s32 0, %v2130
    %v2132 = vrot.slane %v2127, %v2131
    %v2135 = vsel %vm254, %v2117, 0
    %v2138 = vsel %vm254, %v2118, 0
    %2140 = vmatprep.subr.mxu0 0.0
    %2141 = vmatpush1.msra.mxu0 %v2119
    %2142 = vmatprep.subr.mxu0 0.0
    %2143 = vmatpush1.msra.mxu0 %v2120
    %2144 = vmatprep.subr.mxu0 0.0
    %2145 = vmatpush1.msra.mxu0 %v2121
    %2146 = vmatprep.subr.mxu0 0.0
    %2147 = vmatpush1.msra.mxu0 %v2122
    %2148 = vmatprep.subr.mxu0 0.0
    %2149 = vmatpush1.msra.mxu0 0.0
    %2150 = vmatprep.subr.mxu0 0.0
    %2151 = vmatpush1.msra.mxu0 0.0
    %2152 = vmatprep.subr.mxu0 0.0
    %2153 = vmatpush1.msra.mxu0 0.0
    %2154 = vmatprep.subr.mxu0 0.0
    %2155 = vmatpush1.msra.mxu0 0.0
    %2156 = vmatprep.subr.mxu0 0.0
    %2157 = vmatpush1.msra.mxu0 0.0
    %2158 = vmatprep.subr.mxu0 0.0
    %2159 = vmatpush1.msra.mxu0 0.0
    %2160 = vmatprep.subr.mxu0 0.0
    %2161 = vmatpush1.msra.mxu0 0.0
    %2162 = vmatprep.subr.mxu0 0.0
    %2163 = vmatpush1.msra.mxu0 0.0
    %2164 = vmatprep.subr.mxu0 0.0
    %2165 = vmatpush1.msra.mxu0 0.0
    %2166 = vmatprep.subr.mxu0 0.0
    %2167 = vmatpush1.msra.mxu0 0.0
    %2168 = vmatprep.subr.mxu0 0.0
    %2169 = vmatpush1.msra.mxu0 0.0
    %2170 = vmatprep.subr.mxu0 0.0
    %2171 = vmatpush1.msra.mxu0 0.0
    %2172 = vmatprep.subr.mxu0 0.0
    %2173 = vmatpush1.msra.mxu0 0.0
    %2174 = vmatprep.subr.mxu0 0.0
    %2175 = vmatpush1.msra.mxu0 0.0
    %2176 = vmatprep.subr.mxu0 0.0
    %2177 = vmatpush1.msra.mxu0 0.0
    %2178 = vmatprep.subr.mxu0 0.0
    %2179 = vmatpush1.msra.mxu0 0.0
    %2180 = vmatprep.subr.mxu0 0.0
    %2181 = vmatpush1.msra.mxu0 0.0
    %2182 = vmatprep.subr.mxu0 0.0
    %2183 = vmatpush1.msra.mxu0 0.0
    %2184 = vmatprep.subr.mxu0 0.0
    %2185 = vmatpush1.msra.mxu0 0.0
    %2186 = vmatprep.subr.mxu0 0.0
    %2187 = vmatpush1.msra.mxu0 0.0
    %2188 = vmatprep.subr.mxu0 0.0
    %2189 = vmatpush1.msra.mxu0 0.0
    %2190 = vmatprep.subr.mxu0 0.0
    %2191 = vmatpush1.msra.mxu0 0.0
    %2192 = vmatprep.subr.mxu0 0.0
    %2193 = vmatpush1.msra.mxu0 0.0
    %2194 = vmatprep.subr.mxu0 0.0
    %2195 = vmatpush1.msra.mxu0 0.0
    %2196 = vmatprep.subr.mxu0 0.0
    %2197 = vmatpush1.msra.mxu0 0.0
    %2198 = vmatprep.subr.mxu0 0.0
    %2199 = vmatpush1.msra.mxu0 0.0
    %2200 = vmatprep.subr.mxu0 0.0
    %2201 = vmatpush1.msra.mxu0 0.0
    %2202 = vmatprep.subr.mxu0 0.0
    %2203 = vmatpush1.msra.mxu0 0.0
    %2204 = vmatprep.mubr.f32.mxu0 0.0
    %2205 = vmatmul.mubr.f32.gmra.mrb[0].mxu0 %v2135
    %v2206 = vpop.f32.mrb[0].mxu0
    %v2207 = vadd.f32 %v2132, %v2206
    %v2208 = vpop.f32.mrb[0].mxu0
    %2209 = vmatprep.mubr.f32.mxu0 0.0
    %2210 = vmatmul.mubr.f32.gmra.mrb[0].mxu0 %v2138
    %v2211 = vpop.f32.mrb[0].mxu0
    %v2212 = vadd.f32 %v2132, %v2211
    %v2213 = vpop.f32.mrb[0].mxu0
    %2214 = vdwg.mxu0
    %2215 = vmatprep.subr.mxu0 0.0
    %2216 = vmatpush1.msra.mxu0 %v2207
    %2217 = vmatprep.subr.mxu0 0.0
    %2218 = vmatpush1.msra.mxu0 %v2212
    %2219 = vmatprep.subr.mxu0 0.0
    %2220 = vmatpush1.msra.mxu0 0.0
    %2221 = vmatprep.subr.mxu0 0.0
    %2222 = vmatpush1.msra.mxu0 0.0
    %2223 = vmatprep.subr.mxu0 0.0
    %2224 = vmatpush1.msra.mxu0 0.0
    %2225 = vmatprep.subr.mxu0 0.0
    %2226 = vmatpush1.msra.mxu0 0.0
    %2227 = vmatprep.subr.mxu0 0.0
    %2228 = vmatpush1.msra.mxu0 0.0
    %2229 = vmatprep.subr.mxu0 0.0
    %2230 = vmatpush1.msra.mxu0 0.0
    %2231 = vmatprep.subr.mxu0 0.0
    %2232 = vmatpush1.msra.mxu0 0.0
    %2233 = vmatprep.subr.mxu0 0.0
    %2234 = vmatpush1.msra.mxu0 0.0
    %2235 = vmatprep.subr.mxu0 0.0
    %2236 = vmatpush1.msra.mxu0 0.0
    %2237 = vmatprep.subr.mxu0 0.0
    %2238 = vmatpush1.msra.mxu0 0.0
    %2239 = vmatprep.subr.mxu0 0.0
    %2240 = vmatpush1.msra.mxu0 0.0
    %2241 = vmatprep.subr.mxu0 0.0
    %2242 = vmatpush1.msra.mxu0 0.0
    %2243 = vmatprep.subr.mxu0 0.0
    %2244 = vmatpush1.msra.mxu0 0.0
    %2245 = vmatprep.subr.mxu0 0.0
    %2246 = vmatpush1.msra.mxu0 0.0
    %2247 = vmatprep.subr.mxu0 0.0
    %2248 = vmatpush1.msra.mxu0 0.0
    %2249 = vmatprep.subr.mxu0 0.0
    %2250 = vmatpush1.msra.mxu0 0.0
    %2251 = vmatprep.subr.mxu0 0.0
    %2252 = vmatpush1.msra.mxu0 0.0
    %2253 = vmatprep.subr.mxu0 0.0
    %2254 = vmatpush1.msra.mxu0 0.0
    %2255 = vmatprep.subr.mxu0 0.0
    %2256 = vmatpush1.msra.mxu0 0.0
    %2257 = vmatprep.subr.mxu0 0.0
    %2258 = vmatpush1.msra.mxu0 0.0
    %2259 = vmatprep.subr.mxu0 0.0
    %2260 = vmatpush1.msra.mxu0 0.0
    %2261 = vmatprep.subr.mxu0 0.0
    %2262 = vmatpush1.msra.mxu0 0.0
    %2263 = vmatprep.subr.mxu0 0.0
    %2264 = vmatpush1.msra.mxu0 0.0
    %2265 = vmatprep.subr.mxu0 0.0
    %2266 = vmatpush1.msra.mxu0 0.0
    %2267 = vmatprep.subr.mxu0 0.0
    %2268 = vmatpush1.msra.mxu0 0.0
    %2269 = vmatprep.subr.mxu0 0.0
    %2270 = vmatpush1.msra.mxu0 0.0
    %2271 = vmatprep.subr.mxu0 0.0
    %2272 = vmatpush1.msra.mxu0 0.0
    %2273 = vmatprep.subr.mxu0 0.0
    %2274 = vmatpush1.msra.mxu0 0.0
    %2275 = vmatprep.subr.mxu0 0.0
    %2276 = vmatpush1.msra.mxu0 0.0
    %2277 = vmatprep.subr.mxu0 0.0
    %2278 = vmatpush1.msra.mxu0 0.0
    %2279 = vmatprep.mubr.f32.mxu0 0.0
    %2280 = vmatmul.mubr.f32.gmra.mrb[0].mxu0 %v170
    %v2281 = vpop.f32.mrb[0].mxu0
    %v2282 = vadd.f32 0.0, %v2281
    %v2283 = vpop.f32.mrb[0].mxu0
    %2284 = vmatprep.mubr.f32.mxu0 0.0
    %2285 = vmatmul.mubr.f32.gmra.mrb[0].mxu0 %v173
    %v2286 = vpop.f32.mrb[0].mxu0
    %v2287 = vadd.f32 0.0, %v2286
    %v2288 = vpop.f32.mrb[0].mxu0
    %2289 = vdwg.mxu0
    %v2290 = vsel %vm251, %v2207, %v2282
    %v2291 = vsel %vm251, %v2212, %v2287
    %2292 = vmatprep.subr.mxu0 0.0
    %2293 = vmatpush1.msra.mxu0 %v2123
    %2294 = vmatprep.subr.mxu0 0.0
    %2295 = vmatpush1.msra.mxu0 %v2124
    %2296 = vmatprep.subr.mxu0 0.0
    %2297 = vmatpush1.msra.mxu0 %v2125
    %2298 = vmatprep.subr.mxu0 0.0
    %2299 = vmatpush1.msra.mxu0 %v2126
    %2300 = vmatprep.subr.mxu0 0.0
    %2301 = vmatpush1.msra.mxu0 0.0
    %2302 = vmatprep.subr.mxu0 0.0
    %2303 = vmatpush1.msra.mxu0 0.0
    %2304 = vmatprep.subr.mxu0 0.0
    %2305 = vmatpush1.msra.mxu0 0.0
    %2306 = vmatprep.subr.mxu0 0.0
    %2307 = vmatpush1.msra.mxu0 0.0
    %2308 = vmatprep.subr.mxu0 0.0
    %2309 = vmatpush1.msra.mxu0 0.0
    %2310 = vmatprep.subr.mxu0 0.0
    %2311 = vmatpush1.msra.mxu0 0.0
    %2312 = vmatprep.subr.mxu0 0.0
    %2313 = vmatpush1.msra.mxu0 0.0
    %2314 = vmatprep.subr.mxu0 0.0
    %2315 = vmatpush1.msra.mxu0 0.0
    %2316 = vmatprep.subr.mxu0 0.0
    %2317 = vmatpush1.msra.mxu0 0.0
    %2318 = vmatprep.subr.mxu0 0.0
    %2319 = vmatpush1.msra.mxu0 0.0
    %2320 = vmatprep.subr.mxu0 0.0
    %2321 = vmatpush1.msra.mxu0 0.0
    %2322 = vmatprep.subr.mxu0 0.0
    %2323 = vmatpush1.msra.mxu0 0.0
    %2324 = vmatprep.subr.mxu0 0.0
    %2325 = vmatpush1.msra.mxu0 0.0
    %2326 = vmatprep.subr.mxu0 0.0
    %2327 = vmatpush1.msra.mxu0 0.0
    %2328 = vmatprep.subr.mxu0 0.0
    %2329 = vmatpush1.msra.mxu0 0.0
    %2330 = vmatprep.subr.mxu0 0.0
    %2331 = vmatpush1.msra.mxu0 0.0
    %2332 = vmatprep.subr.mxu0 0.0
    %2333 = vmatpush1.msra.mxu0 0.0
    %2334 = vmatprep.subr.mxu0 0.0
    %2335 = vmatpush1.msra.mxu0 0.0
    %2336 = vmatprep.subr.mxu0 0.0
    %2337 = vmatpush1.msra.mxu0 0.0
    %2338 = vmatprep.subr.mxu0 0.0
    %2339 = vmatpush1.msra.mxu0 0.0
    %2340 = vmatprep.subr.mxu0 0.0
    %2341 = vmatpush1.msra.mxu0 0.0
    %2342 = vmatprep.subr.mxu0 0.0
    %2343 = vmatpush1.msra.mxu0 0.0
    %2344 = vmatprep.subr.mxu0 0.0
    %2345 = vmatpush1.msra.mxu0 0.0
    %2346 = vmatprep.subr.mxu0 0.0
    %2347 = vmatpush1.msra.mxu0 0.0
    %2348 = vmatprep.subr.mxu0 0.0
    %2349 = vmatpush1.msra.mxu0 0.0
    %2350 = vmatprep.subr.mxu0 0.0
    %2351 = vmatpush1.msra.mxu0 0.0
    %2352 = vmatprep.subr.mxu0 0.0
    %2353 = vmatpush1.msra.mxu0 0.0
    %2354 = vmatprep.subr.mxu0 0.0
    %2355 = vmatpush1.msra.mxu0 0.0
    %2356 = vmatprep.mubr.f32.mxu0 0.0
    %2357 = vmatmul.mubr.f32.gmra.mrb[0].mxu0 %v256
    %v2358 = vpop.f32.mrb[0].mxu0
    %v2359 = vadd.f32 0.0, %v2358
    %v2360 = vpop.f32.mrb[0].mxu0
    %2361 = vdwg.mxu0
    %v2362 = vadd.f32 %v2290, %v2359
    %v2363 = vxor.u32 %v2362, 2147483648
    %v2364 = vmul.f32 %v2363, 1.442695
    %v2365 = vpow.pop %v2364
    %v2366 = vadd.f32 %v2365, 1.0
    %v2367 = vrcp.pop %v2366
    %v2368 = vmul.f32 1.0, %v2367
    %v2369 = vmul.f32 %v2368, 2.0
    %v2370 = vsub.f32 %v2369, 1.0
    %v2371 = vmul.f32 %v2368, 0.0
    %2373 = vrot.lane.b32.xlu0 %v2370, 32
    %v2374 = vpop.permute.xlu0 %2373
    %v2376 = vmul.f32 %v2368, %v2374
    %2378 = vrot.lane.b32.xlu0 %v2376, 32
    %v2379 = vpop.permute.xlu0 %2378
    %v2381 = vadd.f32 %v2371, %v2379
    %v2382 = vtanh.pop %v2381
    %2384 = vrot.lane.b32.xlu0 %v2382, 32
    %v2385 = vpop.permute.xlu0 %2384
    %v2387 = vmul.f32 %v2368, %v2385
    %2389 = vrot.lane.b32.xlu0 %v2387, 64
    %v2390 = vpop.permute.xlu0 %2389
    %2392 = vst.msk [vmem:[#allocation2] sm:$0x1] %vm358, %v2390
    %v2393 = vsel %vm254, %v2390, 0
    %2395 = vmatprep.subr.mxu0 0.0
    %2396 = vmatpush1.msra.mxu0 %v2123
    %2397 = vmatprep.subr.mxu0 0.0
    %2398 = vmatpush1.msra.mxu0 %v2124
    %2399 = vmatprep.subr.mxu0 0.0
    %2400 = vmatpush1.msra.mxu0 %v2125
    %2401 = vmatprep.subr.mxu0 0.0
    %2402 = vmatpush1.msra.mxu0 %v2126
    %2403 = vmatprep.subr.mxu0 0.0
    %2404 = vmatpush1.msra.mxu0 0.0
    %2405 = vmatprep.subr.mxu0 0.0
    %2406 = vmatpush1.msra.mxu0 0.0
    %2407 = vmatprep.subr.mxu0 0.0
    %2408 = vmatpush1.msra.mxu0 0.0
    %2409 = vmatprep.subr.mxu0 0.0
    %2410 = vmatpush1.msra.mxu0 0.0
    %2411 = vmatprep.subr.mxu0 0.0
    %2412 = vmatpush1.msra.mxu0 0.0
    %2413 = vmatprep.subr.mxu0 0.0
    %2414 = vmatpush1.msra.mxu0 0.0
    %2415 = vmatprep.subr.mxu0 0.0
    %2416 = vmatpush1.msra.mxu0 0.0
    %2417 = vmatprep.subr.mxu0 0.0
    %2418 = vmatpush1.msra.mxu0 0.0
    %2419 = vmatprep.subr.mxu0 0.0
    %2420 = vmatpush1.msra.mxu0 0.0
    %2421 = vmatprep.subr.mxu0 0.0
    %2422 = vmatpush1.msra.mxu0 0.0
    %2423 = vmatprep.subr.mxu0 0.0
    %2424 = vmatpush1.msra.mxu0 0.0
    %2425 = vmatprep.subr.mxu0 0.0
    %2426 = vmatpush1.msra.mxu0 0.0
    %2427 = vmatprep.subr.mxu0 0.0
    %2428 = vmatpush1.msra.mxu0 0.0
    %2429 = vmatprep.subr.mxu0 0.0
    %2430 = vmatpush1.msra.mxu0 0.0
    %2431 = vmatprep.subr.mxu0 0.0
    %2432 = vmatpush1.msra.mxu0 0.0
    %2433 = vmatprep.subr.mxu0 0.0
    %2434 = vmatpush1.msra.mxu0 0.0
    %2435 = vmatprep.subr.mxu0 0.0
    %2436 = vmatpush1.msra.mxu0 0.0
    %2437 = vmatprep.subr.mxu0 0.0
    %2438 = vmatpush1.msra.mxu0 0.0
    %2439 = vmatprep.subr.mxu0 0.0
    %2440 = vmatpush1.msra.mxu0 0.0
    %2441 = vmatprep.subr.mxu0 0.0
    %2442 = vmatpush1.msra.mxu0 0.0
    %2443 = vmatprep.subr.mxu0 0.0
    %2444 = vmatpush1.msra.mxu0 0.0
    %2445 = vmatprep.subr.mxu0 0.0
    %2446 = vmatpush1.msra.mxu0 0.0
    %2447 = vmatprep.subr.mxu0 0.0
    %2448 = vmatpush1.msra.mxu0 0.0
    %2449 = vmatprep.subr.mxu0 0.0
    %2450 = vmatpush1.msra.mxu0 0.0
    %2451 = vmatprep.subr.mxu0 0.0
    %2452 = vmatpush1.msra.mxu0 0.0
    %2453 = vmatprep.subr.mxu0 0.0
    %2454 = vmatpush1.msra.mxu0 0.0
    %2455 = vmatprep.subr.mxu0 0.0
    %2456 = vmatpush1.msra.mxu0 0.0
    %2457 = vmatprep.subr.mxu0 0.0
    %2458 = vmatpush1.msra.mxu0 0.0
    %2459 = vmatprep.mubr.f32.mxu0 0.0
    %2460 = vmatmul.mubr.f32.gmra.mrb[0].mxu0 %v2393
    %v2461 = vpop.f32.mrb[0].mxu0
    %v2462 = vadd.f32 0.0, %v2461
    %v2463 = vpop.f32.mrb[0].mxu0
    %2464 = vdwg.mxu0
    %v2466 = vrot.slane %v2462, 7
    %v2468 = vadd.f32 %v2290, %v2466
    %v2469 = vxor.u32 %v2468, 2147483648
    %v2470 = vmul.f32 %v2469, 1.442695
    %v2471 = vpow.pop %v2470
    %v2472 = vadd.f32 %v2471, 1.0
    %v2473 = vrcp.pop %v2472
    %v2474 = vmul.f32 1.0, %v2473
    %v2475 = vmul.f32 %v2474, 2.0
    %v2476 = vsub.f32 %v2475, 1.0
    %v2478 = vrot.slane %v2381, 7
    %v2480 = vmul.f32 %v2474, %v2478
    %2482 = vrot.lane.b32.xlu0 %v2476, 32
    %v2483 = vpop.permute.xlu0 %2482
    %v2485 = vmul.f32 %v2474, %v2483
    %2487 = vrot.lane.b32.xlu0 %v2485, 32
    %v2488 = vpop.permute.xlu0 %2487
    %v2490 = vadd.f32 %v2480, %v2488
    %v2491 = vtanh.pop %v2490
    %2493 = vrot.lane.b32.xlu0 %v2491, 32
    %v2494 = vpop.permute.xlu0 %2493
    %v2496 = vmul.f32 %v2474, %v2494
    %2498 = vrot.lane.b32.xlu0 %v2496, 64
    %v2499 = vpop.permute.xlu0 %2498
    %2501 = vst.msk [vmem:[#allocation2] sm:$0x2] %vm468, %v2499
    %v2502 = vrot.slane %v2496, 1
    %2503 = vrot.lane.b32.xlu0 %v2502, 64
    %v2504 = vpop.permute.xlu0 %2503
    %v2505 = vsel %vm254, %v2504, 0
    %2507 = vmatprep.subr.mxu0 0.0
    %2508 = vmatpush1.msra.mxu0 %v2123
    %2509 = vmatprep.subr.mxu0 0.0
    %2510 = vmatpush1.msra.mxu0 %v2124
    %2511 = vmatprep.subr.mxu0 0.0
    %2512 = vmatpush1.msra.mxu0 %v2125
    %2513 = vmatprep.subr.mxu0 0.0
    %2514 = vmatpush1.msra.mxu0 %v2126
    %2515 = vmatprep.subr.mxu0 0.0
    %2516 = vmatpush1.msra.mxu0 0.0
    %2517 = vmatprep.subr.mxu0 0.0
    %2518 = vmatpush1.msra.mxu0 0.0
    %2519 = vmatprep.subr.mxu0 0.0
    %2520 = vmatpush1.msra.mxu0 0.0
    %2521 = vmatprep.subr.mxu0 0.0
    %2522 = vmatpush1.msra.mxu0 0.0
    %2523 = vmatprep.subr.mxu0 0.0
    %2524 = vmatpush1.msra.mxu0 0.0
    %2525 = vmatprep.subr.mxu0 0.0
    %2526 = vmatpush1.msra.mxu0 0.0
    %2527 = vmatprep.subr.mxu0 0.0
    %2528 = vmatpush1.msra.mxu0 0.0
    %2529 = vmatprep.subr.mxu0 0.0
    %2530 = vmatpush1.msra.mxu0 0.0
    %2531 = vmatprep.subr.mxu0 0.0
    %2532 = vmatpush1.msra.mxu0 0.0
    %2533 = vmatprep.subr.mxu0 0.0
    %2534 = vmatpush1.msra.mxu0 0.0
    %2535 = vmatprep.subr.mxu0 0.0
    %2536 = vmatpush1.msra.mxu0 0.0
    %2537 = vmatprep.subr.mxu0 0.0
    %2538 = vmatpush1.msra.mxu0 0.0
    %2539 = vmatprep.subr.mxu0 0.0
    %2540 = vmatpush1.msra.mxu0 0.0
    %2541 = vmatprep.subr.mxu0 0.0
    %2542 = vmatpush1.msra.mxu0 0.0
    %2543 = vmatprep.subr.mxu0 0.0
    %2544 = vmatpush1.msra.mxu0 0.0
    %2545 = vmatprep.subr.mxu0 0.0
    %2546 = vmatpush1.msra.mxu0 0.0
    %2547 = vmatprep.subr.mxu0 0.0
    %2548 = vmatpush1.msra.mxu0 0.0
    %2549 = vmatprep.subr.mxu0 0.0
    %2550 = vmatpush1.msra.mxu0 0.0
    %2551 = vmatprep.subr.mxu0 0.0
    %2552 = vmatpush1.msra.mxu0 0.0
    %2553 = vmatprep.subr.mxu0 0.0
    %2554 = vmatpush1.msra.mxu0 0.0
    %2555 = vmatprep.subr.mxu0 0.0
    %2556 = vmatpush1.msra.mxu0 0.0
    %2557 = vmatprep.subr.mxu0 0.0
    %2558 = vmatpush1.msra.mxu0 0.0
    %2559 = vmatprep.subr.mxu0 0.0
    %2560 = vmatpush1.msra.mxu0 0.0
    %2561 = vmatprep.subr.mxu0 0.0
    %2562 = vmatpush1.msra.mxu0 0.0
    %2563 = vmatprep.subr.mxu0 0.0
    %2564 = vmatpush1.msra.mxu0 0.0
    %2565 = vmatprep.subr.mxu0 0.0
    %2566 = vmatpush1.msra.mxu0 0.0
    %2567 = vmatprep.subr.mxu0 0.0
    %2568 = vmatpush1.msra.mxu0 0.0
    %2569 = vmatprep.subr.mxu0 0.0
    %2570 = vmatpush1.msra.mxu0 0.0
    %2571 = vmatprep.mubr.f32.mxu0 0.0
    %2572 = vmatmul.mubr.f32.gmra.mrb[0].mxu0 %v2505
    %v2573 = vpop.f32.mrb[0].mxu0
    %v2574 = vadd.f32 0.0, %v2573
    %v2575 = vpop.f32.mrb[0].mxu0
    %2576 = vdwg.mxu0
    %v2578 = vrot.slane %v2574, 6
    %v2580 = vadd.f32 %v2290, %v2578
    %v2581 = vxor.u32 %v2580, 2147483648
    %v2582 = vmul.f32 %v2581, 1.442695
    %v2583 = vpow.pop %v2582
    %v2584 = vadd.f32 %v2583, 1.0
    %v2585 = vrcp.pop %v2584
    %v2586 = vmul.f32 1.0, %v2585
    %v2587 = vmul.f32 %v2586, 2.0
    %v2588 = vsub.f32 %v2587, 1.0
    %v2590 = vrot.slane %v2490, 7
    %v2592 = vmul.f32 %v2586, %v2590
    %2594 = vrot.lane.b32.xlu0 %v2588, 32
    %v2595 = vpop.permute.xlu0 %2594
    %v2597 = vmul.f32 %v2586, %v2595
    %2599 = vrot.lane.b32.xlu0 %v2597, 32
    %v2600 = vpop.permute.xlu0 %2599
    %v2602 = vadd.f32 %v2592, %v2600
    %v2603 = vtanh.pop %v2602
    %2605 = vrot.lane.b32.xlu0 %v2603, 32
    %v2606 = vpop.permute.xlu0 %2605
    %v2608 = vmul.f32 %v2586, %v2606
    %2610 = vrot.lane.b32.xlu0 %v2608, 64
    %v2611 = vpop.permute.xlu0 %2610
    %2613 = vst.msk [vmem:[#allocation2] sm:$0x4] %vm581, %v2611
    %v2614 = vrot.slane %v2608, 2
    %2615 = vrot.lane.b32.xlu0 %v2614, 64
    %v2616 = vpop.permute.xlu0 %2615
    %v2617 = vsel %vm254, %v2616, 0
    %2619 = vmatprep.subr.mxu0 0.0
    %2620 = vmatpush1.msra.mxu0 %v2123
    %2621 = vmatprep.subr.mxu0 0.0
    %2622 = vmatpush1.msra.mxu0 %v2124
    %2623 = vmatprep.subr.mxu0 0.0
    %2624 = vmatpush1.msra.mxu0 %v2125
    %2625 = vmatprep.subr.mxu0 0.0
    %2626 = vmatpush1.msra.mxu0 %v2126
    %2627 = vmatprep.subr.mxu0 0.0
    %2628 = vmatpush1.msra.mxu0 0.0
    %2629 = vmatprep.subr.mxu0 0.0
    %2630 = vmatpush1.msra.mxu0 0.0
    %2631 = vmatprep.subr.mxu0 0.0
    %2632 = vmatpush1.msra.mxu0 0.0
    %2633 = vmatprep.subr.mxu0 0.0
    %2634 = vmatpush1.msra.mxu0 0.0
    %2635 = vmatprep.subr.mxu0 0.0
    %2636 = vmatpush1.msra.mxu0 0.0
    %2637 = vmatprep.subr.mxu0 0.0
    %2638 = vmatpush1.msra.mxu0 0.0
    %2639 = vmatprep.subr.mxu0 0.0
    %2640 = vmatpush1.msra.mxu0 0.0
    %2641 = vmatprep.subr.mxu0 0.0
    %2642 = vmatpush1.msra.mxu0 0.0
    %2643 = vmatprep.subr.mxu0 0.0
    %2644 = vmatpush1.msra.mxu0 0.0
    %2645 = vmatprep.subr.mxu0 0.0
    %2646 = vmatpush1.msra.mxu0 0.0
    %2647 = vmatprep.subr.mxu0 0.0
    %2648 = vmatpush1.msra.mxu0 0.0
    %2649 = vmatprep.subr.mxu0 0.0
    %2650 = vmatpush1.msra.mxu0 0.0
    %2651 = vmatprep.subr.mxu0 0.0
    %2652 = vmatpush1.msra.mxu0 0.0
    %2653 = vmatprep.subr.mxu0 0.0
    %2654 = vmatpush1.msra.mxu0 0.0
    %2655 = vmatprep.subr.mxu0 0.0
    %2656 = vmatpush1.msra.mxu0 0.0
    %2657 = vmatprep.subr.mxu0 0.0
    %2658 = vmatpush1.msra.mxu0 0.0
    %2659 = vmatprep.subr.mxu0 0.0
    %2660 = vmatpush1.msra.mxu0 0.0
    %2661 = vmatprep.subr.mxu0 0.0
    %2662 = vmatpush1.msra.mxu0 0.0
    %2663 = vmatprep.subr.mxu0 0.0
    %2664 = vmatpush1.msra.mxu0 0.0
    %2665 = vmatprep.subr.mxu0 0.0
    %2666 = vmatpush1.msra.mxu0 0.0
    %2667 = vmatprep.subr.mxu0 0.0
    %2668 = vmatpush1.msra.mxu0 0.0
    %2669 = vmatprep.subr.mxu0 0.0
    %2670 = vmatpush1.msra.mxu0 0.0
    %2671 = vmatprep.subr.mxu0 0.0
    %2672 = vmatpush1.msra.mxu0 0.0
    %2673 = vmatprep.subr.mxu0 0.0
    %2674 = vmatpush1.msra.mxu0 0.0
    %2675 = vmatprep.subr.mxu0 0.0
    %2676 = vmatpush1.msra.mxu0 0.0
    %2677 = vmatprep.subr.mxu0 0.0
    %2678 = vmatpush1.msra.mxu0 0.0
    %2679 = vmatprep.subr.mxu0 0.0
    %2680 = vmatpush1.msra.mxu0 0.0
    %2681 = vmatprep.subr.mxu0 0.0
    %2682 = vmatpush1.msra.mxu0 0.0
    %2683 = vmatprep.mubr.f32.mxu0 0.0
    %2684 = vmatmul.mubr.f32.gmra.mrb[0].mxu0 %v2617
    %v2685 = vpop.f32.mrb[0].mxu0
    %v2686 = vadd.f32 0.0, %v2685
    %v2687 = vpop.f32.mrb[0].mxu0
    %2688 = vdwg.mxu0
    %v2690 = vrot.slane %v2686, 5
    %v2692 = vadd.f32 %v2290, %v2690
    %v2693 = vxor.u32 %v2692, 2147483648
    %v2694 = vmul.f32 %v2693, 1.442695
    %v2695 = vpow.pop %v2694
    %v2696 = vadd.f32 %v2695, 1.0
    %v2697 = vrcp.pop %v2696
    %v2698 = vmul.f32 1.0, %v2697
    %v2699 = vmul.f32 %v2698, 2.0
    %v2700 = vsub.f32 %v2699, 1.0
    %v2702 = vrot.slane %v2602, 7
    %v2704 = vmul.f32 %v2698, %v2702
    %2706 = vrot.lane.b32.xlu0 %v2700, 32
    %v2707 = vpop.permute.xlu0 %2706
    %v2709 = vmul.f32 %v2698, %v2707
    %2711 = vrot.lane.b32.xlu0 %v2709, 32
    %v2712 = vpop.permute.xlu0 %2711
    %v2714 = vadd.f32 %v2704, %v2712
    %v2715 = vtanh.pop %v2714
    %2717 = vrot.lane.b32.xlu0 %v2715, 32
    %v2718 = vpop.permute.xlu0 %2717
    %v2720 = vmul.f32 %v2698, %v2718
    %2722 = vrot.lane.b32.xlu0 %v2720, 64
    %v2723 = vpop.permute.xlu0 %2722
    %2725 = vst.msk [vmem:[#allocation2] sm:$0x8] %vm694, %v2723
    %v2726 = vrot.slane %v2720, 3
    %2727 = vrot.lane.b32.xlu0 %v2726, 64
    %v2728 = vpop.permute.xlu0 %2727
    %v2729 = vsel %vm254, %v2728, 0
    %2731 = vmatprep.subr.mxu0 0.0
    %2732 = vmatpush1.msra.mxu0 %v2123
    %2733 = vmatprep.subr.mxu0 0.0
    %2734 = vmatpush1.msra.mxu0 %v2124
    %2735 = vmatprep.subr.mxu0 0.0
    %2736 = vmatpush1.msra.mxu0 %v2125
    %2737 = vmatprep.subr.mxu0 0.0
    %2738 = vmatpush1.msra.mxu0 %v2126
    %2739 = vmatprep.subr.mxu0 0.0
    %2740 = vmatpush1.msra.mxu0 0.0
    %2741 = vmatprep.subr.mxu0 0.0
    %2742 = vmatpush1.msra.mxu0 0.0
    %2743 = vmatprep.subr.mxu0 0.0
    %2744 = vmatpush1.msra.mxu0 0.0
    %2745 = vmatprep.subr.mxu0 0.0
    %2746 = vmatpush1.msra.mxu0 0.0
    %2747 = vmatprep.subr.mxu0 0.0
    %2748 = vmatpush1.msra.mxu0 0.0
    %2749 = vmatprep.subr.mxu0 0.0
    %2750 = vmatpush1.msra.mxu0 0.0
    %2751 = vmatprep.subr.mxu0 0.0
    %2752 = vmatpush1.msra.mxu0 0.0
    %2753 = vmatprep.subr.mxu0 0.0
    %2754 = vmatpush1.msra.mxu0 0.0
    %2755 = vmatprep.subr.mxu0 0.0
    %2756 = vmatpush1.msra.mxu0 0.0
    %2757 = vmatprep.subr.mxu0 0.0
    %2758 = vmatpush1.msra.mxu0 0.0
    %2759 = vmatprep.subr.mxu0 0.0
    %2760 = vmatpush1.msra.mxu0 0.0
    %2761 = vmatprep.subr.mxu0 0.0
    %2762 = vmatpush1.msra.mxu0 0.0
    %2763 = vmatprep.subr.mxu0 0.0
    %2764 = vmatpush1.msra.mxu0 0.0
    %2765 = vmatprep.subr.mxu0 0.0
    %2766 = vmatpush1.msra.mxu0 0.0
    %2767 = vmatprep.subr.mxu0 0.0
    %2768 = vmatpush1.msra.mxu0 0.0
    %2769 = vmatprep.subr.mxu0 0.0
    %2770 = vmatpush1.msra.mxu0 0.0
    %2771 = vmatprep.subr.mxu0 0.0
    %2772 = vmatpush1.msra.mxu0 0.0
    %2773 = vmatprep.subr.mxu0 0.0
    %2774 = vmatpush1.msra.mxu0 0.0
    %2775 = vmatprep.subr.mxu0 0.0
    %2776 = vmatpush1.msra.mxu0 0.0
    %2777 = vmatprep.subr.mxu0 0.0
    %2778 = vmatpush1.msra.mxu0 0.0
    %2779 = vmatprep.subr.mxu0 0.0
    %2780 = vmatpush1.msra.mxu0 0.0
    %2781 = vmatprep.subr.mxu0 0.0
    %2782 = vmatpush1.msra.mxu0 0.0
    %2783 = vmatprep.subr.mxu0 0.0
    %2784 = vmatpush1.msra.mxu0 0.0
    %2785 = vmatprep.subr.mxu0 0.0
    %2786 = vmatpush1.msra.mxu0 0.0
    %2787 = vmatprep.subr.mxu0 0.0
    %2788 = vmatpush1.msra.mxu0 0.0
    %2789 = vmatprep.subr.mxu0 0.0
    %2790 = vmatpush1.msra.mxu0 0.0
    %2791 = vmatprep.subr.mxu0 0.0
    %2792 = vmatpush1.msra.mxu0 0.0
    %2793 = vmatprep.subr.mxu0 0.0
    %2794 = vmatpush1.msra.mxu0 0.0
    %2795 = vmatprep.mubr.f32.mxu0 0.0
    %2796 = vmatmul.mubr.f32.gmra.mrb[0].mxu0 %v2729
    %v2797 = vpop.f32.mrb[0].mxu0
    %v2798 = vadd.f32 0.0, %v2797
    %v2799 = vpop.f32.mrb[0].mxu0
    %2800 = vdwg.mxu0
    %v2802 = vrot.slane %v2798, 4
    %v2804 = vadd.f32 %v2290, %v2802
    %v2805 = vxor.u32 %v2804, 2147483648
    %v2806 = vmul.f32 %v2805, 1.442695
    %v2807 = vpow.pop %v2806
    %v2808 = vadd.f32 %v2807, 1.0
    %v2809 = vrcp.pop %v2808
    %v2810 = vmul.f32 1.0, %v2809
    %v2811 = vmul.f32 %v2810, 2.0
    %v2812 = vsub.f32 %v2811, 1.0
    %v2814 = vrot.slane %v2714, 7
    %v2816 = vmul.f32 %v2810, %v2814
    %2818 = vrot.lane.b32.xlu0 %v2812, 32
    %v2819 = vpop.permute.xlu0 %2818
    %v2821 = vmul.f32 %v2810, %v2819
    %2823 = vrot.lane.b32.xlu0 %v2821, 32
    %v2824 = vpop.permute.xlu0 %2823
    %v2826 = vadd.f32 %v2816, %v2824
    %v2827 = vtanh.pop %v2826
    %2829 = vrot.lane.b32.xlu0 %v2827, 32
    %v2830 = vpop.permute.xlu0 %2829
    %v2832 = vmul.f32 %v2810, %v2830
    %2834 = vrot.lane.b32.xlu0 %v2832, 64
    %v2835 = vpop.permute.xlu0 %2834
    %2837 = vst.msk [vmem:[#allocation2] sm:$0x10] %vm807, %v2835
    %v2838 = vrot.slane %v2832, 4
    %2839 = vrot.lane.b32.xlu0 %v2838, 64
    %v2840 = vpop.permute.xlu0 %2839
    %v2841 = vsel %vm254, %v2840, 0
    %2843 = vmatprep.subr.mxu0 0.0
    %2844 = vmatpush1.msra.mxu0 %v2123
    %2845 = vmatprep.subr.mxu0 0.0
    %2846 = vmatpush1.msra.mxu0 %v2124
    %2847 = vmatprep.subr.mxu0 0.0
    %2848 = vmatpush1.msra.mxu0 %v2125
    %2849 = vmatprep.subr.mxu0 0.0
    %2850 = vmatpush1.msra.mxu0 %v2126
    %2851 = vmatprep.subr.mxu0 0.0
    %2852 = vmatpush1.msra.mxu0 0.0
    %2853 = vmatprep.subr.mxu0 0.0
    %2854 = vmatpush1.msra.mxu0 0.0
    %2855 = vmatprep.subr.mxu0 0.0
    %2856 = vmatpush1.msra.mxu0 0.0
    %2857 = vmatprep.subr.mxu0 0.0
    %2858 = vmatpush1.msra.mxu0 0.0
    %2859 = vmatprep.subr.mxu0 0.0
    %2860 = vmatpush1.msra.mxu0 0.0
    %2861 = vmatprep.subr.mxu0 0.0
    %2862 = vmatpush1.msra.mxu0 0.0
    %2863 = vmatprep.subr.mxu0 0.0
    %2864 = vmatpush1.msra.mxu0 0.0
    %2865 = vmatprep.subr.mxu0 0.0
    %2866 = vmatpush1.msra.mxu0 0.0
    %2867 = vmatprep.subr.mxu0 0.0
    %2868 = vmatpush1.msra.mxu0 0.0
    %2869 = vmatprep.subr.mxu0 0.0
    %2870 = vmatpush1.msra.mxu0 0.0
    %2871 = vmatprep.subr.mxu0 0.0
    %2872 = vmatpush1.msra.mxu0 0.0
    %2873 = vmatprep.subr.mxu0 0.0
    %2874 = vmatpush1.msra.mxu0 0.0
    %2875 = vmatprep.subr.mxu0 0.0
    %2876 = vmatpush1.msra.mxu0 0.0
    %2877 = vmatprep.subr.mxu0 0.0
    %2878 = vmatpush1.msra.mxu0 0.0
    %2879 = vmatprep.subr.mxu0 0.0
    %2880 = vmatpush1.msra.mxu0 0.0
    %2881 = vmatprep.subr.mxu0 0.0
    %2882 = vmatpush1.msra.mxu0 0.0
    %2883 = vmatprep.subr.mxu0 0.0
    %2884 = vmatpush1.msra.mxu0 0.0
    %2885 = vmatprep.subr.mxu0 0.0
    %2886 = vmatpush1.msra.mxu0 0.0
    %2887 = vmatprep.subr.mxu0 0.0
    %2888 = vmatpush1.msra.mxu0 0.0
    %2889 = vmatprep.subr.mxu0 0.0
    %2890 = vmatpush1.msra.mxu0 0.0
    %2891 = vmatprep.subr.mxu0 0.0
    %2892 = vmatpush1.msra.mxu0 0.0
    %2893 = vmatprep.subr.mxu0 0.0
    %2894 = vmatpush1.msra.mxu0 0.0
    %2895 = vmatprep.subr.mxu0 0.0
    %2896 = vmatpush1.msra.mxu0 0.0
    %2897 = vmatprep.subr.mxu0 0.0
    %2898 = vmatpush1.msra.mxu0 0.0
    %2899 = vmatprep.subr.mxu0 0.0
    %2900 = vmatpush1.msra.mxu0 0.0
    %2901 = vmatprep.subr.mxu0 0.0
    %2902 = vmatpush1.msra.mxu0 0.0
    %2903 = vmatprep.subr.mxu0 0.0
    %2904 = vmatpush1.msra.mxu0 0.0
    %2905 = vmatprep.subr.mxu0 0.0
    %2906 = vmatpush1.msra.mxu0 0.0
    %2907 = vmatprep.mubr.f32.mxu0 0.0
    %2908 = vmatmul.mubr.f32.gmra.mrb[0].mxu0 %v2841
    %v2909 = vpop.f32.mrb[0].mxu0
    %v2910 = vadd.f32 0.0, %v2909
    %v2911 = vpop.f32.mrb[0].mxu0
    %2912 = vdwg.mxu0
    %v2914 = vrot.slane %v2910, 3
    %v2916 = vadd.f32 %v2290, %v2914
    %v2917 = vxor.u32 %v2916, 2147483648
    %v2918 = vmul.f32 %v2917, 1.442695
    %v2919 = vpow.pop %v2918
    %v2920 = vadd.f32 %v2919, 1.0
    %v2921 = vrcp.pop %v2920
    %v2922 = vmul.f32 1.0, %v2921
    %v2923 = vmul.f32 %v2922, 2.0
    %v2924 = vsub.f32 %v2923, 1.0
    %v2926 = vrot.slane %v2826, 7
    %v2928 = vmul.f32 %v2922, %v2926
    %2930 = vrot.lane.b32.xlu0 %v2924, 32
    %v2931 = vpop.permute.xlu0 %2930
    %v2933 = vmul.f32 %v2922, %v2931
    %2935 = vrot.lane.b32.xlu0 %v2933, 32
    %v2936 = vpop.permute.xlu0 %2935
    %v2938 = vadd.f32 %v2928, %v2936
    %v2939 = vtanh.pop %v2938
    %2941 = vrot.lane.b32.xlu0 %v2939, 32
    %v2942 = vpop.permute.xlu0 %2941
    %v2944 = vmul.f32 %v2922, %v2942
    %2946 = vrot.lane.b32.xlu0 %v2944, 64
    %v2947 = vpop.permute.xlu0 %2946
    %2949 = vst.msk [vmem:[#allocation2] sm:$0x20] %vm920, %v2947
    %v2950 = vrot.slane %v2944, 5
    %2951 = vrot.lane.b32.xlu0 %v2950, 64
    %v2952 = vpop.permute.xlu0 %2951
    %v2953 = vsel %vm254, %v2952, 0
    %2955 = vmatprep.subr.mxu0 0.0
    %2956 = vmatpush1.msra.mxu0 %v2123
    %2957 = vmatprep.subr.mxu0 0.0
    %2958 = vmatpush1.msra.mxu0 %v2124
    %2959 = vmatprep.subr.mxu0 0.0
    %2960 = vmatpush1.msra.mxu0 %v2125
    %2961 = vmatprep.subr.mxu0 0.0
    %2962 = vmatpush1.msra.mxu0 %v2126
    %2963 = vmatprep.subr.mxu0 0.0
    %2964 = vmatpush1.msra.mxu0 0.0
    %2965 = vmatprep.subr.mxu0 0.0
    %2966 = vmatpush1.msra.mxu0 0.0
    %2967 = vmatprep.subr.mxu0 0.0
    %2968 = vmatpush1.msra.mxu0 0.0
    %2969 = vmatprep.subr.mxu0 0.0
    %2970 = vmatpush1.msra.mxu0 0.0
    %2971 = vmatprep.subr.mxu0 0.0
    %2972 = vmatpush1.msra.mxu0 0.0
    %2973 = vmatprep.subr.mxu0 0.0
    %2974 = vmatpush1.msra.mxu0 0.0
    %2975 = vmatprep.subr.mxu0 0.0
    %2976 = vmatpush1.msra.mxu0 0.0
    %2977 = vmatprep.subr.mxu0 0.0
    %2978 = vmatpush1.msra.mxu0 0.0
    %2979 = vmatprep.subr.mxu0 0.0
    %2980 = vmatpush1.msra.mxu0 0.0
    %2981 = vmatprep.subr.mxu0 0.0
    %2982 = vmatpush1.msra.mxu0 0.0
    %2983 = vmatprep.subr.mxu0 0.0
    %2984 = vmatpush1.msra.mxu0 0.0
    %2985 = vmatprep.subr.mxu0 0.0
    %2986 = vmatpush1.msra.mxu0 0.0
    %2987 = vmatprep.subr.mxu0 0.0
    %2988 = vmatpush1.msra.mxu0 0.0
    %2989 = vmatprep.subr.mxu0 0.0
    %2990 = vmatpush1.msra.mxu0 0.0
    %2991 = vmatprep.subr.mxu0 0.0
    %2992 = vmatpush1.msra.mxu0 0.0
    %2993 = vmatprep.subr.mxu0 0.0
    %2994 = vmatpush1.msra.mxu0 0.0
    %2995 = vmatprep.subr.mxu0 0.0
    %2996 = vmatpush1.msra.mxu0 0.0
    %2997 = vmatprep.subr.mxu0 0.0
    %2998 = vmatpush1.msra.mxu0 0.0
    %2999 = vmatprep.subr.mxu0 0.0
    %3000 = vmatpush1.msra.mxu0 0.0
    %3001 = vmatprep.subr.mxu0 0.0
    %3002 = vmatpush1.msra.mxu0 0.0
    %3003 = vmatprep.subr.mxu0 0.0
    %3004 = vmatpush1.msra.mxu0 0.0
    %3005 = vmatprep.subr.mxu0 0.0
    %3006 = vmatpush1.msra.mxu0 0.0
    %3007 = vmatprep.subr.mxu0 0.0
    %3008 = vmatpush1.msra.mxu0 0.0
    %3009 = vmatprep.subr.mxu0 0.0
    %3010 = vmatpush1.msra.mxu0 0.0
    %3011 = vmatprep.subr.mxu0 0.0
    %3012 = vmatpush1.msra.mxu0 0.0
    %3013 = vmatprep.subr.mxu0 0.0
    %3014 = vmatpush1.msra.mxu0 0.0
    %3015 = vmatprep.subr.mxu0 0.0
    %3016 = vmatpush1.msra.mxu0 0.0
    %3017 = vmatprep.subr.mxu0 0.0
    %3018 = vmatpush1.msra.mxu0 0.0
    %3019 = vmatprep.mubr.f32.mxu0 0.0
    %3020 = vmatmul.mubr.f32.gmra.mrb[0].mxu0 %v2953
    %v3021 = vpop.f32.mrb[0].mxu0
    %v3022 = vadd.f32 0.0, %v3021
    %v3023 = vpop.f32.mrb[0].mxu0
    %3024 = vdwg.mxu0
    %v3026 = vrot.slane %v3022, 2
    %v3028 = vadd.f32 %v2290, %v3026
    %v3029 = vxor.u32 %v3028, 2147483648
    %v3030 = vmul.f32 %v3029, 1.442695
    %v3031 = vpow.pop %v3030
    %v3032 = vadd.f32 %v3031, 1.0
    %v3033 = vrcp.pop %v3032
    %v3034 = vmul.f32 1.0, %v3033
    %v3035 = vmul.f32 %v3034, 2.0
    %v3036 = vsub.f32 %v3035, 1.0
    %v3038 = vrot.slane %v2938, 7
    %v3040 = vmul.f32 %v3034, %v3038
    %3042 = vrot.lane.b32.xlu0 %v3036, 32
    %v3043 = vpop.permute.xlu0 %3042
    %v3045 = vmul.f32 %v3034, %v3043
    %3047 = vrot.lane.b32.xlu0 %v3045, 32
    %v3048 = vpop.permute.xlu0 %3047
    %v3050 = vadd.f32 %v3040, %v3048
    %v3051 = vtanh.pop %v3050
    %3053 = vrot.lane.b32.xlu0 %v3051, 32
    %v3054 = vpop.permute.xlu0 %3053
    %v3056 = vmul.f32 %v3034, %v3054
    %3058 = vrot.lane.b32.xlu0 %v3056, 64
    %v3059 = vpop.permute.xlu0 %3058
    %3061 = vst.msk [vmem:[#allocation2] sm:$0x40] %vm1033, %v3059
    %v3062 = vrot.slane %v3056, 6
    %3063 = vrot.lane.b32.xlu0 %v3062, 64
    %v3064 = vpop.permute.xlu0 %3063
    %v3065 = vsel %vm254, %v3064, 0
    %3067 = vmatprep.subr.mxu0 0.0
    %3068 = vmatpush1.msra.mxu0 %v2123
    %3069 = vmatprep.subr.mxu0 0.0
    %3070 = vmatpush1.msra.mxu0 %v2124
    %3071 = vmatprep.subr.mxu0 0.0
    %3072 = vmatpush1.msra.mxu0 %v2125
    %3073 = vmatprep.subr.mxu0 0.0
    %3074 = vmatpush1.msra.mxu0 %v2126
    %3075 = vmatprep.subr.mxu0 0.0
    %3076 = vmatpush1.msra.mxu0 0.0
    %3077 = vmatprep.subr.mxu0 0.0
    %3078 = vmatpush1.msra.mxu0 0.0
    %3079 = vmatprep.subr.mxu0 0.0
    %3080 = vmatpush1.msra.mxu0 0.0
    %3081 = vmatprep.subr.mxu0 0.0
    %3082 = vmatpush1.msra.mxu0 0.0
    %3083 = vmatprep.subr.mxu0 0.0
    %3084 = vmatpush1.msra.mxu0 0.0
    %3085 = vmatprep.subr.mxu0 0.0
    %3086 = vmatpush1.msra.mxu0 0.0
    %3087 = vmatprep.subr.mxu0 0.0
    %3088 = vmatpush1.msra.mxu0 0.0
    %3089 = vmatprep.subr.mxu0 0.0
    %3090 = vmatpush1.msra.mxu0 0.0
    %3091 = vmatprep.subr.mxu0 0.0
    %3092 = vmatpush1.msra.mxu0 0.0
    %3093 = vmatprep.subr.mxu0 0.0
    %3094 = vmatpush1.msra.mxu0 0.0
    %3095 = vmatprep.subr.mxu0 0.0
    %3096 = vmatpush1.msra.mxu0 0.0
    %3097 = vmatprep.subr.mxu0 0.0
    %3098 = vmatpush1.msra.mxu0 0.0
    %3099 = vmatprep.subr.mxu0 0.0
    %3100 = vmatpush1.msra.mxu0 0.0
    %3101 = vmatprep.subr.mxu0 0.0
    %3102 = vmatpush1.msra.mxu0 0.0
    %3103 = vmatprep.subr.mxu0 0.0
    %3104 = vmatpush1.msra.mxu0 0.0
    %3105 = vmatprep.subr.mxu0 0.0
    %3106 = vmatpush1.msra.mxu0 0.0
    %3107 = vmatprep.subr.mxu0 0.0
    %3108 = vmatpush1.msra.mxu0 0.0
    %3109 = vmatprep.subr.mxu0 0.0
    %3110 = vmatpush1.msra.mxu0 0.0
    %3111 = vmatprep.subr.mxu0 0.0
    %3112 = vmatpush1.msra.mxu0 0.0
    %3113 = vmatprep.subr.mxu0 0.0
    %3114 = vmatpush1.msra.mxu0 0.0
    %3115 = vmatprep.subr.mxu0 0.0
    %3116 = vmatpush1.msra.mxu0 0.0
    %3117 = vmatprep.subr.mxu0 0.0
    %3118 = vmatpush1.msra.mxu0 0.0
    %3119 = vmatprep.subr.mxu0 0.0
    %3120 = vmatpush1.msra.mxu0 0.0
    %3121 = vmatprep.subr.mxu0 0.0
    %3122 = vmatpush1.msra.mxu0 0.0
    %3123 = vmatprep.subr.mxu0 0.0
    %3124 = vmatpush1.msra.mxu0 0.0
    %3125 = vmatprep.subr.mxu0 0.0
    %3126 = vmatpush1.msra.mxu0 0.0
    %3127 = vmatprep.subr.mxu0 0.0
    %3128 = vmatpush1.msra.mxu0 0.0
    %3129 = vmatprep.subr.mxu0 0.0
    %3130 = vmatpush1.msra.mxu0 0.0
    %3131 = vmatprep.mubr.f32.mxu0 0.0
    %3132 = vmatmul.mubr.f32.gmra.mrb[0].mxu0 %v3065
    %v3133 = vpop.f32.mrb[0].mxu0
    %v3134 = vadd.f32 0.0, %v3133
    %v3135 = vpop.f32.mrb[0].mxu0
    %3136 = vdwg.mxu0
    %v3138 = vrot.slane %v3134, 1
    %v3140 = vadd.f32 %v2290, %v3138
    %v3141 = vxor.u32 %v3140, 2147483648
    %v3142 = vmul.f32 %v3141, 1.442695
    %v3143 = vpow.pop %v3142
    %v3144 = vadd.f32 %v3143, 1.0
    %v3145 = vrcp.pop %v3144
    %v3146 = vmul.f32 1.0, %v3145
    %v3147 = vmul.f32 %v3146, 2.0
    %v3148 = vsub.f32 %v3147, 1.0
    %v3150 = vrot.slane %v3050, 7
    %v3152 = vmul.f32 %v3146, %v3150
    %3154 = vrot.lane.b32.xlu0 %v3148, 32
    %v3155 = vpop.permute.xlu0 %3154
    %v3157 = vmul.f32 %v3146, %v3155
    %3159 = vrot.lane.b32.xlu0 %v3157, 32
    %v3160 = vpop.permute.xlu0 %3159
    %v3162 = vadd.f32 %v3152, %v3160
    %v3163 = vtanh.pop %v3162
    %3165 = vrot.lane.b32.xlu0 %v3163, 32
    %v3166 = vpop.permute.xlu0 %3165
    %v3168 = vmul.f32 %v3146, %v3166
    %3170 = vrot.lane.b32.xlu0 %v3168, 64
    %v3171 = vpop.permute.xlu0 %3170
    %3173 = vst.msk [vmem:[#allocation2] sm:$0x80] %vm1146, %v3171
    %v3174 = vrot.slane %v3168, 7
    %3175 = vrot.lane.b32.xlu0 %v3174, 64
    %v3176 = vpop.permute.xlu0 %3175
    %v3177 = vsel %vm254, %v3176, 0
    %3179 = vmatprep.subr.mxu0 0.0
    %3180 = vmatpush1.msra.mxu0 %v2123
    %3181 = vmatprep.subr.mxu0 0.0
    %3182 = vmatpush1.msra.mxu0 %v2124
    %3183 = vmatprep.subr.mxu0 0.0
    %3184 = vmatpush1.msra.mxu0 %v2125
    %3185 = vmatprep.subr.mxu0 0.0
    %3186 = vmatpush1.msra.mxu0 %v2126
    %3187 = vmatprep.subr.mxu0 0.0
    %3188 = vmatpush1.msra.mxu0 0.0
    %3189 = vmatprep.subr.mxu0 0.0
    %3190 = vmatpush1.msra.mxu0 0.0
    %3191 = vmatprep.subr.mxu0 0.0
    %3192 = vmatpush1.msra.mxu0 0.0
    %3193 = vmatprep.subr.mxu0 0.0
    %3194 = vmatpush1.msra.mxu0 0.0
    %3195 = vmatprep.subr.mxu0 0.0
    %3196 = vmatpush1.msra.mxu0 0.0
    %3197 = vmatprep.subr.mxu0 0.0
    %3198 = vmatpush1.msra.mxu0 0.0
    %3199 = vmatprep.subr.mxu0 0.0
    %3200 = vmatpush1.msra.mxu0 0.0
    %3201 = vmatprep.subr.mxu0 0.0
    %3202 = vmatpush1.msra.mxu0 0.0
    %3203 = vmatprep.subr.mxu0 0.0
    %3204 = vmatpush1.msra.mxu0 0.0
    %3205 = vmatprep.subr.mxu0 0.0
    %3206 = vmatpush1.msra.mxu0 0.0
    %3207 = vmatprep.subr.mxu0 0.0
    %3208 = vmatpush1.msra.mxu0 0.0
    %3209 = vmatprep.subr.mxu0 0.0
    %3210 = vmatpush1.msra.mxu0 0.0
    %3211 = vmatprep.subr.mxu0 0.0
    %3212 = vmatpush1.msra.mxu0 0.0
    %3213 = vmatprep.subr.mxu0 0.0
    %3214 = vmatpush1.msra.mxu0 0.0
    %3215 = vmatprep.subr.mxu0 0.0
    %3216 = vmatpush1.msra.mxu0 0.0
    %3217 = vmatprep.subr.mxu0 0.0
    %3218 = vmatpush1.msra.mxu0 0.0
    %3219 = vmatprep.subr.mxu0 0.0
    %3220 = vmatpush1.msra.mxu0 0.0
    %3221 = vmatprep.subr.mxu0 0.0
    %3222 = vmatpush1.msra.mxu0 0.0
    %3223 = vmatprep.subr.mxu0 0.0
    %3224 = vmatpush1.msra.mxu0 0.0
    %3225 = vmatprep.subr.mxu0 0.0
    %3226 = vmatpush1.msra.mxu0 0.0
    %3227 = vmatprep.subr.mxu0 0.0
    %3228 = vmatpush1.msra.mxu0 0.0
    %3229 = vmatprep.subr.mxu0 0.0
    %3230 = vmatpush1.msra.mxu0 0.0
    %3231 = vmatprep.subr.mxu0 0.0
    %3232 = vmatpush1.msra.mxu0 0.0
    %3233 = vmatprep.subr.mxu0 0.0
    %3234 = vmatpush1.msra.mxu0 0.0
    %3235 = vmatprep.subr.mxu0 0.0
    %3236 = vmatpush1.msra.mxu0 0.0
    %3237 = vmatprep.subr.mxu0 0.0
    %3238 = vmatpush1.msra.mxu0 0.0
    %3239 = vmatprep.subr.mxu0 0.0
    %3240 = vmatpush1.msra.mxu0 0.0
    %3241 = vmatprep.subr.mxu0 0.0
    %3242 = vmatpush1.msra.mxu0 0.0
    %3243 = vmatprep.mubr.f32.mxu0 0.0
    %3244 = vmatmul.mubr.f32.gmra.mrb[0].mxu0 %v3177
    %v3245 = vpop.f32.mrb[0].mxu0
    %v3246 = vadd.f32 0.0, %v3245
    %v3247 = vpop.f32.mrb[0].mxu0
    %3248 = vdwg.mxu0
    %v3249 = vadd.f32 %v2291, %v3246
    %v3250 = vxor.u32 %v3249, 2147483648
    %v3251 = vmul.f32 %v3250, 1.442695
    %v3252 = vpow.pop %v3251
    %v3253 = vadd.f32 %v3252, 1.0
    %v3254 = vrcp.pop %v3253
    %v3255 = vmul.f32 1.0, %v3254
    %v3256 = vmul.f32 %v3255, 2.0
    %v3257 = vsub.f32 %v3256, 1.0
    %v3259 = vrot.slane %v3162, 7
    %v3261 = vmul.f32 %v3255, %v3259
    %3263 = vrot.lane.b32.xlu0 %v3257, 32
    %v3264 = vpop.permute.xlu0 %3263
    %v3266 = vmul.f32 %v3255, %v3264
    %3268 = vrot.lane.b32.xlu0 %v3266, 32
    %v3269 = vpop.permute.xlu0 %3268
    %v3271 = vadd.f32 %v3261, %v3269
    %v3272 = vtanh.pop %v3271
    %3274 = vrot.lane.b32.xlu0 %v3272, 32
    %v3275 = vpop.permute.xlu0 %3274
    %v3277 = vmul.f32 %v3255, %v3275
    %3279 = vrot.lane.b32.xlu0 %v3277, 64
    %v3280 = vpop.permute.xlu0 %3279
    %3282 = vst.msk [vmem:[#allocation2 + $0x8] sm:$0x1] %vm358, %v3280
    %v3283 = vsel %vm254, %v3280, 0
    %3285 = vmatprep.subr.mxu0 0.0
    %3286 = vmatpush1.msra.mxu0 %v2123
    %3287 = vmatprep.subr.mxu0 0.0
    %3288 = vmatpush1.msra.mxu0 %v2124
    %3289 = vmatprep.subr.mxu0 0.0
    %3290 = vmatpush1.msra.mxu0 %v2125
    %3291 = vmatprep.subr.mxu0 0.0
    %3292 = vmatpush1.msra.mxu0 %v2126
    %3293 = vmatprep.subr.mxu0 0.0
    %3294 = vmatpush1.msra.mxu0 0.0
    %3295 = vmatprep.subr.mxu0 0.0
    %3296 = vmatpush1.msra.mxu0 0.0
    %3297 = vmatprep.subr.mxu0 0.0
    %3298 = vmatpush1.msra.mxu0 0.0
    %3299 = vmatprep.subr.mxu0 0.0
    %3300 = vmatpush1.msra.mxu0 0.0
    %3301 = vmatprep.subr.mxu0 0.0
    %3302 = vmatpush1.msra.mxu0 0.0
    %3303 = vmatprep.subr.mxu0 0.0
    %3304 = vmatpush1.msra.mxu0 0.0
    %3305 = vmatprep.subr.mxu0 0.0
    %3306 = vmatpush1.msra.mxu0 0.0
    %3307 = vmatprep.subr.mxu0 0.0
    %3308 = vmatpush1.msra.mxu0 0.0
    %3309 = vmatprep.subr.mxu0 0.0
    %3310 = vmatpush1.msra.mxu0 0.0
    %3311 = vmatprep.subr.mxu0 0.0
    %3312 = vmatpush1.msra.mxu0 0.0
    %3313 = vmatprep.subr.mxu0 0.0
    %3314 = vmatpush1.msra.mxu0 0.0
    %3315 = vmatprep.subr.mxu0 0.0
    %3316 = vmatpush1.msra.mxu0 0.0
    %3317 = vmatprep.subr.mxu0 0.0
    %3318 = vmatpush1.msra.mxu0 0.0
    %3319 = vmatprep.subr.mxu0 0.0
    %3320 = vmatpush1.msra.mxu0 0.0
    %3321 = vmatprep.subr.mxu0 0.0
    %3322 = vmatpush1.msra.mxu0 0.0
    %3323 = vmatprep.subr.mxu0 0.0
    %3324 = vmatpush1.msra.mxu0 0.0
    %3325 = vmatprep.subr.mxu0 0.0
    %3326 = vmatpush1.msra.mxu0 0.0
    %3327 = vmatprep.subr.mxu0 0.0
    %3328 = vmatpush1.msra.mxu0 0.0
    %3329 = vmatprep.subr.mxu0 0.0
    %3330 = vmatpush1.msra.mxu0 0.0
    %3331 = vmatprep.subr.mxu0 0.0
    %3332 = vmatpush1.msra.mxu0 0.0
    %3333 = vmatprep.subr.mxu0 0.0
    %3334 = vmatpush1.msra.mxu0 0.0
    %3335 = vmatprep.subr.mxu0 0.0
    %3336 = vmatpush1.msra.mxu0 0.0
    %3337 = vmatprep.subr.mxu0 0.0
    %3338 = vmatpush1.msra.mxu0 0.0
    %3339 = vmatprep.subr.mxu0 0.0
    %3340 = vmatpush1.msra.mxu0 0.0
    %3341 = vmatprep.subr.mxu0 0.0
    %3342 = vmatpush1.msra.mxu0 0.0
    %3343 = vmatprep.subr.mxu0 0.0
    %3344 = vmatpush1.msra.mxu0 0.0
    %3345 = vmatprep.subr.mxu0 0.0
    %3346 = vmatpush1.msra.mxu0 0.0
    %3347 = vmatprep.subr.mxu0 0.0
    %3348 = vmatpush1.msra.mxu0 0.0
    %3349 = vmatprep.mubr.f32.mxu0 0.0
    %3350 = vmatmul.mubr.f32.gmra.mrb[0].mxu0 %v3283
    %v3351 = vpop.f32.mrb[0].mxu0
    %v3352 = vadd.f32 0.0, %v3351
    %v3353 = vpop.f32.mrb[0].mxu0
    %3354 = vdwg.mxu0
    %v3356 = vrot.slane %v3352, 7
    %v3358 = vadd.f32 %v2291, %v3356
    %v3359 = vxor.u32 %v3358, 2147483648
    %v3360 = vmul.f32 %v3359, 1.442695
    %v3361 = vpow.pop %v3360
    %v3362 = vadd.f32 %v3361, 1.0
    %v3363 = vrcp.pop %v3362
    %v3364 = vmul.f32 1.0, %v3363
    %v3365 = vmul.f32 %v3364, 2.0
    %v3366 = vsub.f32 %v3365, 1.0
    %v3368 = vrot.slane %v3271, 7
    %v3370 = vmul.f32 %v3364, %v3368
    %3372 = vrot.lane.b32.xlu0 %v3366, 32
    %v3373 = vpop.permute.xlu0 %3372
    %v3375 = vmul.f32 %v3364, %v3373
    %3377 = vrot.lane.b32.xlu0 %v3375, 32
    %v3378 = vpop.permute.xlu0 %3377
    %v3380 = vadd.f32 %v3370, %v3378
    %v3381 = vtanh.pop %v3380
    %3383 = vrot.lane.b32.xlu0 %v3381, 32
    %v3384 = vpop.permute.xlu0 %3383
    %v3386 = vmul.f32 %v3364, %v3384
    %3388 = vrot.lane.b32.xlu0 %v3386, 64
    %v3389 = vpop.permute.xlu0 %3388
    %3391 = vst.msk [vmem:[#allocation2 + $0x8] sm:$0x2] %vm468, %v3389
    %v3392 = vrot.slane %v3386, 1
    %3393 = vrot.lane.b32.xlu0 %v3392, 64
    %v3394 = vpop.permute.xlu0 %3393
    %v3395 = vsel %vm254, %v3394, 0
    %3397 = vmatprep.subr.mxu0 0.0
    %3398 = vmatpush1.msra.mxu0 %v2123
    %3399 = vmatprep.subr.mxu0 0.0
    %3400 = vmatpush1.msra.mxu0 %v2124
    %3401 = vmatprep.subr.mxu0 0.0
    %3402 = vmatpush1.msra.mxu0 %v2125
    %3403 = vmatprep.subr.mxu0 0.0
    %3404 = vmatpush1.msra.mxu0 %v2126
    %3405 = vmatprep.subr.mxu0 0.0
    %3406 = vmatpush1.msra.mxu0 0.0
    %3407 = vmatprep.subr.mxu0 0.0
    %3408 = vmatpush1.msra.mxu0 0.0
    %3409 = vmatprep.subr.mxu0 0.0
    %3410 = vmatpush1.msra.mxu0 0.0
    %3411 = vmatprep.subr.mxu0 0.0
    %3412 = vmatpush1.msra.mxu0 0.0
    %3413 = vmatprep.subr.mxu0 0.0
    %3414 = vmatpush1.msra.mxu0 0.0
    %3415 = vmatprep.subr.mxu0 0.0
    %3416 = vmatpush1.msra.mxu0 0.0
    %3417 = vmatprep.subr.mxu0 0.0
    %3418 = vmatpush1.msra.mxu0 0.0
    %3419 = vmatprep.subr.mxu0 0.0
    %3420 = vmatpush1.msra.mxu0 0.0
    %3421 = vmatprep.subr.mxu0 0.0
    %3422 = vmatpush1.msra.mxu0 0.0
    %3423 = vmatprep.subr.mxu0 0.0
    %3424 = vmatpush1.msra.mxu0 0.0
    %3425 = vmatprep.subr.mxu0 0.0
    %3426 = vmatpush1.msra.mxu0 0.0
    %3427 = vmatprep.subr.mxu0 0.0
    %3428 = vmatpush1.msra.mxu0 0.0
    %3429 = vmatprep.subr.mxu0 0.0
    %3430 = vmatpush1.msra.mxu0 0.0
    %3431 = vmatprep.subr.mxu0 0.0
    %3432 = vmatpush1.msra.mxu0 0.0
    %3433 = vmatprep.subr.mxu0 0.0
    %3434 = vmatpush1.msra.mxu0 0.0
    %3435 = vmatprep.subr.mxu0 0.0
    %3436 = vmatpush1.msra.mxu0 0.0
    %3437 = vmatprep.subr.mxu0 0.0
    %3438 = vmatpush1.msra.mxu0 0.0
    %3439 = vmatprep.subr.mxu0 0.0
    %3440 = vmatpush1.msra.mxu0 0.0
    %3441 = vmatprep.subr.mxu0 0.0
    %3442 = vmatpush1.msra.mxu0 0.0
    %3443 = vmatprep.subr.mxu0 0.0
    %3444 = vmatpush1.msra.mxu0 0.0
    %3445 = vmatprep.subr.mxu0 0.0
    %3446 = vmatpush1.msra.mxu0 0.0
    %3447 = vmatprep.subr.mxu0 0.0
    %3448 = vmatpush1.msra.mxu0 0.0
    %3449 = vmatprep.subr.mxu0 0.0
    %3450 = vmatpush1.msra.mxu0 0.0
    %3451 = vmatprep.subr.mxu0 0.0
    %3452 = vmatpush1.msra.mxu0 0.0
    %3453 = vmatprep.subr.mxu0 0.0
    %3454 = vmatpush1.msra.mxu0 0.0
    %3455 = vmatprep.subr.mxu0 0.0
    %3456 = vmatpush1.msra.mxu0 0.0
    %3457 = vmatprep.subr.mxu0 0.0
    %3458 = vmatpush1.msra.mxu0 0.0
    %3459 = vmatprep.subr.mxu0 0.0
    %3460 = vmatpush1.msra.mxu0 0.0
    %3461 = vmatprep.mubr.f32.mxu0 0.0
    %3462 = vmatmul.mubr.f32.gmra.mrb[0].mxu0 %v3395
    %v3463 = vpop.f32.mrb[0].mxu0
    %v3464 = vadd.f32 0.0, %v3463
    %v3465 = vpop.f32.mrb[0].mxu0
    %3466 = vdwg.mxu0
    %v3468 = vrot.slane %v3464, 6
    %v3470 = vadd.f32 %v2291, %v3468
    %v3471 = vxor.u32 %v3470, 2147483648
    %v3472 = vmul.f32 %v3471, 1.442695
    %v3473 = vpow.pop %v3472
    %v3474 = vadd.f32 %v3473, 1.0
    %v3475 = vrcp.pop %v3474
    %v3476 = vmul.f32 1.0, %v3475
    %v3477 = vmul.f32 %v3476, 2.0
    %v3478 = vsub.f32 %v3477, 1.0
    %v3480 = vrot.slane %v3380, 7
    %v3482 = vmul.f32 %v3476, %v3480
    %3484 = vrot.lane.b32.xlu0 %v3478, 32
    %v3485 = vpop.permute.xlu0 %3484
    %v3487 = vmul.f32 %v3476, %v3485
    %3489 = vrot.lane.b32.xlu0 %v3487, 32
    %v3490 = vpop.permute.xlu0 %3489
    %v3492 = vadd.f32 %v3482, %v3490
    %v3493 = vtanh.pop %v3492
    %3495 = vrot.lane.b32.xlu0 %v3493, 32
    %v3496 = vpop.permute.xlu0 %3495
    %v3498 = vmul.f32 %v3476, %v3496
    %3500 = vrot.lane.b32.xlu0 %v3498, 64
    %v3501 = vpop.permute.xlu0 %3500
    %3503 = vst.msk [vmem:[#allocation2 + $0x8] sm:$0x4] %vm581, %v3501
    %v3504 = vrot.slane %v3498, 2
    %3505 = vrot.lane.b32.xlu0 %v3504, 64
    %v3506 = vpop.permute.xlu0 %3505
    %v3507 = vsel %vm254, %v3506, 0
    %3509 = vmatprep.subr.mxu0 0.0
    %3510 = vmatpush1.msra.mxu0 %v2123
    %3511 = vmatprep.subr.mxu0 0.0
    %3512 = vmatpush1.msra.mxu0 %v2124
    %3513 = vmatprep.subr.mxu0 0.0
    %3514 = vmatpush1.msra.mxu0 %v2125
    %3515 = vmatprep.subr.mxu0 0.0
    %3516 = vmatpush1.msra.mxu0 %v2126
    %3517 = vmatprep.subr.mxu0 0.0
    %3518 = vmatpush1.msra.mxu0 0.0
    %3519 = vmatprep.subr.mxu0 0.0
    %3520 = vmatpush1.msra.mxu0 0.0
    %3521 = vmatprep.subr.mxu0 0.0
    %3522 = vmatpush1.msra.mxu0 0.0
    %3523 = vmatprep.subr.mxu0 0.0
    %3524 = vmatpush1.msra.mxu0 0.0
    %3525 = vmatprep.subr.mxu0 0.0
    %3526 = vmatpush1.msra.mxu0 0.0
    %3527 = vmatprep.subr.mxu0 0.0
    %3528 = vmatpush1.msra.mxu0 0.0
    %3529 = vmatprep.subr.mxu0 0.0
    %3530 = vmatpush1.msra.mxu0 0.0
    %3531 = vmatprep.subr.mxu0 0.0
    %3532 = vmatpush1.msra.mxu0 0.0
    %3533 = vmatprep.subr.mxu0 0.0
    %3534 = vmatpush1.msra.mxu0 0.0
    %3535 = vmatprep.subr.mxu0 0.0
    %3536 = vmatpush1.msra.mxu0 0.0
    %3537 = vmatprep.subr.mxu0 0.0
    %3538 = vmatpush1.msra.mxu0 0.0
    %3539 = vmatprep.subr.mxu0 0.0
    %3540 = vmatpush1.msra.mxu0 0.0
    %3541 = vmatprep.subr.mxu0 0.0
    %3542 = vmatpush1.msra.mxu0 0.0
    %3543 = vmatprep.subr.mxu0 0.0
    %3544 = vmatpush1.msra.mxu0 0.0
    %3545 = vmatprep.subr.mxu0 0.0
    %3546 = vmatpush1.msra.mxu0 0.0
    %3547 = vmatprep.subr.mxu0 0.0
    %3548 = vmatpush1.msra.mxu0 0.0
    %3549 = vmatprep.subr.mxu0 0.0
    %3550 = vmatpush1.msra.mxu0 0.0
    %3551 = vmatprep.subr.mxu0 0.0
    %3552 = vmatpush1.msra.mxu0 0.0
    %3553 = vmatprep.subr.mxu0 0.0
    %3554 = vmatpush1.msra.mxu0 0.0
    %3555 = vmatprep.subr.mxu0 0.0
    %3556 = vmatpush1.msra.mxu0 0.0
    %3557 = vmatprep.subr.mxu0 0.0
    %3558 = vmatpush1.msra.mxu0 0.0
    %3559 = vmatprep.subr.mxu0 0.0
    %3560 = vmatpush1.msra.mxu0 0.0
    %3561 = vmatprep.subr.mxu0 0.0
    %3562 = vmatpush1.msra.mxu0 0.0
    %3563 = vmatprep.subr.mxu0 0.0
    %3564 = vmatpush1.msra.mxu0 0.0
    %3565 = vmatprep.subr.mxu0 0.0
    %3566 = vmatpush1.msra.mxu0 0.0
    %3567 = vmatprep.subr.mxu0 0.0
    %3568 = vmatpush1.msra.mxu0 0.0
    %3569 = vmatprep.subr.mxu0 0.0
    %3570 = vmatpush1.msra.mxu0 0.0
    %3571 = vmatprep.subr.mxu0 0.0
    %3572 = vmatpush1.msra.mxu0 0.0
    %3573 = vmatprep.mubr.f32.mxu0 0.0
    %3574 = vmatmul.mubr.f32.gmra.mrb[0].mxu0 %v3507
    %v3575 = vpop.f32.mrb[0].mxu0
    %v3576 = vadd.f32 0.0, %v3575
    %v3577 = vpop.f32.mrb[0].mxu0
    %3578 = vdwg.mxu0
    %v3580 = vrot.slane %v3576, 5
    %v3582 = vadd.f32 %v2291, %v3580
    %v3583 = vxor.u32 %v3582, 2147483648
    %v3584 = vmul.f32 %v3583, 1.442695
    %v3585 = vpow.pop %v3584
    %v3586 = vadd.f32 %v3585, 1.0
    %v3587 = vrcp.pop %v3586
    %v3588 = vmul.f32 1.0, %v3587
    %v3589 = vmul.f32 %v3588, 2.0
    %v3590 = vsub.f32 %v3589, 1.0
    %v3592 = vrot.slane %v3492, 7
    %v3594 = vmul.f32 %v3588, %v3592
    %3596 = vrot.lane.b32.xlu0 %v3590, 32
    %v3597 = vpop.permute.xlu0 %3596
    %v3599 = vmul.f32 %v3588, %v3597
    %3601 = vrot.lane.b32.xlu0 %v3599, 32
    %v3602 = vpop.permute.xlu0 %3601
    %v3604 = vadd.f32 %v3594, %v3602
    %v3605 = vtanh.pop %v3604
    %3607 = vrot.lane.b32.xlu0 %v3605, 32
    %v3608 = vpop.permute.xlu0 %3607
    %v3610 = vmul.f32 %v3588, %v3608
    %3612 = vrot.lane.b32.xlu0 %v3610, 64
    %v3613 = vpop.permute.xlu0 %3612
    %3615 = vst.msk [vmem:[#allocation2 + $0x8] sm:$0x8] %vm694, %v3613
    %v3616 = vrot.slane %v3610, 3
    %3617 = vrot.lane.b32.xlu0 %v3616, 64
    %v3618 = vpop.permute.xlu0 %3617
    %v3619 = vsel %vm254, %v3618, 0
    %3621 = vmatprep.subr.mxu0 0.0
    %3622 = vmatpush1.msra.mxu0 %v2123
    %3623 = vmatprep.subr.mxu0 0.0
    %3624 = vmatpush1.msra.mxu0 %v2124
    %3625 = vmatprep.subr.mxu0 0.0
    %3626 = vmatpush1.msra.mxu0 %v2125
    %3627 = vmatprep.subr.mxu0 0.0
    %3628 = vmatpush1.msra.mxu0 %v2126
    %3629 = vmatprep.subr.mxu0 0.0
    %3630 = vmatpush1.msra.mxu0 0.0
    %3631 = vmatprep.subr.mxu0 0.0
    %3632 = vmatpush1.msra.mxu0 0.0
    %3633 = vmatprep.subr.mxu0 0.0
    %3634 = vmatpush1.msra.mxu0 0.0
    %3635 = vmatprep.subr.mxu0 0.0
    %3636 = vmatpush1.msra.mxu0 0.0
    %3637 = vmatprep.subr.mxu0 0.0
    %3638 = vmatpush1.msra.mxu0 0.0
    %3639 = vmatprep.subr.mxu0 0.0
    %3640 = vmatpush1.msra.mxu0 0.0
    %3641 = vmatprep.subr.mxu0 0.0
    %3642 = vmatpush1.msra.mxu0 0.0
    %3643 = vmatprep.subr.mxu0 0.0
    %3644 = vmatpush1.msra.mxu0 0.0
    %3645 = vmatprep.subr.mxu0 0.0
    %3646 = vmatpush1.msra.mxu0 0.0
    %3647 = vmatprep.subr.mxu0 0.0
    %3648 = vmatpush1.msra.mxu0 0.0
    %3649 = vmatprep.subr.mxu0 0.0
    %3650 = vmatpush1.msra.mxu0 0.0
    %3651 = vmatprep.subr.mxu0 0.0
    %3652 = vmatpush1.msra.mxu0 0.0
    %3653 = vmatprep.subr.mxu0 0.0
    %3654 = vmatpush1.msra.mxu0 0.0
    %3655 = vmatprep.subr.mxu0 0.0
    %3656 = vmatpush1.msra.mxu0 0.0
    %3657 = vmatprep.subr.mxu0 0.0
    %3658 = vmatpush1.msra.mxu0 0.0
    %3659 = vmatprep.subr.mxu0 0.0
    %3660 = vmatpush1.msra.mxu0 0.0
    %3661 = vmatprep.subr.mxu0 0.0
    %3662 = vmatpush1.msra.mxu0 0.0
    %3663 = vmatprep.subr.mxu0 0.0
    %3664 = vmatpush1.msra.mxu0 0.0
    %3665 = vmatprep.subr.mxu0 0.0
    %3666 = vmatpush1.msra.mxu0 0.0
    %3667 = vmatprep.subr.mxu0 0.0
    %3668 = vmatpush1.msra.mxu0 0.0
    %3669 = vmatprep.subr.mxu0 0.0
    %3670 = vmatpush1.msra.mxu0 0.0
    %3671 = vmatprep.subr.mxu0 0.0
    %3672 = vmatpush1.msra.mxu0 0.0
    %3673 = vmatprep.subr.mxu0 0.0
    %3674 = vmatpush1.msra.mxu0 0.0
    %3675 = vmatprep.subr.mxu0 0.0
    %3676 = vmatpush1.msra.mxu0 0.0
    %3677 = vmatprep.subr.mxu0 0.0
    %3678 = vmatpush1.msra.mxu0 0.0
    %3679 = vmatprep.subr.mxu0 0.0
    %3680 = vmatpush1.msra.mxu0 0.0
    %3681 = vmatprep.subr.mxu0 0.0
    %3682 = vmatpush1.msra.mxu0 0.0
    %3683 = vmatprep.subr.mxu0 0.0
    %3684 = vmatpush1.msra.mxu0 0.0
    %3685 = vmatprep.mubr.f32.mxu0 0.0
    %3686 = vmatmul.mubr.f32.gmra.mrb[0].mxu0 %v3619
    %v3687 = vpop.f32.mrb[0].mxu0
    %v3688 = vadd.f32 0.0, %v3687
    %v3689 = vpop.f32.mrb[0].mxu0
    %3690 = vdwg.mxu0
    %v3692 = vrot.slane %v3688, 4
    %v3694 = vadd.f32 %v2291, %v3692
    %v3695 = vxor.u32 %v3694, 2147483648
    %v3696 = vmul.f32 %v3695, 1.442695
    %v3697 = vpow.pop %v3696
    %v3698 = vadd.f32 %v3697, 1.0
    %v3699 = vrcp.pop %v3698
    %v3700 = vmul.f32 1.0, %v3699
    %v3701 = vmul.f32 %v3700, 2.0
    %v3702 = vsub.f32 %v3701, 1.0
    %v3704 = vrot.slane %v3604, 7
    %v3706 = vmul.f32 %v3700, %v3704
    %3708 = vrot.lane.b32.xlu0 %v3702, 32
    %v3709 = vpop.permute.xlu0 %3708
    %v3711 = vmul.f32 %v3700, %v3709
    %3713 = vrot.lane.b32.xlu0 %v3711, 32
    %v3714 = vpop.permute.xlu0 %3713
    %v3716 = vadd.f32 %v3706, %v3714
    %v3717 = vtanh.pop %v3716
    %3719 = vrot.lane.b32.xlu0 %v3717, 32
    %v3720 = vpop.permute.xlu0 %3719
    %v3722 = vmul.f32 %v3700, %v3720
    %3724 = vrot.lane.b32.xlu0 %v3722, 64
    %v3725 = vpop.permute.xlu0 %3724
    %3727 = vst.msk [vmem:[#allocation2 + $0x8] sm:$0x10] %vm807, %v3725
    %v3728 = vrot.slane %v3722, 4
    %3729 = vrot.lane.b32.xlu0 %v3728, 64
    %v3730 = vpop.permute.xlu0 %3729
    %v3731 = vsel %vm254, %v3730, 0
    %3733 = vmatprep.subr.mxu0 0.0
    %3734 = vmatpush1.msra.mxu0 %v2123
    %3735 = vmatprep.subr.mxu0 0.0
    %3736 = vmatpush1.msra.mxu0 %v2124
    %3737 = vmatprep.subr.mxu0 0.0
    %3738 = vmatpush1.msra.mxu0 %v2125
    %3739 = vmatprep.subr.mxu0 0.0
    %3740 = vmatpush1.msra.mxu0 %v2126
    %3741 = vmatprep.subr.mxu0 0.0
    %3742 = vmatpush1.msra.mxu0 0.0
    %3743 = vmatprep.subr.mxu0 0.0
    %3744 = vmatpush1.msra.mxu0 0.0
    %3745 = vmatprep.subr.mxu0 0.0
    %3746 = vmatpush1.msra.mxu0 0.0
    %3747 = vmatprep.subr.mxu0 0.0
    %3748 = vmatpush1.msra.mxu0 0.0
    %3749 = vmatprep.subr.mxu0 0.0
    %3750 = vmatpush1.msra.mxu0 0.0
    %3751 = vmatprep.subr.mxu0 0.0
    %3752 = vmatpush1.msra.mxu0 0.0
    %3753 = vmatprep.subr.mxu0 0.0
    %3754 = vmatpush1.msra.mxu0 0.0
    %3755 = vmatprep.subr.mxu0 0.0
    %3756 = vmatpush1.msra.mxu0 0.0
    %3757 = vmatprep.subr.mxu0 0.0
    %3758 = vmatpush1.msra.mxu0 0.0
    %3759 = vmatprep.subr.mxu0 0.0
    %3760 = vmatpush1.msra.mxu0 0.0
    %3761 = vmatprep.subr.mxu0 0.0
    %3762 = vmatpush1.msra.mxu0 0.0
    %3763 = vmatprep.subr.mxu0 0.0
    %3764 = vmatpush1.msra.mxu0 0.0
    %3765 = vmatprep.subr.mxu0 0.0
    %3766 = vmatpush1.msra.mxu0 0.0
    %3767 = vmatprep.subr.mxu0 0.0
    %3768 = vmatpush1.msra.mxu0 0.0
    %3769 = vmatprep.subr.mxu0 0.0
    %3770 = vmatpush1.msra.mxu0 0.0
    %3771 = vmatprep.subr.mxu0 0.0
    %3772 = vmatpush1.msra.mxu0 0.0
    %3773 = vmatprep.subr.mxu0 0.0
    %3774 = vmatpush1.msra.mxu0 0.0
    %3775 = vmatprep.subr.mxu0 0.0
    %3776 = vmatpush1.msra.mxu0 0.0
    %3777 = vmatprep.subr.mxu0 0.0
    %3778 = vmatpush1.msra.mxu0 0.0
    %3779 = vmatprep.subr.mxu0 0.0
    %3780 = vmatpush1.msra.mxu0 0.0
    %3781 = vmatprep.subr.mxu0 0.0
    %3782 = vmatpush1.msra.mxu0 0.0
    %3783 = vmatprep.subr.mxu0 0.0
    %3784 = vmatpush1.msra.mxu0 0.0
    %3785 = vmatprep.subr.mxu0 0.0
    %3786 = vmatpush1.msra.mxu0 0.0
    %3787 = vmatprep.subr.mxu0 0.0
    %3788 = vmatpush1.msra.mxu0 0.0
    %3789 = vmatprep.subr.mxu0 0.0
    %3790 = vmatpush1.msra.mxu0 0.0
    %3791 = vmatprep.subr.mxu0 0.0
    %3792 = vmatpush1.msra.mxu0 0.0
    %3793 = vmatprep.subr.mxu0 0.0
    %3794 = vmatpush1.msra.mxu0 0.0
    %3795 = vmatprep.subr.mxu0 0.0
    %3796 = vmatpush1.msra.mxu0 0.0
    %3797 = vmatprep.mubr.f32.mxu0 0.0
    %3798 = vmatmul.mubr.f32.gmra.mrb[0].mxu0 %v3731
    %v3799 = vpop.f32.mrb[0].mxu0
    %v3800 = vadd.f32 0.0, %v3799
    %v3801 = vpop.f32.mrb[0].mxu0
    %3802 = vdwg.mxu0
    %v3804 = vrot.slane %v3800, 3
    %v3806 = vadd.f32 %v2291, %v3804
    %v3807 = vxor.u32 %v3806, 2147483648
    %v3808 = vmul.f32 %v3807, 1.442695
    %v3809 = vpow.pop %v3808
    %v3810 = vadd.f32 %v3809, 1.0
    %v3811 = vrcp.pop %v3810
    %v3812 = vmul.f32 1.0, %v3811
    %v3813 = vmul.f32 %v3812, 2.0
    %v3814 = vsub.f32 %v3813, 1.0
    %v3816 = vrot.slane %v3716, 7
    %v3818 = vmul.f32 %v3812, %v3816
    %3820 = vrot.lane.b32.xlu0 %v3814, 32
    %v3821 = vpop.permute.xlu0 %3820
    %v3823 = vmul.f32 %v3812, %v3821
    %3825 = vrot.lane.b32.xlu0 %v3823, 32
    %v3826 = vpop.permute.xlu0 %3825
    %v3828 = vadd.f32 %v3818, %v3826
    %v3829 = vtanh.pop %v3828
    %3831 = vrot.lane.b32.xlu0 %v3829, 32
    %v3832 = vpop.permute.xlu0 %3831
    %v3834 = vmul.f32 %v3812, %v3832
    %3836 = vrot.lane.b32.xlu0 %v3834, 64
    %v3837 = vpop.permute.xlu0 %3836
    %3839 = vst.msk [vmem:[#allocation2 + $0x8] sm:$0x20] %vm920, %v3837
    %v3840 = vrot.slane %v3834, 5
    %3841 = vrot.lane.b32.xlu0 %v3840, 64
    %v3842 = vpop.permute.xlu0 %3841
    %v3843 = vsel %vm254, %v3842, 0
    %3845 = vmatprep.subr.mxu0 0.0
    %3846 = vmatpush1.msra.mxu0 %v2123
    %3847 = vmatprep.subr.mxu0 0.0
    %3848 = vmatpush1.msra.mxu0 %v2124
    %3849 = vmatprep.subr.mxu0 0.0
    %3850 = vmatpush1.msra.mxu0 %v2125
    %3851 = vmatprep.subr.mxu0 0.0
    %3852 = vmatpush1.msra.mxu0 %v2126
    %3853 = vmatprep.subr.mxu0 0.0
    %3854 = vmatpush1.msra.mxu0 0.0
    %3855 = vmatprep.subr.mxu0 0.0
    %3856 = vmatpush1.msra.mxu0 0.0
    %3857 = vmatprep.subr.mxu0 0.0
    %3858 = vmatpush1.msra.mxu0 0.0
    %3859 = vmatprep.subr.mxu0 0.0
    %3860 = vmatpush1.msra.mxu0 0.0
    %3861 = vmatprep.subr.mxu0 0.0
    %3862 = vmatpush1.msra.mxu0 0.0
    %3863 = vmatprep.subr.mxu0 0.0
    %3864 = vmatpush1.msra.mxu0 0.0
    %3865 = vmatprep.subr.mxu0 0.0
    %3866 = vmatpush1.msra.mxu0 0.0
    %3867 = vmatprep.subr.mxu0 0.0
    %3868 = vmatpush1.msra.mxu0 0.0
    %3869 = vmatprep.subr.mxu0 0.0
    %3870 = vmatpush1.msra.mxu0 0.0
    %3871 = vmatprep.subr.mxu0 0.0
    %3872 = vmatpush1.msra.mxu0 0.0
    %3873 = vmatprep.subr.mxu0 0.0
    %3874 = vmatpush1.msra.mxu0 0.0
    %3875 = vmatprep.subr.mxu0 0.0
    %3876 = vmatpush1.msra.mxu0 0.0
    %3877 = vmatprep.subr.mxu0 0.0
    %3878 = vmatpush1.msra.mxu0 0.0
    %3879 = vmatprep.subr.mxu0 0.0
    %3880 = vmatpush1.msra.mxu0 0.0
    %3881 = vmatprep.subr.mxu0 0.0
    %3882 = vmatpush1.msra.mxu0 0.0
    %3883 = vmatprep.subr.mxu0 0.0
    %3884 = vmatpush1.msra.mxu0 0.0
    %3885 = vmatprep.subr.mxu0 0.0
    %3886 = vmatpush1.msra.mxu0 0.0
    %3887 = vmatprep.subr.mxu0 0.0
    %3888 = vmatpush1.msra.mxu0 0.0
    %3889 = vmatprep.subr.mxu0 0.0
    %3890 = vmatpush1.msra.mxu0 0.0
    %3891 = vmatprep.subr.mxu0 0.0
    %3892 = vmatpush1.msra.mxu0 0.0
    %3893 = vmatprep.subr.mxu0 0.0
    %3894 = vmatpush1.msra.mxu0 0.0
    %3895 = vmatprep.subr.mxu0 0.0
    %3896 = vmatpush1.msra.mxu0 0.0
    %3897 = vmatprep.subr.mxu0 0.0
    %3898 = vmatpush1.msra.mxu0 0.0
    %3899 = vmatprep.subr.mxu0 0.0
    %3900 = vmatpush1.msra.mxu0 0.0
    %3901 = vmatprep.subr.mxu0 0.0
    %3902 = vmatpush1.msra.mxu0 0.0
    %3903 = vmatprep.subr.mxu0 0.0
    %3904 = vmatpush1.msra.mxu0 0.0
    %3905 = vmatprep.subr.mxu0 0.0
    %3906 = vmatpush1.msra.mxu0 0.0
    %3907 = vmatprep.subr.mxu0 0.0
    %3908 = vmatpush1.msra.mxu0 0.0
    %3909 = vmatprep.mubr.f32.mxu0 0.0
    %3910 = vmatmul.mubr.f32.gmra.mrb[0].mxu0 %v3843
    %v3911 = vpop.f32.mrb[0].mxu0
    %v3912 = vadd.f32 0.0, %v3911
    %v3913 = vpop.f32.mrb[0].mxu0
    %3914 = vdwg.mxu0
    %v3916 = vrot.slane %v3912, 2
    %v3918 = vadd.f32 %v2291, %v3916
    %v3919 = vxor.u32 %v3918, 2147483648
    %v3920 = vmul.f32 %v3919, 1.442695
    %v3921 = vpow.pop %v3920
    %v3922 = vadd.f32 %v3921, 1.0
    %v3923 = vrcp.pop %v3922
    %v3924 = vmul.f32 1.0, %v3923
    %v3925 = vmul.f32 %v3924, 2.0
    %v3926 = vsub.f32 %v3925, 1.0
    %v3928 = vrot.slane %v3828, 7
    %v3930 = vmul.f32 %v3924, %v3928
    %3932 = vrot.lane.b32.xlu0 %v3926, 32
    %v3933 = vpop.permute.xlu0 %3932
    %v3935 = vmul.f32 %v3924, %v3933
    %3937 = vrot.lane.b32.xlu0 %v3935, 32
    %v3938 = vpop.permute.xlu0 %3937
    %v3940 = vadd.f32 %v3930, %v3938
    %v3941 = vtanh.pop %v3940
    %3943 = vrot.lane.b32.xlu0 %v3941, 32
    %v3944 = vpop.permute.xlu0 %3943
    %v3946 = vmul.f32 %v3924, %v3944
    %3948 = vrot.lane.b32.xlu0 %v3946, 64
    %v3949 = vpop.permute.xlu0 %3948
    %3951 = vst.msk [vmem:[#allocation2 + $0x8] sm:$0x40] %vm1033, %v3949
    %v3952 = vrot.slane %v3946, 6
    %3953 = vrot.lane.b32.xlu0 %v3952, 64
    %v3954 = vpop.permute.xlu0 %3953
    %v3955 = vsel %vm254, %v3954, 0
    %3957 = vmatprep.subr.mxu0 0.0
    %3958 = vmatpush1.msra.mxu0 %v2123
    %3959 = vmatprep.subr.mxu0 0.0
    %3960 = vmatpush1.msra.mxu0 %v2124
    %3961 = vmatprep.subr.mxu0 0.0
    %3962 = vmatpush1.msra.mxu0 %v2125
    %3963 = vmatprep.subr.mxu0 0.0
    %3964 = vmatpush1.msra.mxu0 %v2126
    %3965 = vmatprep.subr.mxu0 0.0
    %3966 = vmatpush1.msra.mxu0 0.0
    %3967 = vmatprep.subr.mxu0 0.0
    %3968 = vmatpush1.msra.mxu0 0.0
    %3969 = vmatprep.subr.mxu0 0.0
    %3970 = vmatpush1.msra.mxu0 0.0
    %3971 = vmatprep.subr.mxu0 0.0
    %3972 = vmatpush1.msra.mxu0 0.0
    %3973 = vmatprep.subr.mxu0 0.0
    %3974 = vmatpush1.msra.mxu0 0.0
    %3975 = vmatprep.subr.mxu0 0.0
    %3976 = vmatpush1.msra.mxu0 0.0
    %3977 = vmatprep.subr.mxu0 0.0
    %3978 = vmatpush1.msra.mxu0 0.0
    %3979 = vmatprep.subr.mxu0 0.0
    %3980 = vmatpush1.msra.mxu0 0.0
    %3981 = vmatprep.subr.mxu0 0.0
    %3982 = vmatpush1.msra.mxu0 0.0
    %3983 = vmatprep.subr.mxu0 0.0
    %3984 = vmatpush1.msra.mxu0 0.0
    %3985 = vmatprep.subr.mxu0 0.0
    %3986 = vmatpush1.msra.mxu0 0.0
    %3987 = vmatprep.subr.mxu0 0.0
    %3988 = vmatpush1.msra.mxu0 0.0
    %3989 = vmatprep.subr.mxu0 0.0
    %3990 = vmatpush1.msra.mxu0 0.0
    %3991 = vmatprep.subr.mxu0 0.0
    %3992 = vmatpush1.msra.mxu0 0.0
    %3993 = vmatprep.subr.mxu0 0.0
    %3994 = vmatpush1.msra.mxu0 0.0
    %3995 = vmatprep.subr.mxu0 0.0
    %3996 = vmatpush1.msra.mxu0 0.0
    %3997 = vmatprep.subr.mxu0 0.0
    %3998 = vmatpush1.msra.mxu0 0.0
    %3999 = vmatprep.subr.mxu0 0.0
    %4000 = vmatpush1.msra.mxu0 0.0
    %4001 = vmatprep.subr.mxu0 0.0
    %4002 = vmatpush1.msra.mxu0 0.0
    %4003 = vmatprep.subr.mxu0 0.0
    %4004 = vmatpush1.msra.mxu0 0.0
    %4005 = vmatprep.subr.mxu0 0.0
    %4006 = vmatpush1.msra.mxu0 0.0
    %4007 = vmatprep.subr.mxu0 0.0
    %4008 = vmatpush1.msra.mxu0 0.0
    %4009 = vmatprep.subr.mxu0 0.0
    %4010 = vmatpush1.msra.mxu0 0.0
    %4011 = vmatprep.subr.mxu0 0.0
    %4012 = vmatpush1.msra.mxu0 0.0
    %4013 = vmatprep.subr.mxu0 0.0
    %4014 = vmatpush1.msra.mxu0 0.0
    %4015 = vmatprep.subr.mxu0 0.0
    %4016 = vmatpush1.msra.mxu0 0.0
    %4017 = vmatprep.subr.mxu0 0.0
    %4018 = vmatpush1.msra.mxu0 0.0
    %4019 = vmatprep.subr.mxu0 0.0
    %4020 = vmatpush1.msra.mxu0 0.0
    %4021 = vmatprep.mubr.f32.mxu0 0.0
    %4022 = vmatmul.mubr.f32.gmra.mrb[0].mxu0 %v3955
    %v4023 = vpop.f32.mrb[0].mxu0
    %v4024 = vadd.f32 0.0, %v4023
    %v4025 = vpop.f32.mrb[0].mxu0
    %4026 = vdwg.mxu0
    %v4028 = vrot.slane %v4024, 1
    %v4030 = vadd.f32 %v2291, %v4028
    %v4031 = vxor.u32 %v4030, 2147483648
    %v4032 = vmul.f32 %v4031, 1.442695
    %v4033 = vpow.pop %v4032
    %v4034 = vadd.f32 %v4033, 1.0
    %v4035 = vrcp.pop %v4034
    %v4036 = vmul.f32 1.0, %v4035
    %v4037 = vmul.f32 %v4036, 2.0
    %v4038 = vsub.f32 %v4037, 1.0
    %v4040 = vrot.slane %v3940, 7
    %v4042 = vmul.f32 %v4036, %v4040
    %4044 = vrot.lane.b32.xlu0 %v4038, 32
    %v4045 = vpop.permute.xlu0 %4044
    %v4047 = vmul.f32 %v4036, %v4045
    %4049 = vrot.lane.b32.xlu0 %v4047, 32
    %v4050 = vpop.permute.xlu0 %4049
    %v4052 = vadd.f32 %v4042, %v4050
    %v4053 = vtanh.pop %v4052
    %4055 = vrot.lane.b32.xlu0 %v4053, 32
    %v4056 = vpop.permute.xlu0 %4055
    %v4058 = vmul.f32 %v4036, %v4056
    %4060 = vrot.lane.b32.xlu0 %v4058, 64
    %v4061 = vpop.permute.xlu0 %4060
    %4063 = vst.msk [vmem:[#allocation2 + $0x8] sm:$0x80] %vm1146, %v4061
    %v4064 = vld [vmem:[#allocation2] sm:$0xff]
    %v4065 = vld [vmem:[#allocation2 + $0x8] sm:$0xff]
    %4066 = vmatprep.subr.mxu0 0.0
    %4067 = vmatpush1.msra.mxu0 %v4064
    %4068 = vmatprep.subr.mxu0 0.0
    %4069 = vmatpush1.msra.mxu0 %v4065
    %4070 = vmatprep.subr.mxu0 0.0
    %4071 = vmatpush1.msra.mxu0 0.0
    %4072 = vmatprep.subr.mxu0 0.0
    %4073 = vmatpush1.msra.mxu0 0.0
    %4074 = vmatprep.subr.mxu0 0.0
    %4075 = vmatpush1.msra.mxu0 0.0
    %4076 = vmatprep.subr.mxu0 0.0
    %4077 = vmatpush1.msra.mxu0 0.0
    %4078 = vmatprep.subr.mxu0 0.0
    %4079 = vmatpush1.msra.mxu0 0.0
    %4080 = vmatprep.subr.mxu0 0.0
    %4081 = vmatpush1.msra.mxu0 0.0
    %4082 = vmatprep.subr.mxu0 0.0
    %4083 = vmatpush1.msra.mxu0 0.0
    %4084 = vmatprep.subr.mxu0 0.0
    %4085 = vmatpush1.msra.mxu0 0.0
    %4086 = vmatprep.subr.mxu0 0.0
    %4087 = vmatpush1.msra.mxu0 0.0
    %4088 = vmatprep.subr.mxu0 0.0
    %4089 = vmatpush1.msra.mxu0 0.0
    %4090 = vmatprep.subr.mxu0 0.0
    %4091 = vmatpush1.msra.mxu0 0.0
    %4092 = vmatprep.subr.mxu0 0.0
    %4093 = vmatpush1.msra.mxu0 0.0
    %4094 = vmatprep.subr.mxu0 0.0
    %4095 = vmatpush1.msra.mxu0 0.0
    %4096 = vmatprep.subr.mxu0 0.0
    %4097 = vmatpush1.msra.mxu0 0.0
    %4098 = vmatprep.subr.mxu0 0.0
    %4099 = vmatpush1.msra.mxu0 0.0
    %4100 = vmatprep.subr.mxu0 0.0
    %4101 = vmatpush1.msra.mxu0 0.0
    %4102 = vmatprep.subr.mxu0 0.0
    %4103 = vmatpush1.msra.mxu0 0.0
    %4104 = vmatprep.subr.mxu0 0.0
    %4105 = vmatpush1.msra.mxu0 0.0
    %4106 = vmatprep.subr.mxu0 0.0
    %4107 = vmatpush1.msra.mxu0 0.0
    %4108 = vmatprep.subr.mxu0 0.0
    %4109 = vmatpush1.msra.mxu0 0.0
    %4110 = vmatprep.subr.mxu0 0.0
    %4111 = vmatpush1.msra.mxu0 0.0
    %4112 = vmatprep.subr.mxu0 0.0
    %4113 = vmatpush1.msra.mxu0 0.0
    %4114 = vmatprep.subr.mxu0 0.0
    %4115 = vmatpush1.msra.mxu0 0.0
    %4116 = vmatprep.subr.mxu0 0.0
    %4117 = vmatpush1.msra.mxu0 0.0
    %4118 = vmatprep.subr.mxu0 0.0
    %4119 = vmatpush1.msra.mxu0 0.0
    %4120 = vmatprep.subr.mxu0 0.0
    %4121 = vmatpush1.msra.mxu0 0.0
    %4122 = vmatprep.subr.mxu0 0.0
    %4123 = vmatpush1.msra.mxu0 0.0
    %4124 = vmatprep.subr.mxu0 0.0
    %4125 = vmatpush1.msra.mxu0 0.0
    %4126 = vmatprep.subr.mxu0 0.0
    %4127 = vmatpush1.msra.mxu0 0.0
    %4128 = vmatprep.subr.mxu0 0.0
    %4129 = vmatpush1.msra.mxu0 0.0
    %4130 = vmatprep.mubr.f32.mxu0 0.0
    %4131 = vmatmul.mubr.f32.gmra.mrb[0].mxu0 %v170
    %v4132 = vpop.f32.mrb[0].mxu0
    %v4133 = vadd.f32 0.0, %v4132
    %v4134 = vpop.f32.mrb[0].mxu0
    %4135 = vmatprep.mubr.f32.mxu0 0.0
    %4136 = vmatmul.mubr.f32.gmra.mrb[0].mxu0 %v173
    %v4137 = vpop.f32.mrb[0].mxu0
    %v4138 = vadd.f32 0.0, %v4137
    %v4139 = vpop.f32.mrb[0].mxu0
    %4140 = vdwg.mxu0
    %v4141 = vsel %vm2116, %v4064, %v4133
    %v4142 = vsel %vm2116, %v4065, %v4138
    %s4143 = sld [smem:[#allocation3]]
    %vm4144 = vcmp.eq.s32.totalorder %v62, 0
    %v4145 = vstv %s4143
    %vm4146 = vcmp.eq.s32.totalorder %v46, %v4145
    %vm4147 = vmand %vm4144, %vm4146
    %v4148 = vsel %vm4147, 1.0, 0.0
    %s4149 = sld [smem:[#allocation3 + $0x1]]
    %vm4150 = vcmp.eq.s32.totalorder %v62, 1
    %v4151 = vstv %s4149
    %vm4152 = vcmp.eq.s32.totalorder %v46, %v4151
    %vm4153 = vmand %vm4150, %vm4152
    %v4154 = vsel %vm4153, 1.0, %v4148
    %s4155 = sld [smem:[#allocation3 + $0x2]]
    %vm4156 = vcmp.eq.s32.totalorder %v62, 2
    %v4157 = vstv %s4155
    %vm4158 = vcmp.eq.s32.totalorder %v46, %v4157
    %vm4159 = vmand %vm4156, %vm4158
    %v4160 = vsel %vm4159, 1.0, %v4154
    %s4161 = sld [smem:[#allocation3 + $0x3]]
    %vm4162 = vcmp.eq.s32.totalorder %v62, 3
    %v4163 = vstv %s4161
    %vm4164 = vcmp.eq.s32.totalorder %v46, %v4163
    %vm4165 = vmand %vm4162, %vm4164
    %v4166 = vsel %vm4165, 1.0, %v4160
    %s4167 = sld [smem:[#allocation3 + $0x4]]
    %vm4168 = vcmp.eq.s32.totalorder %v62, 4
    %v4169 = vstv %s4167
    %vm4170 = vcmp.eq.s32.totalorder %v46, %v4169
    %vm4171 = vmand %vm4168, %vm4170
    %v4172 = vsel %vm4171, 1.0, %v4166
    %v4174 = vsel %vm168, %v4172, 0
    %4176 = vmatprep.subr.mxu0 0.0
    %4177 = vmatpush1.msra.mxu0 %v4141
    %4178 = vmatprep.subr.mxu0 0.0
    %4179 = vmatpush1.msra.mxu0 %v4142
    %4180 = vmatprep.subr.mxu0 0.0
    %4181 = vmatpush1.msra.mxu0 0.0
    %4182 = vmatprep.subr.mxu0 0.0
    %4183 = vmatpush1.msra.mxu0 0.0
    %4184 = vmatprep.subr.mxu0 0.0
    %4185 = vmatpush1.msra.mxu0 0.0
    %4186 = vmatprep.subr.mxu0 0.0
    %4187 = vmatpush1.msra.mxu0 0.0
    %4188 = vmatprep.subr.mxu0 0.0
    %4189 = vmatpush1.msra.mxu0 0.0
    %4190 = vmatprep.subr.mxu0 0.0
    %4191 = vmatpush1.msra.mxu0 0.0
    %4192 = vmatprep.subr.mxu0 0.0
    %4193 = vmatpush1.msra.mxu0 0.0
    %4194 = vmatprep.subr.mxu0 0.0
    %4195 = vmatpush1.msra.mxu0 0.0
    %4196 = vmatprep.subr.mxu0 0.0
    %4197 = vmatpush1.msra.mxu0 0.0
    %4198 = vmatprep.subr.mxu0 0.0
    %4199 = vmatpush1.msra.mxu0 0.0
    %4200 = vmatprep.subr.mxu0 0.0
    %4201 = vmatpush1.msra.mxu0 0.0
    %4202 = vmatprep.subr.mxu0 0.0
    %4203 = vmatpush1.msra.mxu0 0.0
    %4204 = vmatprep.subr.mxu0 0.0
    %4205 = vmatpush1.msra.mxu0 0.0
    %4206 = vmatprep.subr.mxu0 0.0
    %4207 = vmatpush1.msra.mxu0 0.0
    %4208 = vmatprep.subr.mxu0 0.0
    %4209 = vmatpush1.msra.mxu0 0.0
    %4210 = vmatprep.subr.mxu0 0.0
    %4211 = vmatpush1.msra.mxu0 0.0
    %4212 = vmatprep.subr.mxu0 0.0
    %4213 = vmatpush1.msra.mxu0 0.0
    %4214 = vmatprep.subr.mxu0 0.0
    %4215 = vmatpush1.msra.mxu0 0.0
    %4216 = vmatprep.subr.mxu0 0.0
    %4217 = vmatpush1.msra.mxu0 0.0
    %4218 = vmatprep.subr.mxu0 0.0
    %4219 = vmatpush1.msra.mxu0 0.0
    %4220 = vmatprep.subr.mxu0 0.0
    %4221 = vmatpush1.msra.mxu0 0.0
    %4222 = vmatprep.subr.mxu0 0.0
    %4223 = vmatpush1.msra.mxu0 0.0
    %4224 = vmatprep.subr.mxu0 0.0
    %4225 = vmatpush1.msra.mxu0 0.0
    %4226 = vmatprep.subr.mxu0 0.0
    %4227 = vmatpush1.msra.mxu0 0.0
    %4228 = vmatprep.subr.mxu0 0.0
    %4229 = vmatpush1.msra.mxu0 0.0
    %4230 = vmatprep.subr.mxu0 0.0
    %4231 = vmatpush1.msra.mxu0 0.0
    %4232 = vmatprep.subr.mxu0 0.0
    %4233 = vmatpush1.msra.mxu0 0.0
    %4234 = vmatprep.subr.mxu0 0.0
    %4235 = vmatpush1.msra.mxu0 0.0
    %4236 = vmatprep.subr.mxu0 0.0
    %4237 = vmatpush1.msra.mxu0 0.0
    %4238 = vmatprep.subr.mxu0 0.0
    %4239 = vmatpush1.msra.mxu0 0.0
    %4240 = vmatprep.mubr.f32.mxu0 0.0
    %4241 = vmatmul.mubr.f32.gmra.mrb[0].mxu0 %v4174
    %v4242 = vpop.f32.mrb[0].mxu0
    %v4243 = vadd.f32 0.0, %v4242
    %v4244 = vpop.f32.mrb[0].mxu0
    %4245 = vdwg.mxu0
    %v4246 = vld [vmem:[%s8] sm:$0xff]
    %v4247 = vld [vmem:[%s8 + $0x8] sm:$0xff]
    %v4248 = vld [vmem:[%s8 + $0x10] sm:$0xff]
    %v4249 = vld [vmem:[%s8 + $0x18] sm:$0xff]
    %v4251 = vsel %vm254, %v4243, 0
    %4253 = vmatprep.subr.mxu0 0.0
    %4254 = vmatpush1.msra.mxu0 %v4246
    %4255 = vmatprep.subr.mxu0 0.0
    %4256 = vmatpush1.msra.mxu0 %v4247
    %4257 = vmatprep.subr.mxu0 0.0
    %4258 = vmatpush1.msra.mxu0 %v4248
    %4259 = vmatprep.subr.mxu0 0.0
    %4260 = vmatpush1.msra.mxu0 %v4249
    %4261 = vmatprep.subr.mxu0 0.0
    %4262 = vmatpush1.msra.mxu0 0.0
    %4263 = vmatprep.subr.mxu0 0.0
    %4264 = vmatpush1.msra.mxu0 0.0
    %4265 = vmatprep.subr.mxu0 0.0
    %4266 = vmatpush1.msra.mxu0 0.0
    %4267 = vmatprep.subr.mxu0 0.0
    %4268 = vmatpush1.msra.mxu0 0.0
    %4269 = vmatprep.subr.mxu0 0.0
    %4270 = vmatpush1.msra.mxu0 0.0
    %4271 = vmatprep.subr.mxu0 0.0
    %4272 = vmatpush1.msra.mxu0 0.0
    %4273 = vmatprep.subr.mxu0 0.0
    %4274 = vmatpush1.msra.mxu0 0.0
    %4275 = vmatprep.subr.mxu0 0.0
    %4276 = vmatpush1.msra.mxu0 0.0
    %4277 = vmatprep.subr.mxu0 0.0
    %4278 = vmatpush1.msra.mxu0 0.0
    %4279 = vmatprep.subr.mxu0 0.0
    %4280 = vmatpush1.msra.mxu0 0.0
    %4281 = vmatprep.subr.mxu0 0.0
    %4282 = vmatpush1.msra.mxu0 0.0
    %4283 = vmatprep.subr.mxu0 0.0
    %4284 = vmatpush1.msra.mxu0 0.0
    %4285 = vmatprep.subr.mxu0 0.0
    %4286 = vmatpush1.msra.mxu0 0.0
    %4287 = vmatprep.subr.mxu0 0.0
    %4288 = vmatpush1.msra.mxu0 0.0
    %4289 = vmatprep.subr.mxu0 0.0
    %4290 = vmatpush1.msra.mxu0 0.0
    %4291 = vmatprep.subr.mxu0 0.0
    %4292 = vmatpush1.msra.mxu0 0.0
    %4293 = vmatprep.subr.mxu0 0.0
    %4294 = vmatpush1.msra.mxu0 0.0
    %4295 = vmatprep.subr.mxu0 0.0
    %4296 = vmatpush1.msra.mxu0 0.0
    %4297 = vmatprep.subr.mxu0 0.0
    %4298 = vmatpush1.msra.mxu0 0.0
    %4299 = vmatprep.subr.mxu0 0.0
    %4300 = vmatpush1.msra.mxu0 0.0
    %4301 = vmatprep.subr.mxu0 0.0
    %4302 = vmatpush1.msra.mxu0 0.0
    %4303 = vmatprep.subr.mxu0 0.0
    %4304 = vmatpush1.msra.mxu0 0.0
    %4305 = vmatprep.subr.mxu0 0.0
    %4306 = vmatpush1.msra.mxu0 0.0
    %4307 = vmatprep.subr.mxu0 0.0
    %4308 = vmatpush1.msra.mxu0 0.0
    %4309 = vmatprep.subr.mxu0 0.0
    %4310 = vmatpush1.msra.mxu0 0.0
    %4311 = vmatprep.subr.mxu0 0.0
    %4312 = vmatpush1.msra.mxu0 0.0
    %4313 = vmatprep.subr.mxu0 0.0
    %4314 = vmatpush1.msra.mxu0 0.0
    %4315 = vmatprep.subr.mxu0 0.0
    %4316 = vmatpush1.msra.mxu0 0.0
    %4317 = vmatprep.mubr.f32.mxu0 0.0
    %4318 = vmatmul.mubr.f32.gmra.mrb[0].mxu0 %v4251
    %v4319 = vpop.f32.mrb[0].mxu0
    %v4320 = vadd.f32 0.0, %v4319
    %v4321 = vpop.f32.mrb[0].mxu0
    %4322 = vdwg.mxu0
    %vm4323 = vcmask 61440
    %4324 = vst.msk [vmem:[%s9] sm:$0x1f] %vm4323, %v4320
    // Predicated region
    $region42: #{rnn_induce_forward.1} parent=1 // pred_check
      _
    $region43: #{rnn_induce_forward.1} parent=1 // pred_check_branch
      %4326 = sbr.rel (0) target = $region45
    $region44: #{rnn_induce_forward.1} parent=1 // pred_region
      _
    $region45: #{rnn_induce_forward.1} parent=1 // pred_fallthru
      _
    // Predicated region
    $region46: #{rnn_induce_forward.1} parent=1 // pred_check
      _
    $region47: #{rnn_induce_forward.1} parent=1 // pred_check_branch
      %4328 = sbr.rel (0) target = $region49
    $region48: #{rnn_induce_forward.1} parent=1 // pred_region
      _
    $region49: #{rnn_induce_forward.1} parent=1 // pred_fallthru
      _
    %4329 = vsyncpa [#allocation4], 1

</llo_original>
